<compile_context>
chip_gen: v7x
topology: tpu7x:2x2x1
jax: 0.10.0
libtpu: 0.0.40
codegen_flags: <defaults>
</compile_context>

<pallas_src>
import jax
import jax.numpy as jnp
import numpy as np
from jax import lax
from jax.experimental import pallas as pl
from jax.experimental.pallas import tpu as pltpu


def _round_up(x, m):
    return ((x + m - 1) // m) * m


def _max_tile_and_vmem_limit():
    """Generation-aware tile cap / scoped-VMEM limit.

    128 MiB parts (v5e / v6e) tolerate 1024-wide tiles and a 96 MiB limit;
    64 MiB parts (v7x) stay at <=512 tiles with a conservative 40 MiB limit.
    """
    vmem_cap = 64 * 1024 * 1024  # conservative default (v7x: 64 MiB per TensorCore)
    try:
        vmem_cap = int(pltpu.get_tpu_info().vmem_capacity_bytes)
    except Exception:
        pass
    if vmem_cap >= 128 * 1024 * 1024:
        return 1024, 96 * 1024 * 1024
    return 512, 40 * 1024 * 1024


def _choose_tiles(n_atoms, max_tile):
    """Pick (n_pad, tm, tn): lane-dense tiles, minimal padding, n_i >= 2 if possible."""
    n128 = _round_up(max(n_atoms, 128), 128)
    n_j = -(-n128 // max_tile)                   # ceil-div: minimum #j blocks
    tn = _round_up(-(-n128 // n_j), 128)         # multiple of 128, <= max_tile
    n_pad = tn * n_j
    tm = tn
    # Split the i axis so the "parallel" grid axis can shard across TensorCores
    # (v7x megacore); tm must stay a multiple of 128 for the (3, tm) posT_i block.
    if n_pad // tm == 1 and (n_pad // 2) % 128 == 0:
        tm = n_pad // 2
    return n_pad, tm, tn


def _make_morse_kernel(*, sigma, epsilon, alpha, cutoff, tm, tn):
    """Build the tiled Morse kernel with all parameters baked as constants."""
    neg_alpha = -alpha
    alpha_sigma = alpha * sigma
    neg_2ae = -2.0 * alpha * epsilon
    cutoff2 = cutoff * cutoff

    def kernel(pos_i_ref, posT_i_ref, posj_aug_ref, posT_j_ref,
               forces_ref, e_part_ref, t1_part_ref, u_part_ref,
               cp_acc, e_acc):
        j = pl.program_id(1)

        @pl.when(j == 0)
        def _init():
            cp_acc[...] = jnp.zeros_like(cp_acc)
            e_acc[...] = jnp.zeros_like(e_acc)
            t1_part_ref[...] = jnp.zeros_like(t1_part_ref)
            u_part_ref[...] = jnp.zeros_like(u_part_ref)

        pos_i = pos_i_ref[...]          # (TM, 3)   atom i on sublanes
        posj_aug = posj_aug_ref[...]    # (TN, 4)   [x, y, z, 1]
        posT_j = posT_j_ref[...]        # (3, TN)   atom j on lanes

        # Pairwise displacements d[i, j] = pos[i] - pos[j]  (i sublanes, j lanes).
        dx = pos_i[:, 0:1] - posT_j[0:1, :]
        dy = pos_i[:, 1:2] - posT_j[1:2, :]
        dz = pos_i[:, 2:3] - posT_j[2:3, :]
        r2 = dx * dx + dy * dy + dz * dz

        # Valid pair: off-diagonal (r2 == 0 exactly for i == j and for pad-pad pairs,
        # since all pad atoms share one sentinel coordinate) and inside the cutoff
        # (which also removes pad-real pairs: the sentinel sits far outside cutoff).
        valid = jnp.logical_and(r2 > 0.0, r2 < cutoff2)
        vmask = valid.astype(jnp.float32)

        r2_safe = jnp.where(valid, r2, 1.0)          # keep rsqrt finite
        inv_r = lax.rsqrt(r2_safe)                   # EUP
        exp_term = jnp.exp(neg_alpha * (r2_safe * inv_r) + alpha_sigma)   # EUP
        exp2 = exp_term * exp_term

        # V(r) = eps*(1 - e)^2 - eps = eps*(e^2 - 2 e)
        e_pair = (epsilon * (exp2 - 2.0 * exp_term)) * vmask
        # F(r)/r = -2*alpha*eps * e * (1 - e) / r = -2*alpha*eps * (e - e^2) / r
        coef = ((neg_2ae * (exp_term - exp2)) * inv_r) * vmask

        # Energy: vreg-shaped accumulation (pure VPU adds, no cross-lane reduce).
        e_acc[...] += jnp.sum(e_pair.reshape(tm // 8, 8, tn), axis=0)

        # MXU: coef @ [pos_j | 1] gives coef@pos_j and per-row coef sums in one shot.
        cp_acc[...] += jnp.dot(coef, posj_aug,
                               preferred_element_type=jnp.float32,
                               precision=lax.Precision.HIGHEST)

        @pl.when(j == pl.num_programs(1) - 1)
        def _finalize():
            posT_i = posT_i_ref[...]                 # (3, TM)
            cp = cp_acc[...]
            cp3 = cp[:, 0:3]                         # sum_j coef[i,j] * pos_j
            rowsum = cp[:, 3:4]                      # sum_j coef[i,j]

            # forces[i] = 2 * sum_j coef[i,j] * (pos_i - pos_j)
            forces_ref[...] = 2.0 * (pos_i * rowsum - cp3)

            dotargs = dict(preferred_element_type=jnp.float32,
                           precision=lax.Precision.HIGHEST)
            # T1 = sum_i (sum_j coef_ij) p_i p_i^T ;  U = sum_i p_i (sum_j coef_ij p_j)^T
            t1 = jnp.dot(posT_i, rowsum * pos_i, **dotargs)   # (3, 3)
            u = jnp.dot(posT_i, cp3, **dotargs)               # (3, 3)

            e_part_ref[0] = e_acc[...]               # lane-dense (8, tn) store
            t1_part_ref[0, 0:3, 0:3] = t1
            u_part_ref[0, 0:3, 0:3] = u

    return kernel


class UnbatchedMorseModel:
    """JAX/Pallas port of torch_sim UnbatchedMorseModel (dense all-pairs path)."""

    def __init__(self, sigma=1.0, epsilon=5.0, alpha=5.0, cutoff=None,
                 compute_forces=True, compute_stress=True):
        self.sigma = float(sigma)
        self.epsilon = float(epsilon)
        self.alpha = float(alpha)
        self.cutoff = float(cutoff if cutoff is not None else 2.5 * sigma)
        self.compute_forces = compute_forces
        self.compute_stress = compute_stress
        self._max_tile, self._vmem_limit = _max_tile_and_vmem_limit()
        self._call_cache = {}

    def _build(self, n_atoms):
        n_pad, tm, tn = _choose_tiles(n_atoms, self._max_tile)
        n_i = n_pad // tm
        n_j = n_pad // tn

        kernel = _make_morse_kernel(
            sigma=self.sigma, epsilon=self.epsilon, alpha=self.alpha,
            cutoff=self.cutoff, tm=tm, tn=tn)

        call = pl.pallas_call(
            kernel,
            out_shape=(
                jax.ShapeDtypeStruct((n_pad, 3), jnp.float32),     # forces (padded)
                jax.ShapeDtypeStruct((n_i, 8, tn), jnp.float32),   # per-i energy partial
                jax.ShapeDtypeStruct((n_i, 8, 128), jnp.float32),  # per-i T1 partial
                jax.ShapeDtypeStruct((n_i, 8, 128), jnp.float32),  # per-i U partial
            ),
            grid_spec=pltpu.PrefetchScalarGridSpec(
                num_scalar_prefetch=0,
                grid=(n_i, n_j),
                in_specs=[
                    pl.BlockSpec((tm, 3), lambda i, j: (i, 0)),    # pos_i
                    pl.BlockSpec((3, tm), lambda i, j: (0, i)),    # pos_i^T
                    pl.BlockSpec((tn, 4), lambda i, j: (j, 0)),    # [pos_j | 1]
                    pl.BlockSpec((3, tn), lambda i, j: (0, j)),    # pos_j^T
                ],
                out_specs=[
                    pl.BlockSpec((tm, 3), lambda i, j: (i, 0)),    # forces (resident over j)
                    pl.BlockSpec((1, 8, tn), lambda i, j: (i, 0, 0)),
                    pl.BlockSpec((1, 8, 128), lambda i, j: (i, 0, 0)),
                    pl.BlockSpec((1, 8, 128), lambda i, j: (i, 0, 0)),
                ],
                scratch_shapes=[
                    pltpu.VMEM((tm, 4), jnp.float32),   # cp accumulator (coef@[pos|1])
                    pltpu.VMEM((8, tn), jnp.float32),   # vreg-shaped energy accumulator
                ],
            ),
            compiler_params=pltpu.CompilerParams(
                dimension_semantics=("parallel", "arbitrary"),
                vmem_limit_bytes=self._vmem_limit,
            ),
        )
        return call, n_pad

    def __call__(self, positions, cell):
        positions = jnp.asarray(positions, jnp.float32)     # (N, 3)
        cell = jnp.asarray(cell, jnp.float32)               # (3, 3)
        n_atoms = positions.shape[0]

        if n_atoms not in self._call_cache:
            self._call_cache[n_atoms] = self._build(n_atoms)
        call, n_pad = self._call_cache[n_atoms]

        # Centering is translation-invariant for energy/forces/stress and reduces
        # cancellation in the MXU-based contractions.
        pos_c = positions - jnp.mean(positions, axis=0, keepdims=True)

        # Sentinel padding: pad atoms sit at a single far-away point, so pad-real
        # pairs fail the cutoff test and pad-pad pairs have r2 == 0 exactly; no
        # in-kernel pad mask is needed.
        sentinel = jnp.max(jnp.abs(pos_c)) + 2.0 * self.cutoff + 1.0
        pos_pad = jnp.full((n_pad, 3), sentinel, jnp.float32).at[:n_atoms].set(pos_c)
        posT_pad = pos_pad.T                                           # (3, n_pad)
        pos_aug = jnp.concatenate(
            [pos_pad, jnp.ones((n_pad, 1), jnp.float32)], axis=1)      # (n_pad, 4)

        forces_pad, e_part, t1_part, u_part = call(
            pos_pad, posT_pad, pos_aug, posT_pad)

        results = {"energy": 0.5 * jnp.sum(e_part)}
        if self.compute_forces:
            results["forces"] = forces_pad[:n_atoms]
        if self.compute_stress:
            t1 = jnp.sum(t1_part[:, 0:3, 0:3], axis=0)
            u = jnp.sum(u_part[:, 0:3, 0:3], axis=0)
            # Full (i, j) grid symmetry: TD_total == T1_total, so
            # stress_sum = T1 + TD - U - U^T = 2*T1 - U - U^T.
            stress_sum = 2.0 * t1 - u - u.T
            volume = jnp.abs(jnp.linalg.det(cell))
            results["stress"] = -stress_sum / volume
        return results


def _morse_reference(positions, cell, sigma, epsilon, alpha, cutoff):
    """Pure-JAX reference matching the torch forward (dense, pbc=False)."""
    d = positions[:, None, :] - positions[None, :, :]          # (N, N, 3)
    r = jnp.sqrt(jnp.sum(d * d, axis=-1))
    valid = (r > 0.0) & (r < cutoff)
    exp_term = jnp.exp(-alpha * (r - sigma))
    e = epsilon * (1.0 - exp_term) ** 2 - epsilon
    e = jnp.where(valid, e, 0.0)
    energy = 0.5 * jnp.sum(e)
    f = -2.0 * alpha * epsilon * exp_term * (1.0 - exp_term)
    coef = jnp.where(valid, f / jnp.where(valid, r, 1.0), 0.0)
    wd = coef[..., None] * d
    forces = 2.0 * jnp.sum(wd, axis=1)
    stress_sum = jnp.einsum("ija,ijb->ab", d, wd)
    volume = jnp.abs(jnp.linalg.det(cell))
    return energy, forces, -stress_sum / volume


if __name__ == "__main__":
    # Deterministic small system: 8x4x4 = 128 atoms on a perturbed lattice.
    key = jax.random.PRNGKey(0)
    spacing = 1.2
    gx, gy, gz = jnp.meshgrid(
        jnp.arange(8, dtype=jnp.float32),
        jnp.arange(4, dtype=jnp.float32),
        jnp.arange(4, dtype=jnp.float32),
        indexing="ij",
    )
    lattice = spacing * jnp.stack(
        [gx.reshape(-1), gy.reshape(-1), gz.reshape(-1)], axis=-1)   # (128, 3)
    noise = 0.05 * jax.random.normal(key, lattice.shape, dtype=jnp.float32)
    positions = lattice + noise
    cell = jnp.diag(jnp.array([8 * spacing, 4 * spacing, 4 * spacing],
                              dtype=jnp.float32))

    model = UnbatchedMorseModel(sigma=1.0, epsilon=5.0, alpha=5.0,
                                compute_forces=True, compute_stress=True)
    results = model(positions, cell)
    jax.block_until_ready(results)

    ref_e, ref_f, ref_s = _morse_reference(
        positions, cell, model.sigma, model.epsilon, model.alpha, model.cutoff)
    jax.block_until_ready((ref_e, ref_f, ref_s))

    np.testing.assert_allclose(np.asarray(results["energy"]), np.asarray(ref_e),
                               rtol=1e-4, atol=1e-3)
    np.testing.assert_allclose(np.asarray(results["forces"]), np.asarray(ref_f),
                               rtol=2e-4, atol=3e-3)
    np.testing.assert_allclose(np.asarray(results["stress"]), np.asarray(ref_s),
                               rtol=2e-4, atol=1e-3)

    print("KERNEL_OK")
</pallas_src>

<mosaic_0001>
module attributes {stable_mosaic.version = 11 : i64} {
  func.func @kernel(%arg0: i32, %arg1: i32, %arg2: memref<128x3xf32, #tpu.memory_space<vmem>>, %arg3: memref<3x128xf32, #tpu.memory_space<vmem>>, %arg4: memref<128x4xf32, #tpu.memory_space<vmem>>, %arg5: memref<3x128xf32, #tpu.memory_space<vmem>>, %arg6: memref<128x3xf32, #tpu.memory_space<vmem>>, %arg7: memref<1x8x128xf32, #tpu.memory_space<vmem>>, %arg8: memref<1x8x128xf32, #tpu.memory_space<vmem>>, %arg9: memref<1x8x128xf32, #tpu.memory_space<vmem>>, %arg10: memref<128x4xf32, #tpu.memory_space<vmem>>, %arg11: memref<8x128xf32, #tpu.memory_space<vmem>>) attributes {dimension_semantics = [#tpu.dimension_semantics<parallel>, #tpu.dimension_semantics<arbitrary>], iteration_bounds = array<i64: 1, 1>, scalar_prefetch = 0 : i64, scratch_operands = 2 : i64, tpu.core_type = #tpu.core_type<tc>, window_params = [{transform_indices = @transform_0, window_bounds = array<i64: 128, 3>}, {transform_indices = @transform_1, window_bounds = array<i64: 3, 128>}, {transform_indices = @transform_2, window_bounds = array<i64: 128, 4>}, {transform_indices = @transform_3, window_bounds = array<i64: 3, 128>}, {transform_indices = @transform_4, window_bounds = array<i64: 128, 3>}, {transform_indices = @transform_5, window_bounds = array<i64: 1, 8, 128>}, {transform_indices = @transform_6, window_bounds = array<i64: 1, 8, 128>}, {transform_indices = @transform_7, window_bounds = array<i64: 1, 8, 128>}]} {
    %c0_i32 = arith.constant 0 : i32
    %0 = arith.cmpi eq, %arg1, %c0_i32 : i32
    %1 = arith.extui %0 : i1 to i32
    %c0_i32_0 = arith.constant 0 : i32
    %2 = arith.cmpi ne, %1, %c0_i32_0 : i32
    scf.if %2 {
      %cst_25 = arith.constant 0.000000e+00 : f32
      %66 = vector.broadcast %cst_25 : f32 to vector<128x4xf32>
      %c0_26 = arith.constant 0 : index
      %c0_27 = arith.constant 0 : index
      %67 = vector.load %arg10[%c0_26, %c0_27] : memref<128x4xf32, #tpu.memory_space<vmem>>, vector<128x4xf32>
      tpu.vector_store %arg10[%c0_26, %c0_27], %66 {strides = array<i32>} : memref<128x4xf32, #tpu.memory_space<vmem>>, vector<128x4xf32>,
      %cst_28 = arith.constant 0.000000e+00 : f32
      %68 = vector.broadcast %cst_28 : f32 to vector<8x128xf32>
      %c0_29 = arith.constant 0 : index
      %c0_30 = arith.constant 0 : index
      %69 = vector.load %arg11[%c0_29, %c0_30] : memref<8x128xf32, #tpu.memory_space<vmem>>, vector<8x128xf32>
      tpu.vector_store %arg11[%c0_29, %c0_30], %68 {strides = array<i32>} : memref<8x128xf32, #tpu.memory_space<vmem>>, vector<8x128xf32>,
      %cst_31 = arith.constant 0.000000e+00 : f32
      %70 = vector.broadcast %cst_31 : f32 to vector<1x8x128xf32>
      %c0_32 = arith.constant 0 : index
      %c0_33 = arith.constant 0 : index
      %c0_34 = arith.constant 0 : index
      %71 = vector.load %arg8[%c0_32, %c0_33, %c0_34] : memref<1x8x128xf32, #tpu.memory_space<vmem>>, vector<1x8x128xf32>
      tpu.vector_store %arg8[%c0_32, %c0_33, %c0_34], %70 {strides = array<i32>} : memref<1x8x128xf32, #tpu.memory_space<vmem>>, vector<1x8x128xf32>,
      %cst_35 = arith.constant 0.000000e+00 : f32
      %72 = vector.broadcast %cst_35 : f32 to vector<1x8x128xf32>
      %c0_36 = arith.constant 0 : index
      %c0_37 = arith.constant 0 : index
      %c0_38 = arith.constant 0 : index
      %73 = vector.load %arg9[%c0_36, %c0_37, %c0_38] : memref<1x8x128xf32, #tpu.memory_space<vmem>>, vector<1x8x128xf32>
      tpu.vector_store %arg9[%c0_36, %c0_37, %c0_38], %72 {strides = array<i32>} : memref<1x8x128xf32, #tpu.memory_space<vmem>>, vector<1x8x128xf32>,
    } else {
    }
    %c0 = arith.constant 0 : index
    %c0_1 = arith.constant 0 : index
    %3 = vector.load %arg2[%c0, %c0_1] : memref<128x3xf32, #tpu.memory_space<vmem>>, vector<128x3xf32>
    %c0_2 = arith.constant 0 : index
    %c0_3 = arith.constant 0 : index
    %4 = vector.load %arg4[%c0_2, %c0_3] : memref<128x4xf32, #tpu.memory_space<vmem>>, vector<128x4xf32>
    %c0_4 = arith.constant 0 : index
    %c0_5 = arith.constant 0 : index
    %5 = vector.load %arg5[%c0_4, %c0_5] : memref<3x128xf32, #tpu.memory_space<vmem>>, vector<3x128xf32>
    %6 = vector.extract_strided_slice %3 {offsets = [0, 0], sizes = [128, 1], strides = [1, 1]} : vector<128x3xf32> to vector<128x1xf32>
    %7 = vector.extract_strided_slice %5 {offsets = [0, 0], sizes = [1, 128], strides = [1, 1]} : vector<3x128xf32> to vector<1x128xf32>
    %8 = vector.broadcast %6 : vector<128x1xf32> to vector<128x128xf32>
    %9 = vector.broadcast %7 : vector<1x128xf32> to vector<128x128xf32>
    %10 = arith.subf %8, %9 : vector<128x128xf32>
    %11 = vector.extract_strided_slice %3 {offsets = [0, 1], sizes = [128, 1], strides = [1, 1]} : vector<128x3xf32> to vector<128x1xf32>
    %12 = vector.extract_strided_slice %5 {offsets = [1, 0], sizes = [1, 128], strides = [1, 1]} : vector<3x128xf32> to vector<1x128xf32>
    %13 = vector.broadcast %11 : vector<128x1xf32> to vector<128x128xf32>
    %14 = vector.broadcast %12 : vector<1x128xf32> to vector<128x128xf32>
    %15 = arith.subf %13, %14 : vector<128x128xf32>
    %16 = vector.extract_strided_slice %3 {offsets = [0, 2], sizes = [128, 1], strides = [1, 1]} : vector<128x3xf32> to vector<128x1xf32>
    %17 = vector.extract_strided_slice %5 {offsets = [2, 0], sizes = [1, 128], strides = [1, 1]} : vector<3x128xf32> to vector<1x128xf32>
    %18 = vector.broadcast %16 : vector<128x1xf32> to vector<128x128xf32>
    %19 = vector.broadcast %17 : vector<1x128xf32> to vector<128x128xf32>
    %20 = arith.subf %18, %19 : vector<128x128xf32>
    %21 = arith.mulf %10, %10 : vector<128x128xf32>
    %22 = arith.mulf %15, %15 : vector<128x128xf32>
    %23 = arith.addf %21, %22 : vector<128x128xf32>
    %24 = arith.mulf %20, %20 : vector<128x128xf32>
    %25 = arith.addf %23, %24 : vector<128x128xf32>
    %cst = arith.constant 0.000000e+00 : f32
    %26 = vector.broadcast %cst : f32 to vector<128x128xf32>
    %27 = arith.cmpf ogt, %25, %26 : vector<128x128xf32>
    %cst_6 = arith.constant 6.250000e+00 : f32
    %28 = vector.broadcast %cst_6 : f32 to vector<128x128xf32>
    %29 = arith.cmpf olt, %25, %28 : vector<128x128xf32>
    %30 = arith.andi %27, %29 : vector<128x128xi1>
    %31 = arith.extui %30 : vector<128x128xi1> to vector<128x128xi32>
    %32 = arith.sitofp %31 : vector<128x128xi32> to vector<128x128xf32>
    %cst_7 = arith.constant 1.000000e+00 : f32
    %33 = vector.broadcast %cst_7 : f32 to vector<128x128xf32>
    %34 = arith.select %30, %25, %33 : vector<128x128xi1>, vector<128x128xf32>
    %35 = math.rsqrt %34 : vector<128x128xf32>
    %36 = arith.mulf %34, %35 : vector<128x128xf32>
    %cst_8 = arith.constant -5.000000e+00 : f32
    %37 = vector.broadcast %cst_8 : f32 to vector<128x128xf32>
    %38 = arith.mulf %37, %36 : vector<128x128xf32>
    %cst_9 = arith.constant 5.000000e+00 : f32
    %39 = vector.broadcast %cst_9 : f32 to vector<128x128xf32>
    %40 = arith.addf %38, %39 : vector<128x128xf32>
    %41 = math.exp %40 : vector<128x128xf32>
    %42 = arith.mulf %41, %41 : vector<128x128xf32>
    %cst_10 = arith.constant 2.000000e+00 : f32
    %43 = vector.broadcast %cst_10 : f32 to vector<128x128xf32>
    %44 = arith.mulf %43, %41 : vector<128x128xf32>
    %45 = arith.subf %42, %44 : vector<128x128xf32>
    %cst_11 = arith.constant 5.000000e+00 : f32
    %46 = vector.broadcast %cst_11 : f32 to vector<128x128xf32>
    %47 = arith.mulf %46, %45 : vector<128x128xf32>
    %48 = arith.mulf %47, %32 : vector<128x128xf32>
    %49 = arith.subf %41, %42 : vector<128x128xf32>
    %cst_12 = arith.constant -5.000000e+01 : f32
    %50 = vector.broadcast %cst_12 : f32 to vector<128x128xf32>
    %51 = arith.mulf %50, %49 : vector<128x128xf32>
    %52 = arith.mulf %51, %35 : vector<128x128xf32>
    %53 = arith.mulf %52, %32 : vector<128x128xf32>
    %c0_13 = arith.constant 0 : index
    %c0_14 = arith.constant 0 : index
    %54 = vector.load %arg11[%c0_13, %c0_14] : memref<8x128xf32, #tpu.memory_space<vmem>>, vector<8x128xf32>
    %55 = vector.shape_cast %48 : vector<128x128xf32> to vector<16x8x128xf32>
    %cst_15 = arith.constant dense<0.000000e+00> : vector<8x128xf32>
    %56 = vector.multi_reduction <add>, %55, %cst_15 [0] : vector<16x8x128xf32> to vector<8x128xf32>
    %57 = arith.addf %54, %56 : vector<8x128xf32>
    %c0_16 = arith.constant 0 : index
    %c0_17 = arith.constant 0 : index
    %58 = vector.load %arg11[%c0_16, %c0_17] : memref<8x128xf32, #tpu.memory_space<vmem>>, vector<8x128xf32>
    tpu.vector_store %arg11[%c0_16, %c0_17], %57 {strides = array<i32>} : memref<8x128xf32, #tpu.memory_space<vmem>>, vector<8x128xf32>,
    %c0_18 = arith.constant 0 : index
    %c0_19 = arith.constant 0 : index
    %59 = vector.load %arg10[%c0_18, %c0_19] : memref<128x4xf32, #tpu.memory_space<vmem>>, vector<128x4xf32>
    %cst_20 = arith.constant dense<0.000000e+00> : vector<128x4xf32>
    %60 = tpu.matmul %53, %4, %cst_20 {dimension_numbers = #tpu.dot_dimension_numbers<[1], [0], [0], [1], [0, 0, 1, 1], [], []>, precision = #tpu.contract_precision<fp32>} : vector<128x128xf32>, vector<128x4xf32>, vector<128x4xf32> -> vector<128x4xf32>
    %61 = arith.addf %59, %60 : vector<128x4xf32>
    %c0_21 = arith.constant 0 : index
    %c0_22 = arith.constant 0 : index
    %62 = vector.load %arg10[%c0_21, %c0_22] : memref<128x4xf32, #tpu.memory_space<vmem>>, vector<128x4xf32>
    tpu.vector_store %arg10[%c0_21, %c0_22], %61 {strides = array<i32>} : memref<128x4xf32, #tpu.memory_space<vmem>>, vector<128x4xf32>,
    %c0_i32_23 = arith.constant 0 : i32
    %63 = arith.cmpi eq, %arg1, %c0_i32_23 : i32
    %64 = arith.extui %63 : i1 to i32
    %c0_i32_24 = arith.constant 0 : i32
    %65 = arith.cmpi ne, %64, %c0_i32_24 : i32
    scf.if %65 {
      %c0_25 = arith.constant 0 : index
      %c0_26 = arith.constant 0 : index
      %66 = vector.load %arg3[%c0_25, %c0_26] : memref<3x128xf32, #tpu.memory_space<vmem>>, vector<3x128xf32>
      %c0_27 = arith.constant 0 : index
      %c0_28 = arith.constant 0 : index
      %67 = vector.load %arg10[%c0_27, %c0_28] : memref<128x4xf32, #tpu.memory_space<vmem>>, vector<128x4xf32>
      %68 = vector.extract_strided_slice %67 {offsets = [0, 0], sizes = [128, 3], strides = [1, 1]} : vector<128x4xf32> to vector<128x3xf32>
      %69 = vector.extract_strided_slice %67 {offsets = [0, 3], sizes = [128, 1], strides = [1, 1]} : vector<128x4xf32> to vector<128x1xf32>
      %70 = vector.broadcast %69 : vector<128x1xf32> to vector<128x3xf32>
      %71 = arith.mulf %3, %70 : vector<128x3xf32>
      %72 = arith.subf %71, %68 : vector<128x3xf32>
      %cst_29 = arith.constant 2.000000e+00 : f32
      %73 = vector.broadcast %cst_29 : f32 to vector<128x3xf32>
      %74 = arith.mulf %73, %72 : vector<128x3xf32>
      %c0_30 = arith.constant 0 : index
      %c0_31 = arith.constant 0 : index
      %75 = vector.load %arg6[%c0_30, %c0_31] : memref<128x3xf32, #tpu.memory_space<vmem>>, vector<128x3xf32>
      tpu.vector_store %arg6[%c0_30, %c0_31], %74 {strides = array<i32>} : memref<128x3xf32, #tpu.memory_space<vmem>>, vector<128x3xf32>,
      %76 = vector.broadcast %69 : vector<128x1xf32> to vector<128x3xf32>
      %77 = arith.mulf %76, %3 : vector<128x3xf32>
      %cst_32 = arith.constant dense<0.000000e+00> : vector<3x3xf32>
      %78 = tpu.matmul %66, %77, %cst_32 {dimension_numbers = #tpu.dot_dimension_numbers<[1], [0], [0], [1], [0, 0, 1, 1], [], []>, precision = #tpu.contract_precision<fp32>} : vector<3x128xf32>, vector<128x3xf32>, vector<3x3xf32> -> vector<3x3xf32>
      %cst_33 = arith.constant dense<0.000000e+00> : vector<3x3xf32>
      %79 = tpu.matmul %66, %68, %cst_33 {dimension_numbers = #tpu.dot_dimension_numbers<[1], [0], [0], [1], [0, 0, 1, 1], [], []>, precision = #tpu.contract_precision<fp32>} : vector<3x128xf32>, vector<128x3xf32>, vector<3x3xf32> -> vector<3x3xf32>
      %c0_34 = arith.constant 0 : index
      %c0_35 = arith.constant 0 : index
      %80 = vector.load %arg11[%c0_34, %c0_35] : memref<8x128xf32, #tpu.memory_space<vmem>>, vector<8x128xf32>
      %c0_36 = arith.constant 0 : index
      %c0_37 = arith.constant 0 : index
      %c0_38 = arith.constant 0 : index
      %81 = vector.load %arg7[%c0_36, %c0_37, %c0_38] : memref<1x8x128xf32, #tpu.memory_space<vmem>>, vector<1x8x128xf32>
      %82 = vector.shape_cast %81 : vector<1x8x128xf32> to vector<8x128xf32>
      %83 = vector.shape_cast %80 : vector<8x128xf32> to vector<1x8x128xf32>
      tpu.vector_store %arg7[%c0_36, %c0_37, %c0_38], %83 {strides = array<i32>} : memref<1x8x128xf32, #tpu.memory_space<vmem>>, vector<1x8x128xf32>,
      %c0_39 = arith.constant 0 : index
      %c0_40 = arith.constant 0 : index
      %c0_41 = arith.constant 0 : index
      %84 = vector.load %arg8[%c0_39, %c0_40, %c0_41] : memref<1x8x128xf32, #tpu.memory_space<vmem>>, vector<1x3x3xf32>
      %85 = vector.shape_cast %84 : vector<1x3x3xf32> to vector<3x3xf32>
      %86 = vector.shape_cast %78 : vector<3x3xf32> to vector<1x3x3xf32>
      tpu.vector_store %arg8[%c0_39, %c0_40, %c0_41], %86 {strides = array<i32>} : memref<1x8x128xf32, #tpu.memory_space<vmem>>, vector<1x3x3xf32>,
      %c0_42 = arith.constant 0 : index
      %c0_43 = arith.constant 0 : index
      %c0_44 = arith.constant 0 : index
      %87 = vector.load %arg9[%c0_42, %c0_43, %c0_44] : memref<1x8x128xf32, #tpu.memory_space<vmem>>, vector<1x3x3xf32>
      %88 = vector.shape_cast %87 : vector<1x3x3xf32> to vector<3x3xf32>
      %89 = vector.shape_cast %79 : vector<3x3xf32> to vector<1x3x3xf32>
      tpu.vector_store %arg9[%c0_42, %c0_43, %c0_44], %89 {strides = array<i32>} : memref<1x8x128xf32, #tpu.memory_space<vmem>>, vector<1x3x3xf32>,
    } else {
    }
    return
  }
  func.func @transform_0(%arg0: i32, %arg1: i32) -> (i32, i32) {
    %c0_i32 = arith.constant 0 : i32
    %c0_i32_0 = arith.constant 0 : i32
    return %arg0, %c0_i32 : i32, i32
  }
  func.func @transform_1(%arg0: i32, %arg1: i32) -> (i32, i32) {
    %c0_i32 = arith.constant 0 : i32
    %c0_i32_0 = arith.constant 0 : i32
    return %c0_i32, %arg0 : i32, i32
  }
  func.func @transform_2(%arg0: i32, %arg1: i32) -> (i32, i32) {
    %c0_i32 = arith.constant 0 : i32
    %c0_i32_0 = arith.constant 0 : i32
    return %arg1, %c0_i32 : i32, i32
  }
  func.func @transform_3(%arg0: i32, %arg1: i32) -> (i32, i32) {
    %c0_i32 = arith.constant 0 : i32
    %c0_i32_0 = arith.constant 0 : i32
    return %c0_i32, %arg1 : i32, i32
  }
  func.func @transform_4(%arg0: i32, %arg1: i32) -> (i32, i32) {
    %c0_i32 = arith.constant 0 : i32
    %c0_i32_0 = arith.constant 0 : i32
    return %arg0, %c0_i32 : i32, i32
  }
  func.func @transform_5(%arg0: i32, %arg1: i32) -> (i32, i32, i32) {
    %c0_i32 = arith.constant 0 : i32
    %c0_i32_0 = arith.constant 0 : i32
    %c0_i32_1 = arith.constant 0 : i32
    return %arg0, %c0_i32, %c0_i32_0 : i32, i32, i32
  }
  func.func @transform_6(%arg0: i32, %arg1: i32) -> (i32, i32, i32) {
    %c0_i32 = arith.constant 0 : i32
    %c0_i32_0 = arith.constant 0 : i32
    %c0_i32_1 = arith.constant 0 : i32
    return %arg0, %c0_i32, %c0_i32_0 : i32, i32, i32
  }
  func.func @transform_7(%arg0: i32, %arg1: i32) -> (i32, i32, i32) {
    %c0_i32 = arith.constant 0 : i32
    %c0_i32_0 = arith.constant 0 : i32
    %c0_i32_1 = arith.constant 0 : i32
    return %arg0, %c0_i32, %c0_i32_0 : i32, i32, i32
  }
}

</mosaic_0001>

<llo_original>
// kernel: tpu_custom_call.1
$region0: #{tpu_custom_call.1}
  #allocation0 [shape = 'u32[]', space=smem, size = 0x4, offset = 0x4, fixed_abs, tag = 'smem constant byte address 0x4 - core index']
  #allocation1 [shape = 'u32[144,128]{1,0:T(1,128)}', space=vmem, size = 0x12000, scoped, tag = 'internal scratch']
  #allocation2 [shape = 'f32[128,4]{1,0:T(8,128)}', space=vmem, size = 0x10000, scoped, tag = 'scratch operand']
  #allocation3 [shape = 'f32[8,128]{1,0:T(8,128)}', space=vmem, size = 0x1000, scoped, tag = 'scratch operand']
  %s0 = inlined_call_operand.vmem [shape: f32[128,3], index: 0, kind: input, shape index: {}]
  %s1 = inlined_call_operand.vmem [shape: f32[3,128], index: 1, kind: input, shape index: {}]
  %s2 = inlined_call_operand.vmem [shape: f32[128,4], index: 2, kind: input, shape index: {}]
  %s3 = inlined_call_operand.vmem [shape: f32[3,128], index: 3, kind: input, shape index: {}]
  %s4 = inlined_call_operand.vmem [shape: f32[128,3], index: 4, kind: output, shape index: {0}]
  %s5 = inlined_call_operand.hbm [shape: f32[1,8,128], index: 5, kind: output, shape index: {1}]
  %s6 = inlined_call_operand.hbm [shape: f32[1,8,128], index: 6, kind: output, shape index: {2}]
  %s7 = inlined_call_operand.hbm [shape: f32[1,8,128], index: 7, kind: output, shape index: {3}]
  %8 = xla_tuple %s4, %s5, %s6, %s7
  %s9 = sld [smem:[#allocation0]]
  $region58: #{tpu_custom_call.1} parent=0
    _
  %s11 = ssub.s32 1, %s9
  %s12 = scalar_select 0, %s11, %s9
  $region1: #{tpu_custom_call.1} parent=0
    #allocation4 [shape = 'u8[4096]{0}', space=vmem, size = 0x1000, scoped, tag = 'output window, operand 1, single buffered']
    #allocation5 [shape = 's32[1]{0}', space=sflag, size = 0x4, scoped, tag = 'scoped memory for tpu_custom_call.1']
    #allocation6 [shape = 'u8[4096]{0}', space=vmem, size = 0x1000, scoped, tag = 'output window, operand 2, single buffered']
    #allocation7 [shape = 's32[1]{0}', space=sflag, size = 0x4, scoped, tag = 'scoped memory for tpu_custom_call.1']
    #allocation8 [shape = 'u8[4096]{0}', space=vmem, size = 0x1000, scoped, tag = 'output window, operand 3, single buffered']
    %13 = vsyncpa [#allocation5], 0
    %14 = vsyncpa [#allocation7], 0
    // Predicated region
    $region2: #{tpu_custom_call.1} parent=1 // pred_check
      _
    $region3: #{tpu_custom_call.1} parent=1 // pred_check_branch
      %16 = sbr.rel (0) target = $region5
    $region4: #{tpu_custom_call.1} parent=1 // pred_region
      _
    $region5: #{tpu_custom_call.1} parent=1 // pred_fallthru
      _
    // Predicated region
    $region6: #{tpu_custom_call.1} parent=1 // pred_check
      _
    $region7: #{tpu_custom_call.1} parent=1 // pred_check_branch
      %18 = sbr.rel (0) target = $region9
    $region8: #{tpu_custom_call.1} parent=1 // pred_region
      _
    $region9: #{tpu_custom_call.1} parent=1 // pred_fallthru
      _
    // Predicated region
    $region10: #{tpu_custom_call.1} parent=1 // pred_check
      _
    $region11: #{tpu_custom_call.1} parent=1 // pred_check_branch
      %20 = sbr.rel (0) target = $region13
    $region12: #{tpu_custom_call.1} parent=1 // pred_region
      _
    $region13: #{tpu_custom_call.1} parent=1 // pred_fallthru
      _
    // Predicated region
    $region14: #{tpu_custom_call.1} parent=1 // pred_check
      _
    $region15: #{tpu_custom_call.1} parent=1 // pred_check_branch
      %22 = sbr.rel (0) target = $region17
    $region16: #{tpu_custom_call.1} parent=1 // pred_region
      _
    $region17: #{tpu_custom_call.1} parent=1 // pred_fallthru
      _
    %p23 = scmp.eq.s32.totalorder 0, 0
    // Predicated region
    $region18: #{tpu_custom_call.1} parent=1 // pred_check
      %p24 = pneg %p23
    $region19: #{tpu_custom_call.1} parent=1 // pred_check_branch
      %26 = sbr.rel (%p24) target = $region21
    $region20: #{tpu_custom_call.1} parent=1 // pred_region
      %vm27 = vcmask 31744
      %28 = vst.msk [vmem:[#allocation2] sm:$0xff] %vm27, 0.0
      %29 = vst.msk [vmem:[#allocation2 + $0x8] sm:$0xff] %vm27, 0.0
      %30 = vst.msk [vmem:[#allocation2 + $0x10] sm:$0xff] %vm27, 0.0
      %31 = vst.msk [vmem:[#allocation2 + $0x18] sm:$0xff] %vm27, 0.0
      %32 = vst.msk [vmem:[#allocation2 + $0x20] sm:$0xff] %vm27, 0.0
      %33 = vst.msk [vmem:[#allocation2 + $0x28] sm:$0xff] %vm27, 0.0
      %34 = vst.msk [vmem:[#allocation2 + $0x30] sm:$0xff] %vm27, 0.0
      %35 = vst.msk [vmem:[#allocation2 + $0x38] sm:$0xff] %vm27, 0.0
      %36 = vst.msk [vmem:[#allocation2 + $0x40] sm:$0xff] %vm27, 0.0
      %37 = vst.msk [vmem:[#allocation2 + $0x48] sm:$0xff] %vm27, 0.0
      %38 = vst.msk [vmem:[#allocation2 + $0x50] sm:$0xff] %vm27, 0.0
      %39 = vst.msk [vmem:[#allocation2 + $0x58] sm:$0xff] %vm27, 0.0
      %40 = vst.msk [vmem:[#allocation2 + $0x60] sm:$0xff] %vm27, 0.0
      %41 = vst.msk [vmem:[#allocation2 + $0x68] sm:$0xff] %vm27, 0.0
      %42 = vst.msk [vmem:[#allocation2 + $0x70] sm:$0xff] %vm27, 0.0
      %43 = vst.msk [vmem:[#allocation2 + $0x78] sm:$0xff] %vm27, 0.0
      %44 = vst [vmem:[#allocation3] sm:$0xff] 0.0
      %45 = vst [vmem:[#allocation6] sm:$0xff] 0.0
      %46 = vst [vmem:[#allocation8] sm:$0xff] 0.0
    $region21: #{tpu_custom_call.1} parent=1 // pred_fallthru
      _
    %v47 = vld [vmem:[%s0] sm:$0xff]
    %v48 = vld [vmem:[%s0 + $0x8] sm:$0xff]
    %v49 = vld [vmem:[%s0 + $0x10] sm:$0xff]
    %v50 = vld [vmem:[%s0 + $0x18] sm:$0xff]
    %v51 = vld [vmem:[%s0 + $0x20] sm:$0xff]
    %v52 = vld [vmem:[%s0 + $0x28] sm:$0xff]
    %v53 = vld [vmem:[%s0 + $0x30] sm:$0xff]
    %v54 = vld [vmem:[%s0 + $0x38] sm:$0xff]
    %v55 = vld [vmem:[%s0 + $0x40] sm:$0xff]
    %v56 = vld [vmem:[%s0 + $0x48] sm:$0xff]
    %v57 = vld [vmem:[%s0 + $0x50] sm:$0xff]
    %v58 = vld [vmem:[%s0 + $0x58] sm:$0xff]
    %v59 = vld [vmem:[%s0 + $0x60] sm:$0xff]
    %v60 = vld [vmem:[%s0 + $0x68] sm:$0xff]
    %v61 = vld [vmem:[%s0 + $0x70] sm:$0xff]
    %v62 = vld [vmem:[%s0 + $0x78] sm:$0xff]
    %v63 = vld [vmem:[%s2] sm:$0xff]
    %v64 = vld [vmem:[%s2 + $0x8] sm:$0xff]
    %v65 = vld [vmem:[%s2 + $0x10] sm:$0xff]
    %v66 = vld [vmem:[%s2 + $0x18] sm:$0xff]
    %v67 = vld [vmem:[%s2 + $0x20] sm:$0xff]
    %v68 = vld [vmem:[%s2 + $0x28] sm:$0xff]
    %v69 = vld [vmem:[%s2 + $0x30] sm:$0xff]
    %v70 = vld [vmem:[%s2 + $0x38] sm:$0xff]
    %v71 = vld [vmem:[%s2 + $0x40] sm:$0xff]
    %v72 = vld [vmem:[%s2 + $0x48] sm:$0xff]
    %v73 = vld [vmem:[%s2 + $0x50] sm:$0xff]
    %v74 = vld [vmem:[%s2 + $0x58] sm:$0xff]
    %v75 = vld [vmem:[%s2 + $0x60] sm:$0xff]
    %v76 = vld [vmem:[%s2 + $0x68] sm:$0xff]
    %v77 = vld [vmem:[%s2 + $0x70] sm:$0xff]
    %v78 = vld [vmem:[%s2 + $0x78] sm:$0xff]
    %v79 = vld [vmem:[%s3] sm:$0x7]
    %81 = vset.pattern.permute.xlu0 0
    %82 = vperm.xlu0 %81, %v47
    %v83 = vpop.permute.xlu0 %82
    %86 = vset.pattern.permute.xlu0 0
    %87 = vperm.xlu0 %86, %v48
    %v88 = vpop.permute.xlu0 %87
    %91 = vset.pattern.permute.xlu0 0
    %92 = vperm.xlu0 %91, %v49
    %v93 = vpop.permute.xlu0 %92
    %96 = vset.pattern.permute.xlu0 0
    %97 = vperm.xlu0 %96, %v50
    %v98 = vpop.permute.xlu0 %97
    %101 = vset.pattern.permute.xlu0 0
    %102 = vperm.xlu0 %101, %v51
    %v103 = vpop.permute.xlu0 %102
    %106 = vset.pattern.permute.xlu0 0
    %107 = vperm.xlu0 %106, %v52
    %v108 = vpop.permute.xlu0 %107
    %111 = vset.pattern.permute.xlu0 0
    %112 = vperm.xlu0 %111, %v53
    %v113 = vpop.permute.xlu0 %112
    %116 = vset.pattern.permute.xlu0 0
    %117 = vperm.xlu0 %116, %v54
    %v118 = vpop.permute.xlu0 %117
    %121 = vset.pattern.permute.xlu0 0
    %122 = vperm.xlu0 %121, %v55
    %v123 = vpop.permute.xlu0 %122
    %126 = vset.pattern.permute.xlu0 0
    %127 = vperm.xlu0 %126, %v56
    %v128 = vpop.permute.xlu0 %127
    %131 = vset.pattern.permute.xlu0 0
    %132 = vperm.xlu0 %131, %v57
    %v133 = vpop.permute.xlu0 %132
    %136 = vset.pattern.permute.xlu0 0
    %137 = vperm.xlu0 %136, %v58
    %v138 = vpop.permute.xlu0 %137
    %141 = vset.pattern.permute.xlu0 0
    %142 = vperm.xlu0 %141, %v59
    %v143 = vpop.permute.xlu0 %142
    %146 = vset.pattern.permute.xlu0 0
    %147 = vperm.xlu0 %146, %v60
    %v148 = vpop.permute.xlu0 %147
    %151 = vset.pattern.permute.xlu0 0
    %152 = vperm.xlu0 %151, %v61
    %v153 = vpop.permute.xlu0 %152
    %156 = vset.pattern.permute.xlu0 0
    %157 = vperm.xlu0 %156, %v62
    %v158 = vpop.permute.xlu0 %157
    %v160 = vlaneseq
    %v161 = vshrl.u32 %v160, 7
    %v162 = vsub.s32 0, %v161
    %v163 = vrot.slane %v79, %v162
    %v164 = vsub.f32 %v83, %v163
    %v165 = vsub.f32 %v88, %v163
    %v166 = vsub.f32 %v93, %v163
    %v167 = vsub.f32 %v98, %v163
    %v168 = vsub.f32 %v103, %v163
    %v169 = vsub.f32 %v108, %v163
    %v170 = vsub.f32 %v113, %v163
    %v171 = vsub.f32 %v118, %v163
    %v172 = vsub.f32 %v123, %v163
    %v173 = vsub.f32 %v128, %v163
    %v174 = vsub.f32 %v133, %v163
    %v175 = vsub.f32 %v138, %v163
    %v176 = vsub.f32 %v143, %v163
    %v177 = vsub.f32 %v148, %v163
    %v178 = vsub.f32 %v153, %v163
    %v179 = vsub.f32 %v158, %v163
    %180 = vset.pattern.permute.xlu0 1
    %181 = vperm.xlu0 %180, %v47
    %v182 = vpop.permute.xlu0 %181
    %184 = vset.pattern.permute.xlu0 1
    %185 = vperm.xlu0 %184, %v48
    %v186 = vpop.permute.xlu0 %185
    %188 = vset.pattern.permute.xlu0 1
    %189 = vperm.xlu0 %188, %v49
    %v190 = vpop.permute.xlu0 %189
    %192 = vset.pattern.permute.xlu0 1
    %193 = vperm.xlu0 %192, %v50
    %v194 = vpop.permute.xlu0 %193
    %196 = vset.pattern.permute.xlu0 1
    %197 = vperm.xlu0 %196, %v51
    %v198 = vpop.permute.xlu0 %197
    %200 = vset.pattern.permute.xlu0 1
    %201 = vperm.xlu0 %200, %v52
    %v202 = vpop.permute.xlu0 %201
    %204 = vset.pattern.permute.xlu0 1
    %205 = vperm.xlu0 %204, %v53
    %v206 = vpop.permute.xlu0 %205
    %208 = vset.pattern.permute.xlu0 1
    %209 = vperm.xlu0 %208, %v54
    %v210 = vpop.permute.xlu0 %209
    %212 = vset.pattern.permute.xlu0 1
    %213 = vperm.xlu0 %212, %v55
    %v214 = vpop.permute.xlu0 %213
    %216 = vset.pattern.permute.xlu0 1
    %217 = vperm.xlu0 %216, %v56
    %v218 = vpop.permute.xlu0 %217
    %220 = vset.pattern.permute.xlu0 1
    %221 = vperm.xlu0 %220, %v57
    %v222 = vpop.permute.xlu0 %221
    %224 = vset.pattern.permute.xlu0 1
    %225 = vperm.xlu0 %224, %v58
    %v226 = vpop.permute.xlu0 %225
    %228 = vset.pattern.permute.xlu0 1
    %229 = vperm.xlu0 %228, %v59
    %v230 = vpop.permute.xlu0 %229
    %232 = vset.pattern.permute.xlu0 1
    %233 = vperm.xlu0 %232, %v60
    %v234 = vpop.permute.xlu0 %233
    %236 = vset.pattern.permute.xlu0 1
    %237 = vperm.xlu0 %236, %v61
    %v238 = vpop.permute.xlu0 %237
    %240 = vset.pattern.permute.xlu0 1
    %241 = vperm.xlu0 %240, %v62
    %v242 = vpop.permute.xlu0 %241
    %v244 = vlaneseq
    %v245 = vshrl.u32 %v244, 7
    %v246 = vsub.s32 1, %v245
    %v247 = vrot.slane %v79, %v246
    %v248 = vsub.f32 %v182, %v247
    %v249 = vsub.f32 %v186, %v247
    %v250 = vsub.f32 %v190, %v247
    %v251 = vsub.f32 %v194, %v247
    %v252 = vsub.f32 %v198, %v247
    %v253 = vsub.f32 %v202, %v247
    %v254 = vsub.f32 %v206, %v247
    %v255 = vsub.f32 %v210, %v247
    %v256 = vsub.f32 %v214, %v247
    %v257 = vsub.f32 %v218, %v247
    %v258 = vsub.f32 %v222, %v247
    %v259 = vsub.f32 %v226, %v247
    %v260 = vsub.f32 %v230, %v247
    %v261 = vsub.f32 %v234, %v247
    %v262 = vsub.f32 %v238, %v247
    %v263 = vsub.f32 %v242, %v247
    %264 = vset.pattern.permute.xlu0 2
    %265 = vperm.xlu0 %264, %v47
    %v266 = vpop.permute.xlu0 %265
    %268 = vset.pattern.permute.xlu0 2
    %269 = vperm.xlu0 %268, %v48
    %v270 = vpop.permute.xlu0 %269
    %272 = vset.pattern.permute.xlu0 2
    %273 = vperm.xlu0 %272, %v49
    %v274 = vpop.permute.xlu0 %273
    %276 = vset.pattern.permute.xlu0 2
    %277 = vperm.xlu0 %276, %v50
    %v278 = vpop.permute.xlu0 %277
    %280 = vset.pattern.permute.xlu0 2
    %281 = vperm.xlu0 %280, %v51
    %v282 = vpop.permute.xlu0 %281
    %284 = vset.pattern.permute.xlu0 2
    %285 = vperm.xlu0 %284, %v52
    %v286 = vpop.permute.xlu0 %285
    %288 = vset.pattern.permute.xlu0 2
    %289 = vperm.xlu0 %288, %v53
    %v290 = vpop.permute.xlu0 %289
    %292 = vset.pattern.permute.xlu0 2
    %293 = vperm.xlu0 %292, %v54
    %v294 = vpop.permute.xlu0 %293
    %296 = vset.pattern.permute.xlu0 2
    %297 = vperm.xlu0 %296, %v55
    %v298 = vpop.permute.xlu0 %297
    %300 = vset.pattern.permute.xlu0 2
    %301 = vperm.xlu0 %300, %v56
    %v302 = vpop.permute.xlu0 %301
    %304 = vset.pattern.permute.xlu0 2
    %305 = vperm.xlu0 %304, %v57
    %v306 = vpop.permute.xlu0 %305
    %308 = vset.pattern.permute.xlu0 2
    %309 = vperm.xlu0 %308, %v58
    %v310 = vpop.permute.xlu0 %309
    %312 = vset.pattern.permute.xlu0 2
    %313 = vperm.xlu0 %312, %v59
    %v314 = vpop.permute.xlu0 %313
    %316 = vset.pattern.permute.xlu0 2
    %317 = vperm.xlu0 %316, %v60
    %v318 = vpop.permute.xlu0 %317
    %320 = vset.pattern.permute.xlu0 2
    %321 = vperm.xlu0 %320, %v61
    %v322 = vpop.permute.xlu0 %321
    %324 = vset.pattern.permute.xlu0 2
    %325 = vperm.xlu0 %324, %v62
    %v326 = vpop.permute.xlu0 %325
    %v328 = vlaneseq
    %v329 = vshrl.u32 %v328, 7
    %v330 = vsub.s32 2, %v329
    %v331 = vrot.slane %v79, %v330
    %v332 = vsub.f32 %v266, %v331
    %v333 = vsub.f32 %v270, %v331
    %v334 = vsub.f32 %v274, %v331
    %v335 = vsub.f32 %v278, %v331
    %v336 = vsub.f32 %v282, %v331
    %v337 = vsub.f32 %v286, %v331
    %v338 = vsub.f32 %v290, %v331
    %v339 = vsub.f32 %v294, %v331
    %v340 = vsub.f32 %v298, %v331
    %v341 = vsub.f32 %v302, %v331
    %v342 = vsub.f32 %v306, %v331
    %v343 = vsub.f32 %v310, %v331
    %v344 = vsub.f32 %v314, %v331
    %v345 = vsub.f32 %v318, %v331
    %v346 = vsub.f32 %v322, %v331
    %v347 = vsub.f32 %v326, %v331
    %v348 = vmul.f32 %v164, %v164
    %v349 = vmul.f32 %v165, %v165
    %v350 = vmul.f32 %v166, %v166
    %v351 = vmul.f32 %v167, %v167
    %v352 = vmul.f32 %v168, %v168
    %v353 = vmul.f32 %v169, %v169
    %v354 = vmul.f32 %v170, %v170
    %v355 = vmul.f32 %v171, %v171
    %v356 = vmul.f32 %v172, %v172
    %v357 = vmul.f32 %v173, %v173
    %v358 = vmul.f32 %v174, %v174
    %v359 = vmul.f32 %v175, %v175
    %v360 = vmul.f32 %v176, %v176
    %v361 = vmul.f32 %v177, %v177
    %v362 = vmul.f32 %v178, %v178
    %v363 = vmul.f32 %v179, %v179
    %v364 = vmul.f32 %v248, %v248
    %v365 = vmul.f32 %v249, %v249
    %v366 = vmul.f32 %v250, %v250
    %v367 = vmul.f32 %v251, %v251
    %v368 = vmul.f32 %v252, %v252
    %v369 = vmul.f32 %v253, %v253
    %v370 = vmul.f32 %v254, %v254
    %v371 = vmul.f32 %v255, %v255
    %v372 = vmul.f32 %v256, %v256
    %v373 = vmul.f32 %v257, %v257
    %v374 = vmul.f32 %v258, %v258
    %v375 = vmul.f32 %v259, %v259
    %v376 = vmul.f32 %v260, %v260
    %v377 = vmul.f32 %v261, %v261
    %v378 = vmul.f32 %v262, %v262
    %v379 = vmul.f32 %v263, %v263
    %v380 = vadd.f32 %v348, %v364
    %v381 = vadd.f32 %v349, %v365
    %v382 = vadd.f32 %v350, %v366
    %v383 = vadd.f32 %v351, %v367
    %v384 = vadd.f32 %v352, %v368
    %v385 = vadd.f32 %v353, %v369
    %v386 = vadd.f32 %v354, %v370
    %v387 = vadd.f32 %v355, %v371
    %v388 = vadd.f32 %v356, %v372
    %v389 = vadd.f32 %v357, %v373
    %v390 = vadd.f32 %v358, %v374
    %v391 = vadd.f32 %v359, %v375
    %v392 = vadd.f32 %v360, %v376
    %v393 = vadd.f32 %v361, %v377
    %v394 = vadd.f32 %v362, %v378
    %v395 = vadd.f32 %v363, %v379
    %v396 = vmul.f32 %v332, %v332
    %v397 = vmul.f32 %v333, %v333
    %v398 = vmul.f32 %v334, %v334
    %v399 = vmul.f32 %v335, %v335
    %v400 = vmul.f32 %v336, %v336
    %v401 = vmul.f32 %v337, %v337
    %v402 = vmul.f32 %v338, %v338
    %v403 = vmul.f32 %v339, %v339
    %v404 = vmul.f32 %v340, %v340
    %v405 = vmul.f32 %v341, %v341
    %v406 = vmul.f32 %v342, %v342
    %v407 = vmul.f32 %v343, %v343
    %v408 = vmul.f32 %v344, %v344
    %v409 = vmul.f32 %v345, %v345
    %v410 = vmul.f32 %v346, %v346
    %v411 = vmul.f32 %v347, %v347
    %v412 = vadd.f32 %v380, %v396
    %v413 = vadd.f32 %v381, %v397
    %v414 = vadd.f32 %v382, %v398
    %v415 = vadd.f32 %v383, %v399
    %v416 = vadd.f32 %v384, %v400
    %v417 = vadd.f32 %v385, %v401
    %v418 = vadd.f32 %v386, %v402
    %v419 = vadd.f32 %v387, %v403
    %v420 = vadd.f32 %v388, %v404
    %v421 = vadd.f32 %v389, %v405
    %v422 = vadd.f32 %v390, %v406
    %v423 = vadd.f32 %v391, %v407
    %v424 = vadd.f32 %v392, %v408
    %v425 = vadd.f32 %v393, %v409
    %v426 = vadd.f32 %v394, %v410
    %v427 = vadd.f32 %v395, %v411
    %vm428 = vcmp.gt.f32.partialorder %v412, 0.0
    %vm429 = vcmp.gt.f32.partialorder %v413, 0.0
    %vm430 = vcmp.gt.f32.partialorder %v414, 0.0
    %vm431 = vcmp.gt.f32.partialorder %v415, 0.0
    %vm432 = vcmp.gt.f32.partialorder %v416, 0.0
    %vm433 = vcmp.gt.f32.partialorder %v417, 0.0
    %vm434 = vcmp.gt.f32.partialorder %v418, 0.0
    %vm435 = vcmp.gt.f32.partialorder %v419, 0.0
    %vm436 = vcmp.gt.f32.partialorder %v420, 0.0
    %vm437 = vcmp.gt.f32.partialorder %v421, 0.0
    %vm438 = vcmp.gt.f32.partialorder %v422, 0.0
    %vm439 = vcmp.gt.f32.partialorder %v423, 0.0
    %vm440 = vcmp.gt.f32.partialorder %v424, 0.0
    %vm441 = vcmp.gt.f32.partialorder %v425, 0.0
    %vm442 = vcmp.gt.f32.partialorder %v426, 0.0
    %vm443 = vcmp.gt.f32.partialorder %v427, 0.0
    %vm444 = vcmp.lt.f32.partialorder %v412, 6.25
    %vm445 = vcmp.lt.f32.partialorder %v413, 6.25
    %vm446 = vcmp.lt.f32.partialorder %v414, 6.25
    %vm447 = vcmp.lt.f32.partialorder %v415, 6.25
    %vm448 = vcmp.lt.f32.partialorder %v416, 6.25
    %vm449 = vcmp.lt.f32.partialorder %v417, 6.25
    %vm450 = vcmp.lt.f32.partialorder %v418, 6.25
    %vm451 = vcmp.lt.f32.partialorder %v419, 6.25
    %vm452 = vcmp.lt.f32.partialorder %v420, 6.25
    %vm453 = vcmp.lt.f32.partialorder %v421, 6.25
    %vm454 = vcmp.lt.f32.partialorder %v422, 6.25
    %vm455 = vcmp.lt.f32.partialorder %v423, 6.25
    %vm456 = vcmp.lt.f32.partialorder %v424, 6.25
    %vm457 = vcmp.lt.f32.partialorder %v425, 6.25
    %vm458 = vcmp.lt.f32.partialorder %v426, 6.25
    %vm459 = vcmp.lt.f32.partialorder %v427, 6.25
    %vm460 = vmand %vm428, %vm444
    %vm461 = vmand %vm429, %vm445
    %vm462 = vmand %vm430, %vm446
    %vm463 = vmand %vm431, %vm447
    %vm464 = vmand %vm432, %vm448
    %vm465 = vmand %vm433, %vm449
    %vm466 = vmand %vm434, %vm450
    %vm467 = vmand %vm435, %vm451
    %vm468 = vmand %vm436, %vm452
    %vm469 = vmand %vm437, %vm453
    %vm470 = vmand %vm438, %vm454
    %vm471 = vmand %vm439, %vm455
    %vm472 = vmand %vm440, %vm456
    %vm473 = vmand %vm441, %vm457
    %vm474 = vmand %vm442, %vm458
    %vm475 = vmand %vm443, %vm459
    %v476 = vsel %vm460, 1, 0
    %v477 = vsel %vm461, 1, 0
    %v478 = vsel %vm462, 1, 0
    %v479 = vsel %vm463, 1, 0
    %v480 = vsel %vm464, 1, 0
    %v481 = vsel %vm465, 1, 0
    %v482 = vsel %vm466, 1, 0
    %v483 = vsel %vm467, 1, 0
    %v484 = vsel %vm468, 1, 0
    %v485 = vsel %vm469, 1, 0
    %v486 = vsel %vm470, 1, 0
    %v487 = vsel %vm471, 1, 0
    %v488 = vsel %vm472, 1, 0
    %v489 = vsel %vm473, 1, 0
    %v490 = vsel %vm474, 1, 0
    %v491 = vsel %vm475, 1, 0
    %v492 = vcvt.s32.f32 %v476
    %v493 = vcvt.s32.f32 %v477
    %v494 = vcvt.s32.f32 %v478
    %v495 = vcvt.s32.f32 %v479
    %v496 = vcvt.s32.f32 %v480
    %v497 = vcvt.s32.f32 %v481
    %v498 = vcvt.s32.f32 %v482
    %v499 = vcvt.s32.f32 %v483
    %v500 = vcvt.s32.f32 %v484
    %v501 = vcvt.s32.f32 %v485
    %v502 = vcvt.s32.f32 %v486
    %v503 = vcvt.s32.f32 %v487
    %v504 = vcvt.s32.f32 %v488
    %v505 = vcvt.s32.f32 %v489
    %v506 = vcvt.s32.f32 %v490
    %v507 = vcvt.s32.f32 %v491
    %v508 = vsel %vm460, %v412, 1.0
    %v509 = vsel %vm461, %v413, 1.0
    %v510 = vsel %vm462, %v414, 1.0
    %v511 = vsel %vm463, %v415, 1.0
    %v512 = vsel %vm464, %v416, 1.0
    %v513 = vsel %vm465, %v417, 1.0
    %v514 = vsel %vm466, %v418, 1.0
    %v515 = vsel %vm467, %v419, 1.0
    %v516 = vsel %vm468, %v420, 1.0
    %v517 = vsel %vm469, %v421, 1.0
    %v518 = vsel %vm470, %v422, 1.0
    %v519 = vsel %vm471, %v423, 1.0
    %v520 = vsel %vm472, %v424, 1.0
    %v521 = vsel %vm473, %v425, 1.0
    %v522 = vsel %vm474, %v426, 1.0
    %v523 = vsel %vm475, %v427, 1.0
    %v524 = vrsqrt.pop %v508
    %v525 = vrsqrt.pop %v509
    %v526 = vrsqrt.pop %v510
    %v527 = vrsqrt.pop %v511
    %v528 = vrsqrt.pop %v512
    %v529 = vrsqrt.pop %v513
    %v530 = vrsqrt.pop %v514
    %v531 = vrsqrt.pop %v515
    %v532 = vrsqrt.pop %v516
    %v533 = vrsqrt.pop %v517
    %v534 = vrsqrt.pop %v518
    %v535 = vrsqrt.pop %v519
    %v536 = vrsqrt.pop %v520
    %v537 = vrsqrt.pop %v521
    %v538 = vrsqrt.pop %v522
    %v539 = vrsqrt.pop %v523
    %v540 = vmul.f32 %v508, %v524
    %v541 = vmul.f32 %v509, %v525
    %v542 = vmul.f32 %v510, %v526
    %v543 = vmul.f32 %v511, %v527
    %v544 = vmul.f32 %v512, %v528
    %v545 = vmul.f32 %v513, %v529
    %v546 = vmul.f32 %v514, %v530
    %v547 = vmul.f32 %v515, %v531
    %v548 = vmul.f32 %v516, %v532
    %v549 = vmul.f32 %v517, %v533
    %v550 = vmul.f32 %v518, %v534
    %v551 = vmul.f32 %v519, %v535
    %v552 = vmul.f32 %v520, %v536
    %v553 = vmul.f32 %v521, %v537
    %v554 = vmul.f32 %v522, %v538
    %v555 = vmul.f32 %v523, %v539
    %v556 = vmul.f32 %v540, -5.0
    %v557 = vmul.f32 %v541, -5.0
    %v558 = vmul.f32 %v542, -5.0
    %v559 = vmul.f32 %v543, -5.0
    %v560 = vmul.f32 %v544, -5.0
    %v561 = vmul.f32 %v545, -5.0
    %v562 = vmul.f32 %v546, -5.0
    %v563 = vmul.f32 %v547, -5.0
    %v564 = vmul.f32 %v548, -5.0
    %v565 = vmul.f32 %v549, -5.0
    %v566 = vmul.f32 %v550, -5.0
    %v567 = vmul.f32 %v551, -5.0
    %v568 = vmul.f32 %v552, -5.0
    %v569 = vmul.f32 %v553, -5.0
    %v570 = vmul.f32 %v554, -5.0
    %v571 = vmul.f32 %v555, -5.0
    %v572 = vadd.f32 %v556, 5.0
    %v573 = vadd.f32 %v557, 5.0
    %v574 = vadd.f32 %v558, 5.0
    %v575 = vadd.f32 %v559, 5.0
    %v576 = vadd.f32 %v560, 5.0
    %v577 = vadd.f32 %v561, 5.0
    %v578 = vadd.f32 %v562, 5.0
    %v579 = vadd.f32 %v563, 5.0
    %v580 = vadd.f32 %v564, 5.0
    %v581 = vadd.f32 %v565, 5.0
    %v582 = vadd.f32 %v566, 5.0
    %v583 = vadd.f32 %v567, 5.0
    %v584 = vadd.f32 %v568, 5.0
    %v585 = vadd.f32 %v569, 5.0
    %v586 = vadd.f32 %v570, 5.0
    %v587 = vadd.f32 %v571, 5.0
    %v588 = vmul.f32 %v572, 1.442695
    %v589 = vpow.pop %v588
    %v590 = vmul.f32 %v573, 1.442695
    %v591 = vpow.pop %v590
    %v592 = vmul.f32 %v574, 1.442695
    %v593 = vpow.pop %v592
    %v594 = vmul.f32 %v575, 1.442695
    %v595 = vpow.pop %v594
    %v596 = vmul.f32 %v576, 1.442695
    %v597 = vpow.pop %v596
    %v598 = vmul.f32 %v577, 1.442695
    %v599 = vpow.pop %v598
    %v600 = vmul.f32 %v578, 1.442695
    %v601 = vpow.pop %v600
    %v602 = vmul.f32 %v579, 1.442695
    %v603 = vpow.pop %v602
    %v604 = vmul.f32 %v580, 1.442695
    %v605 = vpow.pop %v604
    %v606 = vmul.f32 %v581, 1.442695
    %v607 = vpow.pop %v606
    %v608 = vmul.f32 %v582, 1.442695
    %v609 = vpow.pop %v608
    %v610 = vmul.f32 %v583, 1.442695
    %v611 = vpow.pop %v610
    %v612 = vmul.f32 %v584, 1.442695
    %v613 = vpow.pop %v612
    %v614 = vmul.f32 %v585, 1.442695
    %v615 = vpow.pop %v614
    %v616 = vmul.f32 %v586, 1.442695
    %v617 = vpow.pop %v616
    %v618 = vmul.f32 %v587, 1.442695
    %v619 = vpow.pop %v618
    %v620 = vmul.f32 %v589, %v589
    %v621 = vmul.f32 %v591, %v591
    %v622 = vmul.f32 %v593, %v593
    %v623 = vmul.f32 %v595, %v595
    %v624 = vmul.f32 %v597, %v597
    %v625 = vmul.f32 %v599, %v599
    %v626 = vmul.f32 %v601, %v601
    %v627 = vmul.f32 %v603, %v603
    %v628 = vmul.f32 %v605, %v605
    %v629 = vmul.f32 %v607, %v607
    %v630 = vmul.f32 %v609, %v609
    %v631 = vmul.f32 %v611, %v611
    %v632 = vmul.f32 %v613, %v613
    %v633 = vmul.f32 %v615, %v615
    %v634 = vmul.f32 %v617, %v617
    %v635 = vmul.f32 %v619, %v619
    %v636 = vmul.f32 %v589, 2.0
    %v637 = vmul.f32 %v591, 2.0
    %v638 = vmul.f32 %v593, 2.0
    %v639 = vmul.f32 %v595, 2.0
    %v640 = vmul.f32 %v597, 2.0
    %v641 = vmul.f32 %v599, 2.0
    %v642 = vmul.f32 %v601, 2.0
    %v643 = vmul.f32 %v603, 2.0
    %v644 = vmul.f32 %v605, 2.0
    %v645 = vmul.f32 %v607, 2.0
    %v646 = vmul.f32 %v609, 2.0
    %v647 = vmul.f32 %v611, 2.0
    %v648 = vmul.f32 %v613, 2.0
    %v649 = vmul.f32 %v615, 2.0
    %v650 = vmul.f32 %v617, 2.0
    %v651 = vmul.f32 %v619, 2.0
    %v652 = vsub.f32 %v620, %v636
    %v653 = vsub.f32 %v621, %v637
    %v654 = vsub.f32 %v622, %v638
    %v655 = vsub.f32 %v623, %v639
    %v656 = vsub.f32 %v624, %v640
    %v657 = vsub.f32 %v625, %v641
    %v658 = vsub.f32 %v626, %v642
    %v659 = vsub.f32 %v627, %v643
    %v660 = vsub.f32 %v628, %v644
    %v661 = vsub.f32 %v629, %v645
    %v662 = vsub.f32 %v630, %v646
    %v663 = vsub.f32 %v631, %v647
    %v664 = vsub.f32 %v632, %v648
    %v665 = vsub.f32 %v633, %v649
    %v666 = vsub.f32 %v634, %v650
    %v667 = vsub.f32 %v635, %v651
    %v668 = vmul.f32 %v652, 5.0
    %v669 = vmul.f32 %v653, 5.0
    %v670 = vmul.f32 %v654, 5.0
    %v671 = vmul.f32 %v655, 5.0
    %v672 = vmul.f32 %v656, 5.0
    %v673 = vmul.f32 %v657, 5.0
    %v674 = vmul.f32 %v658, 5.0
    %v675 = vmul.f32 %v659, 5.0
    %v676 = vmul.f32 %v660, 5.0
    %v677 = vmul.f32 %v661, 5.0
    %v678 = vmul.f32 %v662, 5.0
    %v679 = vmul.f32 %v663, 5.0
    %v680 = vmul.f32 %v664, 5.0
    %v681 = vmul.f32 %v665, 5.0
    %v682 = vmul.f32 %v666, 5.0
    %v683 = vmul.f32 %v667, 5.0
    %v684 = vmul.f32 %v668, %v492
    %v685 = vmul.f32 %v669, %v493
    %v686 = vmul.f32 %v670, %v494
    %v687 = vmul.f32 %v671, %v495
    %v688 = vmul.f32 %v672, %v496
    %v689 = vmul.f32 %v673, %v497
    %v690 = vmul.f32 %v674, %v498
    %v691 = vmul.f32 %v675, %v499
    %v692 = vmul.f32 %v676, %v500
    %v693 = vmul.f32 %v677, %v501
    %v694 = vmul.f32 %v678, %v502
    %v695 = vmul.f32 %v679, %v503
    %v696 = vmul.f32 %v680, %v504
    %v697 = vmul.f32 %v681, %v505
    %v698 = vmul.f32 %v682, %v506
    %v699 = vmul.f32 %v683, %v507
    %v700 = vsub.f32 %v589, %v620
    %v701 = vsub.f32 %v591, %v621
    %v702 = vsub.f32 %v593, %v622
    %v703 = vsub.f32 %v595, %v623
    %v704 = vsub.f32 %v597, %v624
    %v705 = vsub.f32 %v599, %v625
    %v706 = vsub.f32 %v601, %v626
    %v707 = vsub.f32 %v603, %v627
    %v708 = vsub.f32 %v605, %v628
    %v709 = vsub.f32 %v607, %v629
    %v710 = vsub.f32 %v609, %v630
    %v711 = vsub.f32 %v611, %v631
    %v712 = vsub.f32 %v613, %v632
    %v713 = vsub.f32 %v615, %v633
    %v714 = vsub.f32 %v617, %v634
    %v715 = vsub.f32 %v619, %v635
    %v716 = vmul.f32 %v700, -50.0
    %v717 = vmul.f32 %v701, -50.0
    %v718 = vmul.f32 %v702, -50.0
    %v719 = vmul.f32 %v703, -50.0
    %v720 = vmul.f32 %v704, -50.0
    %v721 = vmul.f32 %v705, -50.0
    %v722 = vmul.f32 %v706, -50.0
    %v723 = vmul.f32 %v707, -50.0
    %v724 = vmul.f32 %v708, -50.0
    %v725 = vmul.f32 %v709, -50.0
    %v726 = vmul.f32 %v710, -50.0
    %v727 = vmul.f32 %v711, -50.0
    %v728 = vmul.f32 %v712, -50.0
    %v729 = vmul.f32 %v713, -50.0
    %v730 = vmul.f32 %v714, -50.0
    %v731 = vmul.f32 %v715, -50.0
    %v732 = vmul.f32 %v716, %v524
    %v733 = vmul.f32 %v717, %v525
    %v734 = vmul.f32 %v718, %v526
    %v735 = vmul.f32 %v719, %v527
    %v736 = vmul.f32 %v720, %v528
    %v737 = vmul.f32 %v721, %v529
    %v738 = vmul.f32 %v722, %v530
    %v739 = vmul.f32 %v723, %v531
    %v740 = vmul.f32 %v724, %v532
    %v741 = vmul.f32 %v725, %v533
    %v742 = vmul.f32 %v726, %v534
    %v743 = vmul.f32 %v727, %v535
    %v744 = vmul.f32 %v728, %v536
    %v745 = vmul.f32 %v729, %v537
    %v746 = vmul.f32 %v730, %v538
    %v747 = vmul.f32 %v731, %v539
    %v748 = vmul.f32 %v732, %v492
    %v749 = vmul.f32 %v733, %v493
    %v750 = vmul.f32 %v734, %v494
    %v751 = vmul.f32 %v735, %v495
    %v752 = vmul.f32 %v736, %v496
    %v753 = vmul.f32 %v737, %v497
    %v754 = vmul.f32 %v738, %v498
    %v755 = vmul.f32 %v739, %v499
    %v756 = vmul.f32 %v740, %v500
    %v757 = vmul.f32 %v741, %v501
    %v758 = vmul.f32 %v742, %v502
    %v759 = vmul.f32 %v743, %v503
    %v760 = vmul.f32 %v744, %v504
    %v761 = vmul.f32 %v745, %v505
    %v762 = vmul.f32 %v746, %v506
    %v763 = vmul.f32 %v747, %v507
    %v764 = vld [vmem:[#allocation3] sm:$0xff]
    %v765 = vadd.f32 %v684, %v685
    %v766 = vadd.f32 %v765, %v686
    %v767 = vadd.f32 %v766, %v687
    %v768 = vadd.f32 %v767, %v688
    %v769 = vadd.f32 %v768, %v689
    %v770 = vadd.f32 %v769, %v690
    %v771 = vadd.f32 %v770, %v691
    %v772 = vadd.f32 %v771, %v692
    %v773 = vadd.f32 %v772, %v693
    %v774 = vadd.f32 %v773, %v694
    %v775 = vadd.f32 %v774, %v695
    %v776 = vadd.f32 %v775, %v696
    %v777 = vadd.f32 %v776, %v697
    %v778 = vadd.f32 %v777, %v698
    %v779 = vadd.f32 %v778, %v699
    %v780 = vadd.f32 %v764, %v779
    %781 = vst [vmem:[#allocation3] sm:$0xff] %v780
    %v782 = vld [vmem:[#allocation2] sm:$0xff]
    %v783 = vld [vmem:[#allocation2 + $0x8] sm:$0xff]
    %v784 = vld [vmem:[#allocation2 + $0x10] sm:$0xff]
    %v785 = vld [vmem:[#allocation2 + $0x18] sm:$0xff]
    %v786 = vld [vmem:[#allocation2 + $0x20] sm:$0xff]
    %v787 = vld [vmem:[#allocation2 + $0x28] sm:$0xff]
    %v788 = vld [vmem:[#allocation2 + $0x30] sm:$0xff]
    %v789 = vld [vmem:[#allocation2 + $0x38] sm:$0xff]
    %v790 = vld [vmem:[#allocation2 + $0x40] sm:$0xff]
    %v791 = vld [vmem:[#allocation2 + $0x48] sm:$0xff]
    %v792 = vld [vmem:[#allocation2 + $0x50] sm:$0xff]
    %v793 = vld [vmem:[#allocation2 + $0x58] sm:$0xff]
    %v794 = vld [vmem:[#allocation2 + $0x60] sm:$0xff]
    %v795 = vld [vmem:[#allocation2 + $0x68] sm:$0xff]
    %v796 = vld [vmem:[#allocation2 + $0x70] sm:$0xff]
    %v797 = vld [vmem:[#allocation2 + $0x78] sm:$0xff]
    %798 = vmatprep.subr.mxu0 0.0
    %v799 = vand.u32 %v63, 4294901760
    %800 = vmatpush1.msra.mxu0 %v799
    %801 = vmatprep.subr.mxu0 0.0
    %v802 = vand.u32 %v64, 4294901760
    %803 = vmatpush1.msra.mxu0 %v802
    %804 = vmatprep.subr.mxu0 0.0
    %v805 = vand.u32 %v65, 4294901760
    %806 = vmatpush1.msra.mxu0 %v805
    %807 = vmatprep.subr.mxu0 0.0
    %v808 = vand.u32 %v66, 4294901760
    %809 = vmatpush1.msra.mxu0 %v808
    %810 = vmatprep.subr.mxu0 0.0
    %v811 = vand.u32 %v67, 4294901760
    %812 = vmatpush1.msra.mxu0 %v811
    %813 = vmatprep.subr.mxu0 0.0
    %v814 = vand.u32 %v68, 4294901760
    %815 = vmatpush1.msra.mxu0 %v814
    %816 = vmatprep.subr.mxu0 0.0
    %v817 = vand.u32 %v69, 4294901760
    %818 = vmatpush1.msra.mxu0 %v817
    %819 = vmatprep.subr.mxu0 0.0
    %v820 = vand.u32 %v70, 4294901760
    %821 = vmatpush1.msra.mxu0 %v820
    %822 = vmatprep.subr.mxu0 0.0
    %v823 = vand.u32 %v71, 4294901760
    %824 = vmatpush1.msra.mxu0 %v823
    %825 = vmatprep.subr.mxu0 0.0
    %v826 = vand.u32 %v72, 4294901760
    %827 = vmatpush1.msra.mxu0 %v826
    %828 = vmatprep.subr.mxu0 0.0
    %v829 = vand.u32 %v73, 4294901760
    %830 = vmatpush1.msra.mxu0 %v829
    %831 = vmatprep.subr.mxu0 0.0
    %v832 = vand.u32 %v74, 4294901760
    %833 = vmatpush1.msra.mxu0 %v832
    %834 = vmatprep.subr.mxu0 0.0
    %v835 = vand.u32 %v75, 4294901760
    %836 = vmatpush1.msra.mxu0 %v835
    %837 = vmatprep.subr.mxu0 0.0
    %v838 = vand.u32 %v76, 4294901760
    %839 = vmatpush1.msra.mxu0 %v838
    %840 = vmatprep.subr.mxu0 0.0
    %v841 = vand.u32 %v77, 4294901760
    %842 = vmatpush1.msra.mxu0 %v841
    %843 = vmatprep.subr.mxu0 0.0
    %v844 = vand.u32 %v78, 4294901760
    %845 = vmatpush1.msra.mxu0 %v844
    %846 = vmatprep.subr.mxu0 0.0
    %847 = vmatpush1.msra.mxu0 0.0
    %848 = vmatprep.subr.mxu0 0.0
    %849 = vmatpush1.msra.mxu0 0.0
    %850 = vmatprep.subr.mxu0 0.0
    %851 = vmatpush1.msra.mxu0 0.0
    %852 = vmatprep.subr.mxu0 0.0
    %853 = vmatpush1.msra.mxu0 0.0
    %854 = vmatprep.subr.mxu0 0.0
    %855 = vmatpush1.msra.mxu0 0.0
    %856 = vmatprep.subr.mxu0 0.0
    %857 = vmatpush1.msra.mxu0 0.0
    %858 = vmatprep.subr.mxu0 0.0
    %859 = vmatpush1.msra.mxu0 0.0
    %860 = vmatprep.subr.mxu0 0.0
    %861 = vmatpush1.msra.mxu0 0.0
    %862 = vmatprep.subr.mxu0 0.0
    %863 = vmatpush1.msra.mxu0 0.0
    %864 = vmatprep.subr.mxu0 0.0
    %865 = vmatpush1.msra.mxu0 0.0
    %866 = vmatprep.subr.mxu0 0.0
    %867 = vmatpush1.msra.mxu0 0.0
    %868 = vmatprep.subr.mxu0 0.0
    %869 = vmatpush1.msra.mxu0 0.0
    %870 = vmatprep.subr.mxu0 0.0
    %871 = vmatpush1.msra.mxu0 0.0
    %872 = vmatprep.subr.mxu0 0.0
    %873 = vmatpush1.msra.mxu0 0.0
    %874 = vmatprep.subr.mxu0 0.0
    %875 = vmatpush1.msra.mxu0 0.0
    %876 = vmatprep.subr.mxu0 0.0
    %877 = vmatpush1.msra.mxu0 0.0
    %878 = vmatprep.mubr.f32.mxu0 0.0
    %v879 = vand.u32 %v748, 4294901760
    %v880 = vsub.f32 %v748, %v879
    %v881 = vand.u32 %v880, 4294901760
    %v882 = vsub.f32 %v880, %v881
    %v883 = vand.u32 %v882, 4294901760
    %884 = vmatmul.mubr.f32.gmra.mrb[0].mxu0 %v883
    %v885 = vpop.f32.mrb[0].mxu0
    %v886 = vadd.f32 0.0, %v885
    %v887 = vpop.f32.mrb[0].mxu0
    %888 = vmatprep.mubr.f32.mxu0 0.0
    %v889 = vand.u32 %v749, 4294901760
    %v890 = vsub.f32 %v749, %v889
    %v891 = vand.u32 %v890, 4294901760
    %v892 = vsub.f32 %v890, %v891
    %v893 = vand.u32 %v892, 4294901760
    %894 = vmatmul.mubr.f32.gmra.mrb[0].mxu0 %v893
    %v895 = vpop.f32.mrb[0].mxu0
    %v896 = vadd.f32 0.0, %v895
    %v897 = vpop.f32.mrb[0].mxu0
    %898 = vmatprep.mubr.f32.mxu0 0.0
    %v899 = vand.u32 %v750, 4294901760
    %v900 = vsub.f32 %v750, %v899
    %v901 = vand.u32 %v900, 4294901760
    %v902 = vsub.f32 %v900, %v901
    %v903 = vand.u32 %v902, 4294901760
    %904 = vmatmul.mubr.f32.gmra.mrb[0].mxu0 %v903
    %v905 = vpop.f32.mrb[0].mxu0
    %v906 = vadd.f32 0.0, %v905
    %v907 = vpop.f32.mrb[0].mxu0
    %908 = vmatprep.mubr.f32.mxu0 0.0
    %v909 = vand.u32 %v751, 4294901760
    %v910 = vsub.f32 %v751, %v909
    %v911 = vand.u32 %v910, 4294901760
    %v912 = vsub.f32 %v910, %v911
    %v913 = vand.u32 %v912, 4294901760
    %914 = vmatmul.mubr.f32.gmra.mrb[0].mxu0 %v913
    %v915 = vpop.f32.mrb[0].mxu0
    %v916 = vadd.f32 0.0, %v915
    %v917 = vpop.f32.mrb[0].mxu0
    %918 = vmatprep.mubr.f32.mxu0 0.0
    %v919 = vand.u32 %v752, 4294901760
    %v920 = vsub.f32 %v752, %v919
    %v921 = vand.u32 %v920, 4294901760
    %v922 = vsub.f32 %v920, %v921
    %v923 = vand.u32 %v922, 4294901760
    %924 = vmatmul.mubr.f32.gmra.mrb[0].mxu0 %v923
    %v925 = vpop.f32.mrb[0].mxu0
    %v926 = vadd.f32 0.0, %v925
    %v927 = vpop.f32.mrb[0].mxu0
    %928 = vmatprep.mubr.f32.mxu0 0.0
    %v929 = vand.u32 %v753, 4294901760
    %v930 = vsub.f32 %v753, %v929
    %v931 = vand.u32 %v930, 4294901760
    %v932 = vsub.f32 %v930, %v931
    %v933 = vand.u32 %v932, 4294901760
    %934 = vmatmul.mubr.f32.gmra.mrb[0].mxu0 %v933
    %v935 = vpop.f32.mrb[0].mxu0
    %v936 = vadd.f32 0.0, %v935
    %v937 = vpop.f32.mrb[0].mxu0
    %938 = vmatprep.mubr.f32.mxu0 0.0
    %v939 = vand.u32 %v754, 4294901760
    %v940 = vsub.f32 %v754, %v939
    %v941 = vand.u32 %v940, 4294901760
    %v942 = vsub.f32 %v940, %v941
    %v943 = vand.u32 %v942, 4294901760
    %944 = vmatmul.mubr.f32.gmra.mrb[0].mxu0 %v943
    %v945 = vpop.f32.mrb[0].mxu0
    %v946 = vadd.f32 0.0, %v945
    %v947 = vpop.f32.mrb[0].mxu0
    %948 = vmatprep.mubr.f32.mxu0 0.0
    %v949 = vand.u32 %v755, 4294901760
    %v950 = vsub.f32 %v755, %v949
    %v951 = vand.u32 %v950, 4294901760
    %v952 = vsub.f32 %v950, %v951
    %v953 = vand.u32 %v952, 4294901760
    %954 = vmatmul.mubr.f32.gmra.mrb[0].mxu0 %v953
    %v955 = vpop.f32.mrb[0].mxu0
    %v956 = vadd.f32 0.0, %v955
    %v957 = vpop.f32.mrb[0].mxu0
    %958 = vmatprep.mubr.f32.mxu0 0.0
    %v959 = vand.u32 %v756, 4294901760
    %v960 = vsub.f32 %v756, %v959
    %v961 = vand.u32 %v960, 4294901760
    %v962 = vsub.f32 %v960, %v961
    %v963 = vand.u32 %v962, 4294901760
    %964 = vmatmul.mubr.f32.gmra.mrb[0].mxu0 %v963
    %v965 = vpop.f32.mrb[0].mxu0
    %v966 = vadd.f32 0.0, %v965
    %v967 = vpop.f32.mrb[0].mxu0
    %968 = vmatprep.mubr.f32.mxu0 0.0
    %v969 = vand.u32 %v757, 4294901760
    %v970 = vsub.f32 %v757, %v969
    %v971 = vand.u32 %v970, 4294901760
    %v972 = vsub.f32 %v970, %v971
    %v973 = vand.u32 %v972, 4294901760
    %974 = vmatmul.mubr.f32.gmra.mrb[0].mxu0 %v973
    %v975 = vpop.f32.mrb[0].mxu0
    %v976 = vadd.f32 0.0, %v975
    %v977 = vpop.f32.mrb[0].mxu0
    %978 = vmatprep.mubr.f32.mxu0 0.0
    %v979 = vand.u32 %v758, 4294901760
    %v980 = vsub.f32 %v758, %v979
    %v981 = vand.u32 %v980, 4294901760
    %v982 = vsub.f32 %v980, %v981
    %v983 = vand.u32 %v982, 4294901760
    %984 = vmatmul.mubr.f32.gmra.mrb[0].mxu0 %v983
    %v985 = vpop.f32.mrb[0].mxu0
    %v986 = vadd.f32 0.0, %v985
    %v987 = vpop.f32.mrb[0].mxu0
    %988 = vmatprep.mubr.f32.mxu0 0.0
    %v989 = vand.u32 %v759, 4294901760
    %v990 = vsub.f32 %v759, %v989
    %v991 = vand.u32 %v990, 4294901760
    %v992 = vsub.f32 %v990, %v991
    %v993 = vand.u32 %v992, 4294901760
    %994 = vmatmul.mubr.f32.gmra.mrb[0].mxu0 %v993
    %v995 = vpop.f32.mrb[0].mxu0
    %v996 = vadd.f32 0.0, %v995
    %v997 = vpop.f32.mrb[0].mxu0
    %998 = vmatprep.mubr.f32.mxu0 0.0
    %v999 = vand.u32 %v760, 4294901760
    %v1000 = vsub.f32 %v760, %v999
    %v1001 = vand.u32 %v1000, 4294901760
    %v1002 = vsub.f32 %v1000, %v1001
    %v1003 = vand.u32 %v1002, 4294901760
    %1004 = vmatmul.mubr.f32.gmra.mrb[0].mxu0 %v1003
    %v1005 = vpop.f32.mrb[0].mxu0
    %v1006 = vadd.f32 0.0, %v1005
    %v1007 = vpop.f32.mrb[0].mxu0
    %1008 = vmatprep.mubr.f32.mxu0 0.0
    %v1009 = vand.u32 %v761, 4294901760
    %v1010 = vsub.f32 %v761, %v1009
    %v1011 = vand.u32 %v1010, 4294901760
    %v1012 = vsub.f32 %v1010, %v1011
    %v1013 = vand.u32 %v1012, 4294901760
    %1014 = vmatmul.mubr.f32.gmra.mrb[0].mxu0 %v1013
    %v1015 = vpop.f32.mrb[0].mxu0
    %v1016 = vadd.f32 0.0, %v1015
    %v1017 = vpop.f32.mrb[0].mxu0
    %1018 = vmatprep.mubr.f32.mxu0 0.0
    %v1019 = vand.u32 %v762, 4294901760
    %v1020 = vsub.f32 %v762, %v1019
    %v1021 = vand.u32 %v1020, 4294901760
    %v1022 = vsub.f32 %v1020, %v1021
    %v1023 = vand.u32 %v1022, 4294901760
    %1024 = vmatmul.mubr.f32.gmra.mrb[0].mxu0 %v1023
    %v1025 = vpop.f32.mrb[0].mxu0
    %v1026 = vadd.f32 0.0, %v1025
    %v1027 = vpop.f32.mrb[0].mxu0
    %1028 = vmatprep.mubr.f32.mxu0 0.0
    %v1029 = vand.u32 %v763, 4294901760
    %v1030 = vsub.f32 %v763, %v1029
    %v1031 = vand.u32 %v1030, 4294901760
    %v1032 = vsub.f32 %v1030, %v1031
    %v1033 = vand.u32 %v1032, 4294901760
    %1034 = vmatmul.mubr.f32.gmra.mrb[0].mxu0 %v1033
    %v1035 = vpop.f32.mrb[0].mxu0
    %v1036 = vadd.f32 0.0, %v1035
    %v1037 = vpop.f32.mrb[0].mxu0
    %1038 = vdwg.mxu0
    %1039 = vmatprep.subr.mxu0 0.0
    %v1040 = vand.u32 %v63, 4294901760
    %v1041 = vsub.f32 %v63, %v1040
    %v1042 = vand.u32 %v1041, 4294901760
    %v1043 = vsub.f32 %v1041, %v1042
    %v1044 = vand.u32 %v1043, 4294901760
    %1045 = vmatpush1.msra.mxu0 %v1044
    %1046 = vmatprep.subr.mxu0 0.0
    %v1047 = vand.u32 %v64, 4294901760
    %v1048 = vsub.f32 %v64, %v1047
    %v1049 = vand.u32 %v1048, 4294901760
    %v1050 = vsub.f32 %v1048, %v1049
    %v1051 = vand.u32 %v1050, 4294901760
    %1052 = vmatpush1.msra.mxu0 %v1051
    %1053 = vmatprep.subr.mxu0 0.0
    %v1054 = vand.u32 %v65, 4294901760
    %v1055 = vsub.f32 %v65, %v1054
    %v1056 = vand.u32 %v1055, 4294901760
    %v1057 = vsub.f32 %v1055, %v1056
    %v1058 = vand.u32 %v1057, 4294901760
    %1059 = vmatpush1.msra.mxu0 %v1058
    %1060 = vmatprep.subr.mxu0 0.0
    %v1061 = vand.u32 %v66, 4294901760
    %v1062 = vsub.f32 %v66, %v1061
    %v1063 = vand.u32 %v1062, 4294901760
    %v1064 = vsub.f32 %v1062, %v1063
    %v1065 = vand.u32 %v1064, 4294901760
    %1066 = vmatpush1.msra.mxu0 %v1065
    %1067 = vmatprep.subr.mxu0 0.0
    %v1068 = vand.u32 %v67, 4294901760
    %v1069 = vsub.f32 %v67, %v1068
    %v1070 = vand.u32 %v1069, 4294901760
    %v1071 = vsub.f32 %v1069, %v1070
    %v1072 = vand.u32 %v1071, 4294901760
    %1073 = vmatpush1.msra.mxu0 %v1072
    %1074 = vmatprep.subr.mxu0 0.0
    %v1075 = vand.u32 %v68, 4294901760
    %v1076 = vsub.f32 %v68, %v1075
    %v1077 = vand.u32 %v1076, 4294901760
    %v1078 = vsub.f32 %v1076, %v1077
    %v1079 = vand.u32 %v1078, 4294901760
    %1080 = vmatpush1.msra.mxu0 %v1079
    %1081 = vmatprep.subr.mxu0 0.0
    %v1082 = vand.u32 %v69, 4294901760
    %v1083 = vsub.f32 %v69, %v1082
    %v1084 = vand.u32 %v1083, 4294901760
    %v1085 = vsub.f32 %v1083, %v1084
    %v1086 = vand.u32 %v1085, 4294901760
    %1087 = vmatpush1.msra.mxu0 %v1086
    %1088 = vmatprep.subr.mxu0 0.0
    %v1089 = vand.u32 %v70, 4294901760
    %v1090 = vsub.f32 %v70, %v1089
    %v1091 = vand.u32 %v1090, 4294901760
    %v1092 = vsub.f32 %v1090, %v1091
    %v1093 = vand.u32 %v1092, 4294901760
    %1094 = vmatpush1.msra.mxu0 %v1093
    %1095 = vmatprep.subr.mxu0 0.0
    %v1096 = vand.u32 %v71, 4294901760
    %v1097 = vsub.f32 %v71, %v1096
    %v1098 = vand.u32 %v1097, 4294901760
    %v1099 = vsub.f32 %v1097, %v1098
    %v1100 = vand.u32 %v1099, 4294901760
    %1101 = vmatpush1.msra.mxu0 %v1100
    %1102 = vmatprep.subr.mxu0 0.0
    %v1103 = vand.u32 %v72, 4294901760
    %v1104 = vsub.f32 %v72, %v1103
    %v1105 = vand.u32 %v1104, 4294901760
    %v1106 = vsub.f32 %v1104, %v1105
    %v1107 = vand.u32 %v1106, 4294901760
    %1108 = vmatpush1.msra.mxu0 %v1107
    %1109 = vmatprep.subr.mxu0 0.0
    %v1110 = vand.u32 %v73, 4294901760
    %v1111 = vsub.f32 %v73, %v1110
    %v1112 = vand.u32 %v1111, 4294901760
    %v1113 = vsub.f32 %v1111, %v1112
    %v1114 = vand.u32 %v1113, 4294901760
    %1115 = vmatpush1.msra.mxu0 %v1114
    %1116 = vmatprep.subr.mxu0 0.0
    %v1117 = vand.u32 %v74, 4294901760
    %v1118 = vsub.f32 %v74, %v1117
    %v1119 = vand.u32 %v1118, 4294901760
    %v1120 = vsub.f32 %v1118, %v1119
    %v1121 = vand.u32 %v1120, 4294901760
    %1122 = vmatpush1.msra.mxu0 %v1121
    %1123 = vmatprep.subr.mxu0 0.0
    %v1124 = vand.u32 %v75, 4294901760
    %v1125 = vsub.f32 %v75, %v1124
    %v1126 = vand.u32 %v1125, 4294901760
    %v1127 = vsub.f32 %v1125, %v1126
    %v1128 = vand.u32 %v1127, 4294901760
    %1129 = vmatpush1.msra.mxu0 %v1128
    %1130 = vmatprep.subr.mxu0 0.0
    %v1131 = vand.u32 %v76, 4294901760
    %v1132 = vsub.f32 %v76, %v1131
    %v1133 = vand.u32 %v1132, 4294901760
    %v1134 = vsub.f32 %v1132, %v1133
    %v1135 = vand.u32 %v1134, 4294901760
    %1136 = vmatpush1.msra.mxu0 %v1135
    %1137 = vmatprep.subr.mxu0 0.0
    %v1138 = vand.u32 %v77, 4294901760
    %v1139 = vsub.f32 %v77, %v1138
    %v1140 = vand.u32 %v1139, 4294901760
    %v1141 = vsub.f32 %v1139, %v1140
    %v1142 = vand.u32 %v1141, 4294901760
    %1143 = vmatpush1.msra.mxu0 %v1142
    %1144 = vmatprep.subr.mxu0 0.0
    %v1145 = vand.u32 %v78, 4294901760
    %v1146 = vsub.f32 %v78, %v1145
    %v1147 = vand.u32 %v1146, 4294901760
    %v1148 = vsub.f32 %v1146, %v1147
    %v1149 = vand.u32 %v1148, 4294901760
    %1150 = vmatpush1.msra.mxu0 %v1149
    %1151 = vmatprep.subr.mxu0 0.0
    %1152 = vmatpush1.msra.mxu0 0.0
    %1153 = vmatprep.subr.mxu0 0.0
    %1154 = vmatpush1.msra.mxu0 0.0
    %1155 = vmatprep.subr.mxu0 0.0
    %1156 = vmatpush1.msra.mxu0 0.0
    %1157 = vmatprep.subr.mxu0 0.0
    %1158 = vmatpush1.msra.mxu0 0.0
    %1159 = vmatprep.subr.mxu0 0.0
    %1160 = vmatpush1.msra.mxu0 0.0
    %1161 = vmatprep.subr.mxu0 0.0
    %1162 = vmatpush1.msra.mxu0 0.0
    %1163 = vmatprep.subr.mxu0 0.0
    %1164 = vmatpush1.msra.mxu0 0.0
    %1165 = vmatprep.subr.mxu0 0.0
    %1166 = vmatpush1.msra.mxu0 0.0
    %1167 = vmatprep.subr.mxu0 0.0
    %1168 = vmatpush1.msra.mxu0 0.0
    %1169 = vmatprep.subr.mxu0 0.0
    %1170 = vmatpush1.msra.mxu0 0.0
    %1171 = vmatprep.subr.mxu0 0.0
    %1172 = vmatpush1.msra.mxu0 0.0
    %1173 = vmatprep.subr.mxu0 0.0
    %1174 = vmatpush1.msra.mxu0 0.0
    %1175 = vmatprep.subr.mxu0 0.0
    %1176 = vmatpush1.msra.mxu0 0.0
    %1177 = vmatprep.subr.mxu0 0.0
    %1178 = vmatpush1.msra.mxu0 0.0
    %1179 = vmatprep.subr.mxu0 0.0
    %1180 = vmatpush1.msra.mxu0 0.0
    %1181 = vmatprep.subr.mxu0 0.0
    %1182 = vmatpush1.msra.mxu0 0.0
    %1183 = vmatprep.mubr.f32.mxu0 0.0
    %v1184 = vand.u32 %v748, 4294901760
    %1185 = vmatmul.mubr.f32.gmra.mrb[0].mxu0 %v1184
    %v1186 = vpop.f32.mrb[0].mxu0
    %v1187 = vadd.f32 %v886, %v1186
    %v1188 = vpop.f32.mrb[0].mxu0
    %1189 = vmatprep.mubr.f32.mxu0 0.0
    %v1190 = vand.u32 %v749, 4294901760
    %1191 = vmatmul.mubr.f32.gmra.mrb[0].mxu0 %v1190
    %v1192 = vpop.f32.mrb[0].mxu0
    %v1193 = vadd.f32 %v896, %v1192
    %v1194 = vpop.f32.mrb[0].mxu0
    %1195 = vmatprep.mubr.f32.mxu0 0.0
    %v1196 = vand.u32 %v750, 4294901760
    %1197 = vmatmul.mubr.f32.gmra.mrb[0].mxu0 %v1196
    %v1198 = vpop.f32.mrb[0].mxu0
    %v1199 = vadd.f32 %v906, %v1198
    %v1200 = vpop.f32.mrb[0].mxu0
    %1201 = vmatprep.mubr.f32.mxu0 0.0
    %v1202 = vand.u32 %v751, 4294901760
    %1203 = vmatmul.mubr.f32.gmra.mrb[0].mxu0 %v1202
    %v1204 = vpop.f32.mrb[0].mxu0
    %v1205 = vadd.f32 %v916, %v1204
    %v1206 = vpop.f32.mrb[0].mxu0
    %1207 = vmatprep.mubr.f32.mxu0 0.0
    %v1208 = vand.u32 %v752, 4294901760
    %1209 = vmatmul.mubr.f32.gmra.mrb[0].mxu0 %v1208
    %v1210 = vpop.f32.mrb[0].mxu0
    %v1211 = vadd.f32 %v926, %v1210
    %v1212 = vpop.f32.mrb[0].mxu0
    %1213 = vmatprep.mubr.f32.mxu0 0.0
    %v1214 = vand.u32 %v753, 4294901760
    %1215 = vmatmul.mubr.f32.gmra.mrb[0].mxu0 %v1214
    %v1216 = vpop.f32.mrb[0].mxu0
    %v1217 = vadd.f32 %v936, %v1216
    %v1218 = vpop.f32.mrb[0].mxu0
    %1219 = vmatprep.mubr.f32.mxu0 0.0
    %v1220 = vand.u32 %v754, 4294901760
    %1221 = vmatmul.mubr.f32.gmra.mrb[0].mxu0 %v1220
    %v1222 = vpop.f32.mrb[0].mxu0
    %v1223 = vadd.f32 %v946, %v1222
    %v1224 = vpop.f32.mrb[0].mxu0
    %1225 = vmatprep.mubr.f32.mxu0 0.0
    %v1226 = vand.u32 %v755, 4294901760
    %1227 = vmatmul.mubr.f32.gmra.mrb[0].mxu0 %v1226
    %v1228 = vpop.f32.mrb[0].mxu0
    %v1229 = vadd.f32 %v956, %v1228
    %v1230 = vpop.f32.mrb[0].mxu0
    %1231 = vmatprep.mubr.f32.mxu0 0.0
    %v1232 = vand.u32 %v756, 4294901760
    %1233 = vmatmul.mubr.f32.gmra.mrb[0].mxu0 %v1232
    %v1234 = vpop.f32.mrb[0].mxu0
    %v1235 = vadd.f32 %v966, %v1234
    %v1236 = vpop.f32.mrb[0].mxu0
    %1237 = vmatprep.mubr.f32.mxu0 0.0
    %v1238 = vand.u32 %v757, 4294901760
    %1239 = vmatmul.mubr.f32.gmra.mrb[0].mxu0 %v1238
    %v1240 = vpop.f32.mrb[0].mxu0
    %v1241 = vadd.f32 %v976, %v1240
    %v1242 = vpop.f32.mrb[0].mxu0
    %1243 = vmatprep.mubr.f32.mxu0 0.0
    %v1244 = vand.u32 %v758, 4294901760
    %1245 = vmatmul.mubr.f32.gmra.mrb[0].mxu0 %v1244
    %v1246 = vpop.f32.mrb[0].mxu0
    %v1247 = vadd.f32 %v986, %v1246
    %v1248 = vpop.f32.mrb[0].mxu0
    %1249 = vmatprep.mubr.f32.mxu0 0.0
    %v1250 = vand.u32 %v759, 4294901760
    %1251 = vmatmul.mubr.f32.gmra.mrb[0].mxu0 %v1250
    %v1252 = vpop.f32.mrb[0].mxu0
    %v1253 = vadd.f32 %v996, %v1252
    %v1254 = vpop.f32.mrb[0].mxu0
    %1255 = vmatprep.mubr.f32.mxu0 0.0
    %v1256 = vand.u32 %v760, 4294901760
    %1257 = vmatmul.mubr.f32.gmra.mrb[0].mxu0 %v1256
    %v1258 = vpop.f32.mrb[0].mxu0
    %v1259 = vadd.f32 %v1006, %v1258
    %v1260 = vpop.f32.mrb[0].mxu0
    %1261 = vmatprep.mubr.f32.mxu0 0.0
    %v1262 = vand.u32 %v761, 4294901760
    %1263 = vmatmul.mubr.f32.gmra.mrb[0].mxu0 %v1262
    %v1264 = vpop.f32.mrb[0].mxu0
    %v1265 = vadd.f32 %v1016, %v1264
    %v1266 = vpop.f32.mrb[0].mxu0
    %1267 = vmatprep.mubr.f32.mxu0 0.0
    %v1268 = vand.u32 %v762, 4294901760
    %1269 = vmatmul.mubr.f32.gmra.mrb[0].mxu0 %v1268
    %v1270 = vpop.f32.mrb[0].mxu0
    %v1271 = vadd.f32 %v1026, %v1270
    %v1272 = vpop.f32.mrb[0].mxu0
    %1273 = vmatprep.mubr.f32.mxu0 0.0
    %v1274 = vand.u32 %v763, 4294901760
    %1275 = vmatmul.mubr.f32.gmra.mrb[0].mxu0 %v1274
    %v1276 = vpop.f32.mrb[0].mxu0
    %v1277 = vadd.f32 %v1036, %v1276
    %v1278 = vpop.f32.mrb[0].mxu0
    %1279 = vdwg.mxu0
    %1280 = vmatprep.subr.mxu0 0.0
    %v1281 = vand.u32 %v63, 4294901760
    %v1282 = vsub.f32 %v63, %v1281
    %1283 = vmatpush1.msra.mxu0 %v1282
    %1284 = vmatprep.subr.mxu0 0.0
    %v1285 = vand.u32 %v64, 4294901760
    %v1286 = vsub.f32 %v64, %v1285
    %1287 = vmatpush1.msra.mxu0 %v1286
    %1288 = vmatprep.subr.mxu0 0.0
    %v1289 = vand.u32 %v65, 4294901760
    %v1290 = vsub.f32 %v65, %v1289
    %1291 = vmatpush1.msra.mxu0 %v1290
    %1292 = vmatprep.subr.mxu0 0.0
    %v1293 = vand.u32 %v66, 4294901760
    %v1294 = vsub.f32 %v66, %v1293
    %1295 = vmatpush1.msra.mxu0 %v1294
    %1296 = vmatprep.subr.mxu0 0.0
    %v1297 = vand.u32 %v67, 4294901760
    %v1298 = vsub.f32 %v67, %v1297
    %1299 = vmatpush1.msra.mxu0 %v1298
    %1300 = vmatprep.subr.mxu0 0.0
    %v1301 = vand.u32 %v68, 4294901760
    %v1302 = vsub.f32 %v68, %v1301
    %1303 = vmatpush1.msra.mxu0 %v1302
    %1304 = vmatprep.subr.mxu0 0.0
    %v1305 = vand.u32 %v69, 4294901760
    %v1306 = vsub.f32 %v69, %v1305
    %1307 = vmatpush1.msra.mxu0 %v1306
    %1308 = vmatprep.subr.mxu0 0.0
    %v1309 = vand.u32 %v70, 4294901760
    %v1310 = vsub.f32 %v70, %v1309
    %1311 = vmatpush1.msra.mxu0 %v1310
    %1312 = vmatprep.subr.mxu0 0.0
    %v1313 = vand.u32 %v71, 4294901760
    %v1314 = vsub.f32 %v71, %v1313
    %1315 = vmatpush1.msra.mxu0 %v1314
    %1316 = vmatprep.subr.mxu0 0.0
    %v1317 = vand.u32 %v72, 4294901760
    %v1318 = vsub.f32 %v72, %v1317
    %1319 = vmatpush1.msra.mxu0 %v1318
    %1320 = vmatprep.subr.mxu0 0.0
    %v1321 = vand.u32 %v73, 4294901760
    %v1322 = vsub.f32 %v73, %v1321
    %1323 = vmatpush1.msra.mxu0 %v1322
    %1324 = vmatprep.subr.mxu0 0.0
    %v1325 = vand.u32 %v74, 4294901760
    %v1326 = vsub.f32 %v74, %v1325
    %1327 = vmatpush1.msra.mxu0 %v1326
    %1328 = vmatprep.subr.mxu0 0.0
    %v1329 = vand.u32 %v75, 4294901760
    %v1330 = vsub.f32 %v75, %v1329
    %1331 = vmatpush1.msra.mxu0 %v1330
    %1332 = vmatprep.subr.mxu0 0.0
    %v1333 = vand.u32 %v76, 4294901760
    %v1334 = vsub.f32 %v76, %v1333
    %1335 = vmatpush1.msra.mxu0 %v1334
    %1336 = vmatprep.subr.mxu0 0.0
    %v1337 = vand.u32 %v77, 4294901760
    %v1338 = vsub.f32 %v77, %v1337
    %1339 = vmatpush1.msra.mxu0 %v1338
    %1340 = vmatprep.subr.mxu0 0.0
    %v1341 = vand.u32 %v78, 4294901760
    %v1342 = vsub.f32 %v78, %v1341
    %1343 = vmatpush1.msra.mxu0 %v1342
    %1344 = vmatprep.subr.mxu0 0.0
    %1345 = vmatpush1.msra.mxu0 0.0
    %1346 = vmatprep.subr.mxu0 0.0
    %1347 = vmatpush1.msra.mxu0 0.0
    %1348 = vmatprep.subr.mxu0 0.0
    %1349 = vmatpush1.msra.mxu0 0.0
    %1350 = vmatprep.subr.mxu0 0.0
    %1351 = vmatpush1.msra.mxu0 0.0
    %1352 = vmatprep.subr.mxu0 0.0
    %1353 = vmatpush1.msra.mxu0 0.0
    %1354 = vmatprep.subr.mxu0 0.0
    %1355 = vmatpush1.msra.mxu0 0.0
    %1356 = vmatprep.subr.mxu0 0.0
    %1357 = vmatpush1.msra.mxu0 0.0
    %1358 = vmatprep.subr.mxu0 0.0
    %1359 = vmatpush1.msra.mxu0 0.0
    %1360 = vmatprep.subr.mxu0 0.0
    %1361 = vmatpush1.msra.mxu0 0.0
    %1362 = vmatprep.subr.mxu0 0.0
    %1363 = vmatpush1.msra.mxu0 0.0
    %1364 = vmatprep.subr.mxu0 0.0
    %1365 = vmatpush1.msra.mxu0 0.0
    %1366 = vmatprep.subr.mxu0 0.0
    %1367 = vmatpush1.msra.mxu0 0.0
    %1368 = vmatprep.subr.mxu0 0.0
    %1369 = vmatpush1.msra.mxu0 0.0
    %1370 = vmatprep.subr.mxu0 0.0
    %1371 = vmatpush1.msra.mxu0 0.0
    %1372 = vmatprep.subr.mxu0 0.0
    %1373 = vmatpush1.msra.mxu0 0.0
    %1374 = vmatprep.subr.mxu0 0.0
    %1375 = vmatpush1.msra.mxu0 0.0
    %1376 = vmatprep.mubr.f32.mxu0 0.0
    %v1377 = vand.u32 %v748, 4294901760
    %v1378 = vsub.f32 %v748, %v1377
    %1379 = vmatmul.mubr.f32.gmra.mrb[0].mxu0 %v1378
    %v1380 = vpop.f32.mrb[0].mxu0
    %v1381 = vadd.f32 %v1187, %v1380
    %v1382 = vpop.f32.mrb[0].mxu0
    %1383 = vmatprep.mubr.f32.mxu0 0.0
    %v1384 = vand.u32 %v749, 4294901760
    %v1385 = vsub.f32 %v749, %v1384
    %1386 = vmatmul.mubr.f32.gmra.mrb[0].mxu0 %v1385
    %v1387 = vpop.f32.mrb[0].mxu0
    %v1388 = vadd.f32 %v1193, %v1387
    %v1389 = vpop.f32.mrb[0].mxu0
    %1390 = vmatprep.mubr.f32.mxu0 0.0
    %v1391 = vand.u32 %v750, 4294901760
    %v1392 = vsub.f32 %v750, %v1391
    %1393 = vmatmul.mubr.f32.gmra.mrb[0].mxu0 %v1392
    %v1394 = vpop.f32.mrb[0].mxu0
    %v1395 = vadd.f32 %v1199, %v1394
    %v1396 = vpop.f32.mrb[0].mxu0
    %1397 = vmatprep.mubr.f32.mxu0 0.0
    %v1398 = vand.u32 %v751, 4294901760
    %v1399 = vsub.f32 %v751, %v1398
    %1400 = vmatmul.mubr.f32.gmra.mrb[0].mxu0 %v1399
    %v1401 = vpop.f32.mrb[0].mxu0
    %v1402 = vadd.f32 %v1205, %v1401
    %v1403 = vpop.f32.mrb[0].mxu0
    %1404 = vmatprep.mubr.f32.mxu0 0.0
    %v1405 = vand.u32 %v752, 4294901760
    %v1406 = vsub.f32 %v752, %v1405
    %1407 = vmatmul.mubr.f32.gmra.mrb[0].mxu0 %v1406
    %v1408 = vpop.f32.mrb[0].mxu0
    %v1409 = vadd.f32 %v1211, %v1408
    %v1410 = vpop.f32.mrb[0].mxu0
    %1411 = vmatprep.mubr.f32.mxu0 0.0
    %v1412 = vand.u32 %v753, 4294901760
    %v1413 = vsub.f32 %v753, %v1412
    %1414 = vmatmul.mubr.f32.gmra.mrb[0].mxu0 %v1413
    %v1415 = vpop.f32.mrb[0].mxu0
    %v1416 = vadd.f32 %v1217, %v1415
    %v1417 = vpop.f32.mrb[0].mxu0
    %1418 = vmatprep.mubr.f32.mxu0 0.0
    %v1419 = vand.u32 %v754, 4294901760
    %v1420 = vsub.f32 %v754, %v1419
    %1421 = vmatmul.mubr.f32.gmra.mrb[0].mxu0 %v1420
    %v1422 = vpop.f32.mrb[0].mxu0
    %v1423 = vadd.f32 %v1223, %v1422
    %v1424 = vpop.f32.mrb[0].mxu0
    %1425 = vmatprep.mubr.f32.mxu0 0.0
    %v1426 = vand.u32 %v755, 4294901760
    %v1427 = vsub.f32 %v755, %v1426
    %1428 = vmatmul.mubr.f32.gmra.mrb[0].mxu0 %v1427
    %v1429 = vpop.f32.mrb[0].mxu0
    %v1430 = vadd.f32 %v1229, %v1429
    %v1431 = vpop.f32.mrb[0].mxu0
    %1432 = vmatprep.mubr.f32.mxu0 0.0
    %v1433 = vand.u32 %v756, 4294901760
    %v1434 = vsub.f32 %v756, %v1433
    %1435 = vmatmul.mubr.f32.gmra.mrb[0].mxu0 %v1434
    %v1436 = vpop.f32.mrb[0].mxu0
    %v1437 = vadd.f32 %v1235, %v1436
    %v1438 = vpop.f32.mrb[0].mxu0
    %1439 = vmatprep.mubr.f32.mxu0 0.0
    %v1440 = vand.u32 %v757, 4294901760
    %v1441 = vsub.f32 %v757, %v1440
    %1442 = vmatmul.mubr.f32.gmra.mrb[0].mxu0 %v1441
    %v1443 = vpop.f32.mrb[0].mxu0
    %v1444 = vadd.f32 %v1241, %v1443
    %v1445 = vpop.f32.mrb[0].mxu0
    %1446 = vmatprep.mubr.f32.mxu0 0.0
    %v1447 = vand.u32 %v758, 4294901760
    %v1448 = vsub.f32 %v758, %v1447
    %1449 = vmatmul.mubr.f32.gmra.mrb[0].mxu0 %v1448
    %v1450 = vpop.f32.mrb[0].mxu0
    %v1451 = vadd.f32 %v1247, %v1450
    %v1452 = vpop.f32.mrb[0].mxu0
    %1453 = vmatprep.mubr.f32.mxu0 0.0
    %v1454 = vand.u32 %v759, 4294901760
    %v1455 = vsub.f32 %v759, %v1454
    %1456 = vmatmul.mubr.f32.gmra.mrb[0].mxu0 %v1455
    %v1457 = vpop.f32.mrb[0].mxu0
    %v1458 = vadd.f32 %v1253, %v1457
    %v1459 = vpop.f32.mrb[0].mxu0
    %1460 = vmatprep.mubr.f32.mxu0 0.0
    %v1461 = vand.u32 %v760, 4294901760
    %v1462 = vsub.f32 %v760, %v1461
    %1463 = vmatmul.mubr.f32.gmra.mrb[0].mxu0 %v1462
    %v1464 = vpop.f32.mrb[0].mxu0
    %v1465 = vadd.f32 %v1259, %v1464
    %v1466 = vpop.f32.mrb[0].mxu0
    %1467 = vmatprep.mubr.f32.mxu0 0.0
    %v1468 = vand.u32 %v761, 4294901760
    %v1469 = vsub.f32 %v761, %v1468
    %1470 = vmatmul.mubr.f32.gmra.mrb[0].mxu0 %v1469
    %v1471 = vpop.f32.mrb[0].mxu0
    %v1472 = vadd.f32 %v1265, %v1471
    %v1473 = vpop.f32.mrb[0].mxu0
    %1474 = vmatprep.mubr.f32.mxu0 0.0
    %v1475 = vand.u32 %v762, 4294901760
    %v1476 = vsub.f32 %v762, %v1475
    %1477 = vmatmul.mubr.f32.gmra.mrb[0].mxu0 %v1476
    %v1478 = vpop.f32.mrb[0].mxu0
    %v1479 = vadd.f32 %v1271, %v1478
    %v1480 = vpop.f32.mrb[0].mxu0
    %1481 = vmatprep.mubr.f32.mxu0 0.0
    %v1482 = vand.u32 %v763, 4294901760
    %v1483 = vsub.f32 %v763, %v1482
    %1484 = vmatmul.mubr.f32.gmra.mrb[0].mxu0 %v1483
    %v1485 = vpop.f32.mrb[0].mxu0
    %v1486 = vadd.f32 %v1277, %v1485
    %v1487 = vpop.f32.mrb[0].mxu0
    %1488 = vdwg.mxu0
    %1489 = vmatprep.subr.mxu0 0.0
    %v1490 = vand.u32 %v63, 4294901760
    %1491 = vmatpush1.msra.mxu0 %v1490
    %1492 = vmatprep.subr.mxu0 0.0
    %v1493 = vand.u32 %v64, 4294901760
    %1494 = vmatpush1.msra.mxu0 %v1493
    %1495 = vmatprep.subr.mxu0 0.0
    %v1496 = vand.u32 %v65, 4294901760
    %1497 = vmatpush1.msra.mxu0 %v1496
    %1498 = vmatprep.subr.mxu0 0.0
    %v1499 = vand.u32 %v66, 4294901760
    %1500 = vmatpush1.msra.mxu0 %v1499
    %1501 = vmatprep.subr.mxu0 0.0
    %v1502 = vand.u32 %v67, 4294901760
    %1503 = vmatpush1.msra.mxu0 %v1502
    %1504 = vmatprep.subr.mxu0 0.0
    %v1505 = vand.u32 %v68, 4294901760
    %1506 = vmatpush1.msra.mxu0 %v1505
    %1507 = vmatprep.subr.mxu0 0.0
    %v1508 = vand.u32 %v69, 4294901760
    %1509 = vmatpush1.msra.mxu0 %v1508
    %1510 = vmatprep.subr.mxu0 0.0
    %v1511 = vand.u32 %v70, 4294901760
    %1512 = vmatpush1.msra.mxu0 %v1511
    %1513 = vmatprep.subr.mxu0 0.0
    %v1514 = vand.u32 %v71, 4294901760
    %1515 = vmatpush1.msra.mxu0 %v1514
    %1516 = vmatprep.subr.mxu0 0.0
    %v1517 = vand.u32 %v72, 4294901760
    %1518 = vmatpush1.msra.mxu0 %v1517
    %1519 = vmatprep.subr.mxu0 0.0
    %v1520 = vand.u32 %v73, 4294901760
    %1521 = vmatpush1.msra.mxu0 %v1520
    %1522 = vmatprep.subr.mxu0 0.0
    %v1523 = vand.u32 %v74, 4294901760
    %1524 = vmatpush1.msra.mxu0 %v1523
    %1525 = vmatprep.subr.mxu0 0.0
    %v1526 = vand.u32 %v75, 4294901760
    %1527 = vmatpush1.msra.mxu0 %v1526
    %1528 = vmatprep.subr.mxu0 0.0
    %v1529 = vand.u32 %v76, 4294901760
    %1530 = vmatpush1.msra.mxu0 %v1529
    %1531 = vmatprep.subr.mxu0 0.0
    %v1532 = vand.u32 %v77, 4294901760
    %1533 = vmatpush1.msra.mxu0 %v1532
    %1534 = vmatprep.subr.mxu0 0.0
    %v1535 = vand.u32 %v78, 4294901760
    %1536 = vmatpush1.msra.mxu0 %v1535
    %1537 = vmatprep.subr.mxu0 0.0
    %1538 = vmatpush1.msra.mxu0 0.0
    %1539 = vmatprep.subr.mxu0 0.0
    %1540 = vmatpush1.msra.mxu0 0.0
    %1541 = vmatprep.subr.mxu0 0.0
    %1542 = vmatpush1.msra.mxu0 0.0
    %1543 = vmatprep.subr.mxu0 0.0
    %1544 = vmatpush1.msra.mxu0 0.0
    %1545 = vmatprep.subr.mxu0 0.0
    %1546 = vmatpush1.msra.mxu0 0.0
    %1547 = vmatprep.subr.mxu0 0.0
    %1548 = vmatpush1.msra.mxu0 0.0
    %1549 = vmatprep.subr.mxu0 0.0
    %1550 = vmatpush1.msra.mxu0 0.0
    %1551 = vmatprep.subr.mxu0 0.0
    %1552 = vmatpush1.msra.mxu0 0.0
    %1553 = vmatprep.subr.mxu0 0.0
    %1554 = vmatpush1.msra.mxu0 0.0
    %1555 = vmatprep.subr.mxu0 0.0
    %1556 = vmatpush1.msra.mxu0 0.0
    %1557 = vmatprep.subr.mxu0 0.0
    %1558 = vmatpush1.msra.mxu0 0.0
    %1559 = vmatprep.subr.mxu0 0.0
    %1560 = vmatpush1.msra.mxu0 0.0
    %1561 = vmatprep.subr.mxu0 0.0
    %1562 = vmatpush1.msra.mxu0 0.0
    %1563 = vmatprep.subr.mxu0 0.0
    %1564 = vmatpush1.msra.mxu0 0.0
    %1565 = vmatprep.subr.mxu0 0.0
    %1566 = vmatpush1.msra.mxu0 0.0
    %1567 = vmatprep.subr.mxu0 0.0
    %1568 = vmatpush1.msra.mxu0 0.0
    %1569 = vmatprep.mubr.f32.mxu0 0.0
    %v1570 = vand.u32 %v748, 4294901760
    %v1571 = vsub.f32 %v748, %v1570
    %v1572 = vand.u32 %v1571, 4294901760
    %1573 = vmatmul.mubr.f32.gmra.mrb[0].mxu0 %v1572
    %v1574 = vpop.f32.mrb[0].mxu0
    %v1575 = vadd.f32 %v1381, %v1574
    %v1576 = vpop.f32.mrb[0].mxu0
    %1577 = vmatprep.mubr.f32.mxu0 0.0
    %v1578 = vand.u32 %v749, 4294901760
    %v1579 = vsub.f32 %v749, %v1578
    %v1580 = vand.u32 %v1579, 4294901760
    %1581 = vmatmul.mubr.f32.gmra.mrb[0].mxu0 %v1580
    %v1582 = vpop.f32.mrb[0].mxu0
    %v1583 = vadd.f32 %v1388, %v1582
    %v1584 = vpop.f32.mrb[0].mxu0
    %1585 = vmatprep.mubr.f32.mxu0 0.0
    %v1586 = vand.u32 %v750, 4294901760
    %v1587 = vsub.f32 %v750, %v1586
    %v1588 = vand.u32 %v1587, 4294901760
    %1589 = vmatmul.mubr.f32.gmra.mrb[0].mxu0 %v1588
    %v1590 = vpop.f32.mrb[0].mxu0
    %v1591 = vadd.f32 %v1395, %v1590
    %v1592 = vpop.f32.mrb[0].mxu0
    %1593 = vmatprep.mubr.f32.mxu0 0.0
    %v1594 = vand.u32 %v751, 4294901760
    %v1595 = vsub.f32 %v751, %v1594
    %v1596 = vand.u32 %v1595, 4294901760
    %1597 = vmatmul.mubr.f32.gmra.mrb[0].mxu0 %v1596
    %v1598 = vpop.f32.mrb[0].mxu0
    %v1599 = vadd.f32 %v1402, %v1598
    %v1600 = vpop.f32.mrb[0].mxu0
    %1601 = vmatprep.mubr.f32.mxu0 0.0
    %v1602 = vand.u32 %v752, 4294901760
    %v1603 = vsub.f32 %v752, %v1602
    %v1604 = vand.u32 %v1603, 4294901760
    %1605 = vmatmul.mubr.f32.gmra.mrb[0].mxu0 %v1604
    %v1606 = vpop.f32.mrb[0].mxu0
    %v1607 = vadd.f32 %v1409, %v1606
    %v1608 = vpop.f32.mrb[0].mxu0
    %1609 = vmatprep.mubr.f32.mxu0 0.0
    %v1610 = vand.u32 %v753, 4294901760
    %v1611 = vsub.f32 %v753, %v1610
    %v1612 = vand.u32 %v1611, 4294901760
    %1613 = vmatmul.mubr.f32.gmra.mrb[0].mxu0 %v1612
    %v1614 = vpop.f32.mrb[0].mxu0
    %v1615 = vadd.f32 %v1416, %v1614
    %v1616 = vpop.f32.mrb[0].mxu0
    %1617 = vmatprep.mubr.f32.mxu0 0.0
    %v1618 = vand.u32 %v754, 4294901760
    %v1619 = vsub.f32 %v754, %v1618
    %v1620 = vand.u32 %v1619, 4294901760
    %1621 = vmatmul.mubr.f32.gmra.mrb[0].mxu0 %v1620
    %v1622 = vpop.f32.mrb[0].mxu0
    %v1623 = vadd.f32 %v1423, %v1622
    %v1624 = vpop.f32.mrb[0].mxu0
    %1625 = vmatprep.mubr.f32.mxu0 0.0
    %v1626 = vand.u32 %v755, 4294901760
    %v1627 = vsub.f32 %v755, %v1626
    %v1628 = vand.u32 %v1627, 4294901760
    %1629 = vmatmul.mubr.f32.gmra.mrb[0].mxu0 %v1628
    %v1630 = vpop.f32.mrb[0].mxu0
    %v1631 = vadd.f32 %v1430, %v1630
    %v1632 = vpop.f32.mrb[0].mxu0
    %1633 = vmatprep.mubr.f32.mxu0 0.0
    %v1634 = vand.u32 %v756, 4294901760
    %v1635 = vsub.f32 %v756, %v1634
    %v1636 = vand.u32 %v1635, 4294901760
    %1637 = vmatmul.mubr.f32.gmra.mrb[0].mxu0 %v1636
    %v1638 = vpop.f32.mrb[0].mxu0
    %v1639 = vadd.f32 %v1437, %v1638
    %v1640 = vpop.f32.mrb[0].mxu0
    %1641 = vmatprep.mubr.f32.mxu0 0.0
    %v1642 = vand.u32 %v757, 4294901760
    %v1643 = vsub.f32 %v757, %v1642
    %v1644 = vand.u32 %v1643, 4294901760
    %1645 = vmatmul.mubr.f32.gmra.mrb[0].mxu0 %v1644
    %v1646 = vpop.f32.mrb[0].mxu0
    %v1647 = vadd.f32 %v1444, %v1646
    %v1648 = vpop.f32.mrb[0].mxu0
    %1649 = vmatprep.mubr.f32.mxu0 0.0
    %v1650 = vand.u32 %v758, 4294901760
    %v1651 = vsub.f32 %v758, %v1650
    %v1652 = vand.u32 %v1651, 4294901760
    %1653 = vmatmul.mubr.f32.gmra.mrb[0].mxu0 %v1652
    %v1654 = vpop.f32.mrb[0].mxu0
    %v1655 = vadd.f32 %v1451, %v1654
    %v1656 = vpop.f32.mrb[0].mxu0
    %1657 = vmatprep.mubr.f32.mxu0 0.0
    %v1658 = vand.u32 %v759, 4294901760
    %v1659 = vsub.f32 %v759, %v1658
    %v1660 = vand.u32 %v1659, 4294901760
    %1661 = vmatmul.mubr.f32.gmra.mrb[0].mxu0 %v1660
    %v1662 = vpop.f32.mrb[0].mxu0
    %v1663 = vadd.f32 %v1458, %v1662
    %v1664 = vpop.f32.mrb[0].mxu0
    %1665 = vmatprep.mubr.f32.mxu0 0.0
    %v1666 = vand.u32 %v760, 4294901760
    %v1667 = vsub.f32 %v760, %v1666
    %v1668 = vand.u32 %v1667, 4294901760
    %1669 = vmatmul.mubr.f32.gmra.mrb[0].mxu0 %v1668
    %v1670 = vpop.f32.mrb[0].mxu0
    %v1671 = vadd.f32 %v1465, %v1670
    %v1672 = vpop.f32.mrb[0].mxu0
    %1673 = vmatprep.mubr.f32.mxu0 0.0
    %v1674 = vand.u32 %v761, 4294901760
    %v1675 = vsub.f32 %v761, %v1674
    %v1676 = vand.u32 %v1675, 4294901760
    %1677 = vmatmul.mubr.f32.gmra.mrb[0].mxu0 %v1676
    %v1678 = vpop.f32.mrb[0].mxu0
    %v1679 = vadd.f32 %v1472, %v1678
    %v1680 = vpop.f32.mrb[0].mxu0
    %1681 = vmatprep.mubr.f32.mxu0 0.0
    %v1682 = vand.u32 %v762, 4294901760
    %v1683 = vsub.f32 %v762, %v1682
    %v1684 = vand.u32 %v1683, 4294901760
    %1685 = vmatmul.mubr.f32.gmra.mrb[0].mxu0 %v1684
    %v1686 = vpop.f32.mrb[0].mxu0
    %v1687 = vadd.f32 %v1479, %v1686
    %v1688 = vpop.f32.mrb[0].mxu0
    %1689 = vmatprep.mubr.f32.mxu0 0.0
    %v1690 = vand.u32 %v763, 4294901760
    %v1691 = vsub.f32 %v763, %v1690
    %v1692 = vand.u32 %v1691, 4294901760
    %1693 = vmatmul.mubr.f32.gmra.mrb[0].mxu0 %v1692
    %v1694 = vpop.f32.mrb[0].mxu0
    %v1695 = vadd.f32 %v1486, %v1694
    %v1696 = vpop.f32.mrb[0].mxu0
    %1697 = vdwg.mxu0
    %1698 = vmatprep.subr.mxu0 0.0
    %v1699 = vand.u32 %v63, 4294901760
    %v1700 = vsub.f32 %v63, %v1699
    %v1701 = vand.u32 %v1700, 4294901760
    %1702 = vmatpush1.msra.mxu0 %v1701
    %1703 = vmatprep.subr.mxu0 0.0
    %v1704 = vand.u32 %v64, 4294901760
    %v1705 = vsub.f32 %v64, %v1704
    %v1706 = vand.u32 %v1705, 4294901760
    %1707 = vmatpush1.msra.mxu0 %v1706
    %1708 = vmatprep.subr.mxu0 0.0
    %v1709 = vand.u32 %v65, 4294901760
    %v1710 = vsub.f32 %v65, %v1709
    %v1711 = vand.u32 %v1710, 4294901760
    %1712 = vmatpush1.msra.mxu0 %v1711
    %1713 = vmatprep.subr.mxu0 0.0
    %v1714 = vand.u32 %v66, 4294901760
    %v1715 = vsub.f32 %v66, %v1714
    %v1716 = vand.u32 %v1715, 4294901760
    %1717 = vmatpush1.msra.mxu0 %v1716
    %1718 = vmatprep.subr.mxu0 0.0
    %v1719 = vand.u32 %v67, 4294901760
    %v1720 = vsub.f32 %v67, %v1719
    %v1721 = vand.u32 %v1720, 4294901760
    %1722 = vmatpush1.msra.mxu0 %v1721
    %1723 = vmatprep.subr.mxu0 0.0
    %v1724 = vand.u32 %v68, 4294901760
    %v1725 = vsub.f32 %v68, %v1724
    %v1726 = vand.u32 %v1725, 4294901760
    %1727 = vmatpush1.msra.mxu0 %v1726
    %1728 = vmatprep.subr.mxu0 0.0
    %v1729 = vand.u32 %v69, 4294901760
    %v1730 = vsub.f32 %v69, %v1729
    %v1731 = vand.u32 %v1730, 4294901760
    %1732 = vmatpush1.msra.mxu0 %v1731
    %1733 = vmatprep.subr.mxu0 0.0
    %v1734 = vand.u32 %v70, 4294901760
    %v1735 = vsub.f32 %v70, %v1734
    %v1736 = vand.u32 %v1735, 4294901760
    %1737 = vmatpush1.msra.mxu0 %v1736
    %1738 = vmatprep.subr.mxu0 0.0
    %v1739 = vand.u32 %v71, 4294901760
    %v1740 = vsub.f32 %v71, %v1739
    %v1741 = vand.u32 %v1740, 4294901760
    %1742 = vmatpush1.msra.mxu0 %v1741
    %1743 = vmatprep.subr.mxu0 0.0
    %v1744 = vand.u32 %v72, 4294901760
    %v1745 = vsub.f32 %v72, %v1744
    %v1746 = vand.u32 %v1745, 4294901760
    %1747 = vmatpush1.msra.mxu0 %v1746
    %1748 = vmatprep.subr.mxu0 0.0
    %v1749 = vand.u32 %v73, 4294901760
    %v1750 = vsub.f32 %v73, %v1749
    %v1751 = vand.u32 %v1750, 4294901760
    %1752 = vmatpush1.msra.mxu0 %v1751
    %1753 = vmatprep.subr.mxu0 0.0
    %v1754 = vand.u32 %v74, 4294901760
    %v1755 = vsub.f32 %v74, %v1754
    %v1756 = vand.u32 %v1755, 4294901760
    %1757 = vmatpush1.msra.mxu0 %v1756
    %1758 = vmatprep.subr.mxu0 0.0
    %v1759 = vand.u32 %v75, 4294901760
    %v1760 = vsub.f32 %v75, %v1759
    %v1761 = vand.u32 %v1760, 4294901760
    %1762 = vmatpush1.msra.mxu0 %v1761
    %1763 = vmatprep.subr.mxu0 0.0
    %v1764 = vand.u32 %v76, 4294901760
    %v1765 = vsub.f32 %v76, %v1764
    %v1766 = vand.u32 %v1765, 4294901760
    %1767 = vmatpush1.msra.mxu0 %v1766
    %1768 = vmatprep.subr.mxu0 0.0
    %v1769 = vand.u32 %v77, 4294901760
    %v1770 = vsub.f32 %v77, %v1769
    %v1771 = vand.u32 %v1770, 4294901760
    %1772 = vmatpush1.msra.mxu0 %v1771
    %1773 = vmatprep.subr.mxu0 0.0
    %v1774 = vand.u32 %v78, 4294901760
    %v1775 = vsub.f32 %v78, %v1774
    %v1776 = vand.u32 %v1775, 4294901760
    %1777 = vmatpush1.msra.mxu0 %v1776
    %1778 = vmatprep.subr.mxu0 0.0
    %1779 = vmatpush1.msra.mxu0 0.0
    %1780 = vmatprep.subr.mxu0 0.0
    %1781 = vmatpush1.msra.mxu0 0.0
    %1782 = vmatprep.subr.mxu0 0.0
    %1783 = vmatpush1.msra.mxu0 0.0
    %1784 = vmatprep.subr.mxu0 0.0
    %1785 = vmatpush1.msra.mxu0 0.0
    %1786 = vmatprep.subr.mxu0 0.0
    %1787 = vmatpush1.msra.mxu0 0.0
    %1788 = vmatprep.subr.mxu0 0.0
    %1789 = vmatpush1.msra.mxu0 0.0
    %1790 = vmatprep.subr.mxu0 0.0
    %1791 = vmatpush1.msra.mxu0 0.0
    %1792 = vmatprep.subr.mxu0 0.0
    %1793 = vmatpush1.msra.mxu0 0.0
    %1794 = vmatprep.subr.mxu0 0.0
    %1795 = vmatpush1.msra.mxu0 0.0
    %1796 = vmatprep.subr.mxu0 0.0
    %1797 = vmatpush1.msra.mxu0 0.0
    %1798 = vmatprep.subr.mxu0 0.0
    %1799 = vmatpush1.msra.mxu0 0.0
    %1800 = vmatprep.subr.mxu0 0.0
    %1801 = vmatpush1.msra.mxu0 0.0
    %1802 = vmatprep.subr.mxu0 0.0
    %1803 = vmatpush1.msra.mxu0 0.0
    %1804 = vmatprep.subr.mxu0 0.0
    %1805 = vmatpush1.msra.mxu0 0.0
    %1806 = vmatprep.subr.mxu0 0.0
    %1807 = vmatpush1.msra.mxu0 0.0
    %1808 = vmatprep.subr.mxu0 0.0
    %1809 = vmatpush1.msra.mxu0 0.0
    %1810 = vmatprep.mubr.f32.mxu0 0.0
    %v1811 = vand.u32 %v748, 4294901760
    %1812 = vmatmul.mubr.f32.gmra.mrb[0].mxu0 %v1811
    %v1813 = vpop.f32.mrb[0].mxu0
    %v1814 = vadd.f32 %v1575, %v1813
    %v1815 = vpop.f32.mrb[0].mxu0
    %1816 = vmatprep.mubr.f32.mxu0 0.0
    %v1817 = vand.u32 %v749, 4294901760
    %1818 = vmatmul.mubr.f32.gmra.mrb[0].mxu0 %v1817
    %v1819 = vpop.f32.mrb[0].mxu0
    %v1820 = vadd.f32 %v1583, %v1819
    %v1821 = vpop.f32.mrb[0].mxu0
    %1822 = vmatprep.mubr.f32.mxu0 0.0
    %v1823 = vand.u32 %v750, 4294901760
    %1824 = vmatmul.mubr.f32.gmra.mrb[0].mxu0 %v1823
    %v1825 = vpop.f32.mrb[0].mxu0
    %v1826 = vadd.f32 %v1591, %v1825
    %v1827 = vpop.f32.mrb[0].mxu0
    %1828 = vmatprep.mubr.f32.mxu0 0.0
    %v1829 = vand.u32 %v751, 4294901760
    %1830 = vmatmul.mubr.f32.gmra.mrb[0].mxu0 %v1829
    %v1831 = vpop.f32.mrb[0].mxu0
    %v1832 = vadd.f32 %v1599, %v1831
    %v1833 = vpop.f32.mrb[0].mxu0
    %1834 = vmatprep.mubr.f32.mxu0 0.0
    %v1835 = vand.u32 %v752, 4294901760
    %1836 = vmatmul.mubr.f32.gmra.mrb[0].mxu0 %v1835
    %v1837 = vpop.f32.mrb[0].mxu0
    %v1838 = vadd.f32 %v1607, %v1837
    %v1839 = vpop.f32.mrb[0].mxu0
    %1840 = vmatprep.mubr.f32.mxu0 0.0
    %v1841 = vand.u32 %v753, 4294901760
    %1842 = vmatmul.mubr.f32.gmra.mrb[0].mxu0 %v1841
    %v1843 = vpop.f32.mrb[0].mxu0
    %v1844 = vadd.f32 %v1615, %v1843
    %v1845 = vpop.f32.mrb[0].mxu0
    %1846 = vmatprep.mubr.f32.mxu0 0.0
    %v1847 = vand.u32 %v754, 4294901760
    %1848 = vmatmul.mubr.f32.gmra.mrb[0].mxu0 %v1847
    %v1849 = vpop.f32.mrb[0].mxu0
    %v1850 = vadd.f32 %v1623, %v1849
    %v1851 = vpop.f32.mrb[0].mxu0
    %1852 = vmatprep.mubr.f32.mxu0 0.0
    %v1853 = vand.u32 %v755, 4294901760
    %1854 = vmatmul.mubr.f32.gmra.mrb[0].mxu0 %v1853
    %v1855 = vpop.f32.mrb[0].mxu0
    %v1856 = vadd.f32 %v1631, %v1855
    %v1857 = vpop.f32.mrb[0].mxu0
    %1858 = vmatprep.mubr.f32.mxu0 0.0
    %v1859 = vand.u32 %v756, 4294901760
    %1860 = vmatmul.mubr.f32.gmra.mrb[0].mxu0 %v1859
    %v1861 = vpop.f32.mrb[0].mxu0
    %v1862 = vadd.f32 %v1639, %v1861
    %v1863 = vpop.f32.mrb[0].mxu0
    %1864 = vmatprep.mubr.f32.mxu0 0.0
    %v1865 = vand.u32 %v757, 4294901760
    %1866 = vmatmul.mubr.f32.gmra.mrb[0].mxu0 %v1865
    %v1867 = vpop.f32.mrb[0].mxu0
    %v1868 = vadd.f32 %v1647, %v1867
    %v1869 = vpop.f32.mrb[0].mxu0
    %1870 = vmatprep.mubr.f32.mxu0 0.0
    %v1871 = vand.u32 %v758, 4294901760
    %1872 = vmatmul.mubr.f32.gmra.mrb[0].mxu0 %v1871
    %v1873 = vpop.f32.mrb[0].mxu0
    %v1874 = vadd.f32 %v1655, %v1873
    %v1875 = vpop.f32.mrb[0].mxu0
    %1876 = vmatprep.mubr.f32.mxu0 0.0
    %v1877 = vand.u32 %v759, 4294901760
    %1878 = vmatmul.mubr.f32.gmra.mrb[0].mxu0 %v1877
    %v1879 = vpop.f32.mrb[0].mxu0
    %v1880 = vadd.f32 %v1663, %v1879
    %v1881 = vpop.f32.mrb[0].mxu0
    %1882 = vmatprep.mubr.f32.mxu0 0.0
    %v1883 = vand.u32 %v760, 4294901760
    %1884 = vmatmul.mubr.f32.gmra.mrb[0].mxu0 %v1883
    %v1885 = vpop.f32.mrb[0].mxu0
    %v1886 = vadd.f32 %v1671, %v1885
    %v1887 = vpop.f32.mrb[0].mxu0
    %1888 = vmatprep.mubr.f32.mxu0 0.0
    %v1889 = vand.u32 %v761, 4294901760
    %1890 = vmatmul.mubr.f32.gmra.mrb[0].mxu0 %v1889
    %v1891 = vpop.f32.mrb[0].mxu0
    %v1892 = vadd.f32 %v1679, %v1891
    %v1893 = vpop.f32.mrb[0].mxu0
    %1894 = vmatprep.mubr.f32.mxu0 0.0
    %v1895 = vand.u32 %v762, 4294901760
    %1896 = vmatmul.mubr.f32.gmra.mrb[0].mxu0 %v1895
    %v1897 = vpop.f32.mrb[0].mxu0
    %v1898 = vadd.f32 %v1687, %v1897
    %v1899 = vpop.f32.mrb[0].mxu0
    %1900 = vmatprep.mubr.f32.mxu0 0.0
    %v1901 = vand.u32 %v763, 4294901760
    %1902 = vmatmul.mubr.f32.gmra.mrb[0].mxu0 %v1901
    %v1903 = vpop.f32.mrb[0].mxu0
    %v1904 = vadd.f32 %v1695, %v1903
    %v1905 = vpop.f32.mrb[0].mxu0
    %1906 = vdwg.mxu0
    %1907 = vmatprep.subr.mxu0 0.0
    %v1908 = vand.u32 %v63, 4294901760
    %1909 = vmatpush1.msra.mxu0 %v1908
    %1910 = vmatprep.subr.mxu0 0.0
    %v1911 = vand.u32 %v64, 4294901760
    %1912 = vmatpush1.msra.mxu0 %v1911
    %1913 = vmatprep.subr.mxu0 0.0
    %v1914 = vand.u32 %v65, 4294901760
    %1915 = vmatpush1.msra.mxu0 %v1914
    %1916 = vmatprep.subr.mxu0 0.0
    %v1917 = vand.u32 %v66, 4294901760
    %1918 = vmatpush1.msra.mxu0 %v1917
    %1919 = vmatprep.subr.mxu0 0.0
    %v1920 = vand.u32 %v67, 4294901760
    %1921 = vmatpush1.msra.mxu0 %v1920
    %1922 = vmatprep.subr.mxu0 0.0
    %v1923 = vand.u32 %v68, 4294901760
    %1924 = vmatpush1.msra.mxu0 %v1923
    %1925 = vmatprep.subr.mxu0 0.0
    %v1926 = vand.u32 %v69, 4294901760
    %1927 = vmatpush1.msra.mxu0 %v1926
    %1928 = vmatprep.subr.mxu0 0.0
    %v1929 = vand.u32 %v70, 4294901760
    %1930 = vmatpush1.msra.mxu0 %v1929
    %1931 = vmatprep.subr.mxu0 0.0
    %v1932 = vand.u32 %v71, 4294901760
    %1933 = vmatpush1.msra.mxu0 %v1932
    %1934 = vmatprep.subr.mxu0 0.0
    %v1935 = vand.u32 %v72, 4294901760
    %1936 = vmatpush1.msra.mxu0 %v1935
    %1937 = vmatprep.subr.mxu0 0.0
    %v1938 = vand.u32 %v73, 4294901760
    %1939 = vmatpush1.msra.mxu0 %v1938
    %1940 = vmatprep.subr.mxu0 0.0
    %v1941 = vand.u32 %v74, 4294901760
    %1942 = vmatpush1.msra.mxu0 %v1941
    %1943 = vmatprep.subr.mxu0 0.0
    %v1944 = vand.u32 %v75, 4294901760
    %1945 = vmatpush1.msra.mxu0 %v1944
    %1946 = vmatprep.subr.mxu0 0.0
    %v1947 = vand.u32 %v76, 4294901760
    %1948 = vmatpush1.msra.mxu0 %v1947
    %1949 = vmatprep.subr.mxu0 0.0
    %v1950 = vand.u32 %v77, 4294901760
    %1951 = vmatpush1.msra.mxu0 %v1950
    %1952 = vmatprep.subr.mxu0 0.0
    %v1953 = vand.u32 %v78, 4294901760
    %1954 = vmatpush1.msra.mxu0 %v1953
    %1955 = vmatprep.subr.mxu0 0.0
    %1956 = vmatpush1.msra.mxu0 0.0
    %1957 = vmatprep.subr.mxu0 0.0
    %1958 = vmatpush1.msra.mxu0 0.0
    %1959 = vmatprep.subr.mxu0 0.0
    %1960 = vmatpush1.msra.mxu0 0.0
    %1961 = vmatprep.subr.mxu0 0.0
    %1962 = vmatpush1.msra.mxu0 0.0
    %1963 = vmatprep.subr.mxu0 0.0
    %1964 = vmatpush1.msra.mxu0 0.0
    %1965 = vmatprep.subr.mxu0 0.0
    %1966 = vmatpush1.msra.mxu0 0.0
    %1967 = vmatprep.subr.mxu0 0.0
    %1968 = vmatpush1.msra.mxu0 0.0
    %1969 = vmatprep.subr.mxu0 0.0
    %1970 = vmatpush1.msra.mxu0 0.0
    %1971 = vmatprep.subr.mxu0 0.0
    %1972 = vmatpush1.msra.mxu0 0.0
    %1973 = vmatprep.subr.mxu0 0.0
    %1974 = vmatpush1.msra.mxu0 0.0
    %1975 = vmatprep.subr.mxu0 0.0
    %1976 = vmatpush1.msra.mxu0 0.0
    %1977 = vmatprep.subr.mxu0 0.0
    %1978 = vmatpush1.msra.mxu0 0.0
    %1979 = vmatprep.subr.mxu0 0.0
    %1980 = vmatpush1.msra.mxu0 0.0
    %1981 = vmatprep.subr.mxu0 0.0
    %1982 = vmatpush1.msra.mxu0 0.0
    %1983 = vmatprep.subr.mxu0 0.0
    %1984 = vmatpush1.msra.mxu0 0.0
    %1985 = vmatprep.subr.mxu0 0.0
    %1986 = vmatpush1.msra.mxu0 0.0
    %1987 = vmatprep.mubr.f32.mxu0 0.0
    %v1988 = vand.u32 %v748, 4294901760
    %1989 = vmatmul.mubr.f32.gmra.mrb[0].mxu0 %v1988
    %v1990 = vpop.f32.mrb[0].mxu0
    %v1991 = vadd.f32 %v1814, %v1990
    %v1992 = vpop.f32.mrb[0].mxu0
    %1993 = vmatprep.mubr.f32.mxu0 0.0
    %v1994 = vand.u32 %v749, 4294901760
    %1995 = vmatmul.mubr.f32.gmra.mrb[0].mxu0 %v1994
    %v1996 = vpop.f32.mrb[0].mxu0
    %v1997 = vadd.f32 %v1820, %v1996
    %v1998 = vpop.f32.mrb[0].mxu0
    %1999 = vmatprep.mubr.f32.mxu0 0.0
    %v2000 = vand.u32 %v750, 4294901760
    %2001 = vmatmul.mubr.f32.gmra.mrb[0].mxu0 %v2000
    %v2002 = vpop.f32.mrb[0].mxu0
    %v2003 = vadd.f32 %v1826, %v2002
    %v2004 = vpop.f32.mrb[0].mxu0
    %2005 = vmatprep.mubr.f32.mxu0 0.0
    %v2006 = vand.u32 %v751, 4294901760
    %2007 = vmatmul.mubr.f32.gmra.mrb[0].mxu0 %v2006
    %v2008 = vpop.f32.mrb[0].mxu0
    %v2009 = vadd.f32 %v1832, %v2008
    %v2010 = vpop.f32.mrb[0].mxu0
    %2011 = vmatprep.mubr.f32.mxu0 0.0
    %v2012 = vand.u32 %v752, 4294901760
    %2013 = vmatmul.mubr.f32.gmra.mrb[0].mxu0 %v2012
    %v2014 = vpop.f32.mrb[0].mxu0
    %v2015 = vadd.f32 %v1838, %v2014
    %v2016 = vpop.f32.mrb[0].mxu0
    %2017 = vmatprep.mubr.f32.mxu0 0.0
    %v2018 = vand.u32 %v753, 4294901760
    %2019 = vmatmul.mubr.f32.gmra.mrb[0].mxu0 %v2018
    %v2020 = vpop.f32.mrb[0].mxu0
    %v2021 = vadd.f32 %v1844, %v2020
    %v2022 = vpop.f32.mrb[0].mxu0
    %2023 = vmatprep.mubr.f32.mxu0 0.0
    %v2024 = vand.u32 %v754, 4294901760
    %2025 = vmatmul.mubr.f32.gmra.mrb[0].mxu0 %v2024
    %v2026 = vpop.f32.mrb[0].mxu0
    %v2027 = vadd.f32 %v1850, %v2026
    %v2028 = vpop.f32.mrb[0].mxu0
    %2029 = vmatprep.mubr.f32.mxu0 0.0
    %v2030 = vand.u32 %v755, 4294901760
    %2031 = vmatmul.mubr.f32.gmra.mrb[0].mxu0 %v2030
    %v2032 = vpop.f32.mrb[0].mxu0
    %v2033 = vadd.f32 %v1856, %v2032
    %v2034 = vpop.f32.mrb[0].mxu0
    %2035 = vmatprep.mubr.f32.mxu0 0.0
    %v2036 = vand.u32 %v756, 4294901760
    %2037 = vmatmul.mubr.f32.gmra.mrb[0].mxu0 %v2036
    %v2038 = vpop.f32.mrb[0].mxu0
    %v2039 = vadd.f32 %v1862, %v2038
    %v2040 = vpop.f32.mrb[0].mxu0
    %2041 = vmatprep.mubr.f32.mxu0 0.0
    %v2042 = vand.u32 %v757, 4294901760
    %2043 = vmatmul.mubr.f32.gmra.mrb[0].mxu0 %v2042
    %v2044 = vpop.f32.mrb[0].mxu0
    %v2045 = vadd.f32 %v1868, %v2044
    %v2046 = vpop.f32.mrb[0].mxu0
    %2047 = vmatprep.mubr.f32.mxu0 0.0
    %v2048 = vand.u32 %v758, 4294901760
    %2049 = vmatmul.mubr.f32.gmra.mrb[0].mxu0 %v2048
    %v2050 = vpop.f32.mrb[0].mxu0
    %v2051 = vadd.f32 %v1874, %v2050
    %v2052 = vpop.f32.mrb[0].mxu0
    %2053 = vmatprep.mubr.f32.mxu0 0.0
    %v2054 = vand.u32 %v759, 4294901760
    %2055 = vmatmul.mubr.f32.gmra.mrb[0].mxu0 %v2054
    %v2056 = vpop.f32.mrb[0].mxu0
    %v2057 = vadd.f32 %v1880, %v2056
    %v2058 = vpop.f32.mrb[0].mxu0
    %2059 = vmatprep.mubr.f32.mxu0 0.0
    %v2060 = vand.u32 %v760, 4294901760
    %2061 = vmatmul.mubr.f32.gmra.mrb[0].mxu0 %v2060
    %v2062 = vpop.f32.mrb[0].mxu0
    %v2063 = vadd.f32 %v1886, %v2062
    %v2064 = vpop.f32.mrb[0].mxu0
    %2065 = vmatprep.mubr.f32.mxu0 0.0
    %v2066 = vand.u32 %v761, 4294901760
    %2067 = vmatmul.mubr.f32.gmra.mrb[0].mxu0 %v2066
    %v2068 = vpop.f32.mrb[0].mxu0
    %v2069 = vadd.f32 %v1892, %v2068
    %v2070 = vpop.f32.mrb[0].mxu0
    %2071 = vmatprep.mubr.f32.mxu0 0.0
    %v2072 = vand.u32 %v762, 4294901760
    %2073 = vmatmul.mubr.f32.gmra.mrb[0].mxu0 %v2072
    %v2074 = vpop.f32.mrb[0].mxu0
    %v2075 = vadd.f32 %v1898, %v2074
    %v2076 = vpop.f32.mrb[0].mxu0
    %2077 = vmatprep.mubr.f32.mxu0 0.0
    %v2078 = vand.u32 %v763, 4294901760
    %2079 = vmatmul.mubr.f32.gmra.mrb[0].mxu0 %v2078
    %v2080 = vpop.f32.mrb[0].mxu0
    %v2081 = vadd.f32 %v1904, %v2080
    %v2082 = vpop.f32.mrb[0].mxu0
    %2083 = vdwg.mxu0
    %v2084 = vadd.f32 %v782, %v1991
    %v2085 = vadd.f32 %v783, %v1997
    %v2086 = vadd.f32 %v784, %v2003
    %v2087 = vadd.f32 %v785, %v2009
    %v2088 = vadd.f32 %v786, %v2015
    %v2089 = vadd.f32 %v787, %v2021
    %v2090 = vadd.f32 %v788, %v2027
    %v2091 = vadd.f32 %v789, %v2033
    %v2092 = vadd.f32 %v790, %v2039
    %v2093 = vadd.f32 %v791, %v2045
    %v2094 = vadd.f32 %v792, %v2051
    %v2095 = vadd.f32 %v793, %v2057
    %v2096 = vadd.f32 %v794, %v2063
    %v2097 = vadd.f32 %v795, %v2069
    %v2098 = vadd.f32 %v796, %v2075
    %v2099 = vadd.f32 %v797, %v2081
    %vm2100 = vcmask 31744
    %2101 = vst.msk [vmem:[#allocation2] sm:$0xff] %vm2100, %v2084
    %2102 = vst.msk [vmem:[#allocation2 + $0x8] sm:$0xff] %vm2100, %v2085
    %2103 = vst.msk [vmem:[#allocation2 + $0x10] sm:$0xff] %vm2100, %v2086
    %2104 = vst.msk [vmem:[#allocation2 + $0x18] sm:$0xff] %vm2100, %v2087
    %2105 = vst.msk [vmem:[#allocation2 + $0x20] sm:$0xff] %vm2100, %v2088
    %2106 = vst.msk [vmem:[#allocation2 + $0x28] sm:$0xff] %vm2100, %v2089
    %2107 = vst.msk [vmem:[#allocation2 + $0x30] sm:$0xff] %vm2100, %v2090
    %2108 = vst.msk [vmem:[#allocation2 + $0x38] sm:$0xff] %vm2100, %v2091
    %2109 = vst.msk [vmem:[#allocation2 + $0x40] sm:$0xff] %vm2100, %v2092
    %2110 = vst.msk [vmem:[#allocation2 + $0x48] sm:$0xff] %vm2100, %v2093
    %2111 = vst.msk [vmem:[#allocation2 + $0x50] sm:$0xff] %vm2100, %v2094
    %2112 = vst.msk [vmem:[#allocation2 + $0x58] sm:$0xff] %vm2100, %v2095
    %2113 = vst.msk [vmem:[#allocation2 + $0x60] sm:$0xff] %vm2100, %v2096
    %2114 = vst.msk [vmem:[#allocation2 + $0x68] sm:$0xff] %vm2100, %v2097
    %2115 = vst.msk [vmem:[#allocation2 + $0x70] sm:$0xff] %vm2100, %v2098
    %2116 = vst.msk [vmem:[#allocation2 + $0x78] sm:$0xff] %vm2100, %v2099
    // Predicated region
    $region22: #{tpu_custom_call.1} parent=1 // pred_check
      %p2117 = pneg %p23
    $region23: #{tpu_custom_call.1} parent=1 // pred_check_branch
      %2119 = sbr.rel (%p2117) target = $region25
    $region24: #{tpu_custom_call.1} parent=1 // pred_region
      %v2120 = vld [vmem:[%s1] sm:$0x7]
      %v2121 = vld [vmem:[#allocation2] sm:$0xff]
      %v2122 = vld [vmem:[#allocation2 + $0x8] sm:$0xff]
      %v2123 = vld [vmem:[#allocation2 + $0x10] sm:$0xff]
      %v2124 = vld [vmem:[#allocation2 + $0x18] sm:$0xff]
      %v2125 = vld [vmem:[#allocation2 + $0x20] sm:$0xff]
      %v2126 = vld [vmem:[#allocation2 + $0x28] sm:$0xff]
      %v2127 = vld [vmem:[#allocation2 + $0x30] sm:$0xff]
      %v2128 = vld [vmem:[#allocation2 + $0x38] sm:$0xff]
      %v2129 = vld [vmem:[#allocation2 + $0x40] sm:$0xff]
      %v2130 = vld [vmem:[#allocation2 + $0x48] sm:$0xff]
      %v2131 = vld [vmem:[#allocation2 + $0x50] sm:$0xff]
      %v2132 = vld [vmem:[#allocation2 + $0x58] sm:$0xff]
      %v2133 = vld [vmem:[#allocation2 + $0x60] sm:$0xff]
      %v2134 = vld [vmem:[#allocation2 + $0x68] sm:$0xff]
      %v2135 = vld [vmem:[#allocation2 + $0x70] sm:$0xff]
      %v2136 = vld [vmem:[#allocation2 + $0x78] sm:$0xff]
      %2138 = vset.pattern.permute.xlu0 3
      %2139 = vperm.xlu0 %2138, %v2121
      %v2140 = vpop.permute.xlu0 %2139
      %2143 = vset.pattern.permute.xlu0 3
      %2144 = vperm.xlu0 %2143, %v2122
      %v2145 = vpop.permute.xlu0 %2144
      %2148 = vset.pattern.permute.xlu0 3
      %2149 = vperm.xlu0 %2148, %v2123
      %v2150 = vpop.permute.xlu0 %2149
      %2153 = vset.pattern.permute.xlu0 3
      %2154 = vperm.xlu0 %2153, %v2124
      %v2155 = vpop.permute.xlu0 %2154
      %2158 = vset.pattern.permute.xlu0 3
      %2159 = vperm.xlu0 %2158, %v2125
      %v2160 = vpop.permute.xlu0 %2159
      %2163 = vset.pattern.permute.xlu0 3
      %2164 = vperm.xlu0 %2163, %v2126
      %v2165 = vpop.permute.xlu0 %2164
      %2168 = vset.pattern.permute.xlu0 3
      %2169 = vperm.xlu0 %2168, %v2127
      %v2170 = vpop.permute.xlu0 %2169
      %2173 = vset.pattern.permute.xlu0 3
      %2174 = vperm.xlu0 %2173, %v2128
      %v2175 = vpop.permute.xlu0 %2174
      %2178 = vset.pattern.permute.xlu0 3
      %2179 = vperm.xlu0 %2178, %v2129
      %v2180 = vpop.permute.xlu0 %2179
      %2183 = vset.pattern.permute.xlu0 3
      %2184 = vperm.xlu0 %2183, %v2130
      %v2185 = vpop.permute.xlu0 %2184
      %2188 = vset.pattern.permute.xlu0 3
      %2189 = vperm.xlu0 %2188, %v2131
      %v2190 = vpop.permute.xlu0 %2189
      %2193 = vset.pattern.permute.xlu0 3
      %2194 = vperm.xlu0 %2193, %v2132
      %v2195 = vpop.permute.xlu0 %2194
      %2198 = vset.pattern.permute.xlu0 3
      %2199 = vperm.xlu0 %2198, %v2133
      %v2200 = vpop.permute.xlu0 %2199
      %2203 = vset.pattern.permute.xlu0 3
      %2204 = vperm.xlu0 %2203, %v2134
      %v2205 = vpop.permute.xlu0 %2204
      %2208 = vset.pattern.permute.xlu0 3
      %2209 = vperm.xlu0 %2208, %v2135
      %v2210 = vpop.permute.xlu0 %2209
      %2213 = vset.pattern.permute.xlu0 3
      %2214 = vperm.xlu0 %2213, %v2136
      %v2215 = vpop.permute.xlu0 %2214
      %v2217 = vmul.f32 %v47, %v2140
      %v2218 = vmul.f32 %v48, %v2145
      %v2219 = vmul.f32 %v49, %v2150
      %v2220 = vmul.f32 %v50, %v2155
      %v2221 = vmul.f32 %v51, %v2160
      %v2222 = vmul.f32 %v52, %v2165
      %v2223 = vmul.f32 %v53, %v2170
      %v2224 = vmul.f32 %v54, %v2175
      %v2225 = vmul.f32 %v55, %v2180
      %v2226 = vmul.f32 %v56, %v2185
      %v2227 = vmul.f32 %v57, %v2190
      %v2228 = vmul.f32 %v58, %v2195
      %v2229 = vmul.f32 %v59, %v2200
      %v2230 = vmul.f32 %v60, %v2205
      %v2231 = vmul.f32 %v61, %v2210
      %v2232 = vmul.f32 %v62, %v2215
      %v2233 = vsub.f32 %v2217, %v2121
      %v2234 = vsub.f32 %v2218, %v2122
      %v2235 = vsub.f32 %v2219, %v2123
      %v2236 = vsub.f32 %v2220, %v2124
      %v2237 = vsub.f32 %v2221, %v2125
      %v2238 = vsub.f32 %v2222, %v2126
      %v2239 = vsub.f32 %v2223, %v2127
      %v2240 = vsub.f32 %v2224, %v2128
      %v2241 = vsub.f32 %v2225, %v2129
      %v2242 = vsub.f32 %v2226, %v2130
      %v2243 = vsub.f32 %v2227, %v2131
      %v2244 = vsub.f32 %v2228, %v2132
      %v2245 = vsub.f32 %v2229, %v2133
      %v2246 = vsub.f32 %v2230, %v2134
      %v2247 = vsub.f32 %v2231, %v2135
      %v2248 = vsub.f32 %v2232, %v2136
      %v2249 = vmul.f32 %v2233, 2.0
      %v2250 = vmul.f32 %v2234, 2.0
      %v2251 = vmul.f32 %v2235, 2.0
      %v2252 = vmul.f32 %v2236, 2.0
      %v2253 = vmul.f32 %v2237, 2.0
      %v2254 = vmul.f32 %v2238, 2.0
      %v2255 = vmul.f32 %v2239, 2.0
      %v2256 = vmul.f32 %v2240, 2.0
      %v2257 = vmul.f32 %v2241, 2.0
      %v2258 = vmul.f32 %v2242, 2.0
      %v2259 = vmul.f32 %v2243, 2.0
      %v2260 = vmul.f32 %v2244, 2.0
      %v2261 = vmul.f32 %v2245, 2.0
      %v2262 = vmul.f32 %v2246, 2.0
      %v2263 = vmul.f32 %v2247, 2.0
      %v2264 = vmul.f32 %v2248, 2.0
      %vm2265 = vcmask 23552
      %2266 = vst.msk [vmem:[%s4] sm:$0xff] %vm2265, %v2249
      %2267 = vst.msk [vmem:[%s4 + $0x8] sm:$0xff] %vm2265, %v2250
      %2268 = vst.msk [vmem:[%s4 + $0x10] sm:$0xff] %vm2265, %v2251
      %2269 = vst.msk [vmem:[%s4 + $0x18] sm:$0xff] %vm2265, %v2252
      %2270 = vst.msk [vmem:[%s4 + $0x20] sm:$0xff] %vm2265, %v2253
      %2271 = vst.msk [vmem:[%s4 + $0x28] sm:$0xff] %vm2265, %v2254
      %2272 = vst.msk [vmem:[%s4 + $0x30] sm:$0xff] %vm2265, %v2255
      %2273 = vst.msk [vmem:[%s4 + $0x38] sm:$0xff] %vm2265, %v2256
      %2274 = vst.msk [vmem:[%s4 + $0x40] sm:$0xff] %vm2265, %v2257
      %2275 = vst.msk [vmem:[%s4 + $0x48] sm:$0xff] %vm2265, %v2258
      %2276 = vst.msk [vmem:[%s4 + $0x50] sm:$0xff] %vm2265, %v2259
      %2277 = vst.msk [vmem:[%s4 + $0x58] sm:$0xff] %vm2265, %v2260
      %2278 = vst.msk [vmem:[%s4 + $0x60] sm:$0xff] %vm2265, %v2261
      %2279 = vst.msk [vmem:[%s4 + $0x68] sm:$0xff] %vm2265, %v2262
      %2280 = vst.msk [vmem:[%s4 + $0x70] sm:$0xff] %vm2265, %v2263
      %2281 = vst.msk [vmem:[%s4 + $0x78] sm:$0xff] %vm2265, %v2264
      %2282 = vmatprep.subr.mxu0 0.0
      %v2283 = vand.u32 %v2217, 4294901760
      %2284 = vmatpush1.msra.mxu0 %v2283
      %2285 = vmatprep.subr.mxu0 0.0
      %v2286 = vand.u32 %v2218, 4294901760
      %2287 = vmatpush1.msra.mxu0 %v2286
      %2288 = vmatprep.subr.mxu0 0.0
      %v2289 = vand.u32 %v2219, 4294901760
      %2290 = vmatpush1.msra.mxu0 %v2289
      %2291 = vmatprep.subr.mxu0 0.0
      %v2292 = vand.u32 %v2220, 4294901760
      %2293 = vmatpush1.msra.mxu0 %v2292
      %2294 = vmatprep.subr.mxu0 0.0
      %v2295 = vand.u32 %v2221, 4294901760
      %2296 = vmatpush1.msra.mxu0 %v2295
      %2297 = vmatprep.subr.mxu0 0.0
      %v2298 = vand.u32 %v2222, 4294901760
      %2299 = vmatpush1.msra.mxu0 %v2298
      %2300 = vmatprep.subr.mxu0 0.0
      %v2301 = vand.u32 %v2223, 4294901760
      %2302 = vmatpush1.msra.mxu0 %v2301
      %2303 = vmatprep.subr.mxu0 0.0
      %v2304 = vand.u32 %v2224, 4294901760
      %2305 = vmatpush1.msra.mxu0 %v2304
      %2306 = vmatprep.subr.mxu0 0.0
      %v2307 = vand.u32 %v2225, 4294901760
      %2308 = vmatpush1.msra.mxu0 %v2307
      %2309 = vmatprep.subr.mxu0 0.0
      %v2310 = vand.u32 %v2226, 4294901760
      %2311 = vmatpush1.msra.mxu0 %v2310
      %2312 = vmatprep.subr.mxu0 0.0
      %v2313 = vand.u32 %v2227, 4294901760
      %2314 = vmatpush1.msra.mxu0 %v2313
      %2315 = vmatprep.subr.mxu0 0.0
      %v2316 = vand.u32 %v2228, 4294901760
      %2317 = vmatpush1.msra.mxu0 %v2316
      %2318 = vmatprep.subr.mxu0 0.0
      %v2319 = vand.u32 %v2229, 4294901760
      %2320 = vmatpush1.msra.mxu0 %v2319
      %2321 = vmatprep.subr.mxu0 0.0
      %v2322 = vand.u32 %v2230, 4294901760
      %2323 = vmatpush1.msra.mxu0 %v2322
      %2324 = vmatprep.subr.mxu0 0.0
      %v2325 = vand.u32 %v2231, 4294901760
      %2326 = vmatpush1.msra.mxu0 %v2325
      %2327 = vmatprep.subr.mxu0 0.0
      %v2328 = vand.u32 %v2232, 4294901760
      %2329 = vmatpush1.msra.mxu0 %v2328
      %2330 = vmatprep.subr.mxu0 0.0
      %2331 = vmatpush1.msra.mxu0 0.0
      %2332 = vmatprep.subr.mxu0 0.0
      %2333 = vmatpush1.msra.mxu0 0.0
      %2334 = vmatprep.subr.mxu0 0.0
      %2335 = vmatpush1.msra.mxu0 0.0
      %2336 = vmatprep.subr.mxu0 0.0
      %2337 = vmatpush1.msra.mxu0 0.0
      %2338 = vmatprep.subr.mxu0 0.0
      %2339 = vmatpush1.msra.mxu0 0.0
      %2340 = vmatprep.subr.mxu0 0.0
      %2341 = vmatpush1.msra.mxu0 0.0
      %2342 = vmatprep.subr.mxu0 0.0
      %2343 = vmatpush1.msra.mxu0 0.0
      %2344 = vmatprep.subr.mxu0 0.0
      %2345 = vmatpush1.msra.mxu0 0.0
      %2346 = vmatprep.subr.mxu0 0.0
      %2347 = vmatpush1.msra.mxu0 0.0
      %2348 = vmatprep.subr.mxu0 0.0
      %2349 = vmatpush1.msra.mxu0 0.0
      %2350 = vmatprep.subr.mxu0 0.0
      %2351 = vmatpush1.msra.mxu0 0.0
      %2352 = vmatprep.subr.mxu0 0.0
      %2353 = vmatpush1.msra.mxu0 0.0
      %2354 = vmatprep.subr.mxu0 0.0
      %2355 = vmatpush1.msra.mxu0 0.0
      %2356 = vmatprep.subr.mxu0 0.0
      %2357 = vmatpush1.msra.mxu0 0.0
      %2358 = vmatprep.subr.mxu0 0.0
      %2359 = vmatpush1.msra.mxu0 0.0
      %2360 = vmatprep.subr.mxu0 0.0
      %2361 = vmatpush1.msra.mxu0 0.0
      %2362 = vmatprep.mubr.f32.mxu0 0.0
      %v2363 = vand.u32 %v2120, 4294901760
      %v2364 = vsub.f32 %v2120, %v2363
      %v2365 = vand.u32 %v2364, 4294901760
      %v2366 = vsub.f32 %v2364, %v2365
      %v2367 = vand.u32 %v2366, 4294901760
      %2368 = vmatmul.mubr.f32.gmra.mrb[0].mxu0 %v2367
      %v2369 = vpop.f32.mrb[0].mxu0
      %v2370 = vadd.f32 0.0, %v2369
      %v2371 = vpop.f32.mrb[0].mxu0
      %2372 = vdwg.mxu0
      %2373 = vmatprep.subr.mxu0 0.0
      %v2374 = vand.u32 %v2217, 4294901760
      %v2375 = vsub.f32 %v2217, %v2374
      %v2376 = vand.u32 %v2375, 4294901760
      %v2377 = vsub.f32 %v2375, %v2376
      %v2378 = vand.u32 %v2377, 4294901760
      %2379 = vmatpush1.msra.mxu0 %v2378
      %2380 = vmatprep.subr.mxu0 0.0
      %v2381 = vand.u32 %v2218, 4294901760
      %v2382 = vsub.f32 %v2218, %v2381
      %v2383 = vand.u32 %v2382, 4294901760
      %v2384 = vsub.f32 %v2382, %v2383
      %v2385 = vand.u32 %v2384, 4294901760
      %2386 = vmatpush1.msra.mxu0 %v2385
      %2387 = vmatprep.subr.mxu0 0.0
      %v2388 = vand.u32 %v2219, 4294901760
      %v2389 = vsub.f32 %v2219, %v2388
      %v2390 = vand.u32 %v2389, 4294901760
      %v2391 = vsub.f32 %v2389, %v2390
      %v2392 = vand.u32 %v2391, 4294901760
      %2393 = vmatpush1.msra.mxu0 %v2392
      %2394 = vmatprep.subr.mxu0 0.0
      %v2395 = vand.u32 %v2220, 4294901760
      %v2396 = vsub.f32 %v2220, %v2395
      %v2397 = vand.u32 %v2396, 4294901760
      %v2398 = vsub.f32 %v2396, %v2397
      %v2399 = vand.u32 %v2398, 4294901760
      %2400 = vmatpush1.msra.mxu0 %v2399
      %2401 = vmatprep.subr.mxu0 0.0
      %v2402 = vand.u32 %v2221, 4294901760
      %v2403 = vsub.f32 %v2221, %v2402
      %v2404 = vand.u32 %v2403, 4294901760
      %v2405 = vsub.f32 %v2403, %v2404
      %v2406 = vand.u32 %v2405, 4294901760
      %2407 = vmatpush1.msra.mxu0 %v2406
      %2408 = vmatprep.subr.mxu0 0.0
      %v2409 = vand.u32 %v2222, 4294901760
      %v2410 = vsub.f32 %v2222, %v2409
      %v2411 = vand.u32 %v2410, 4294901760
      %v2412 = vsub.f32 %v2410, %v2411
      %v2413 = vand.u32 %v2412, 4294901760
      %2414 = vmatpush1.msra.mxu0 %v2413
      %2415 = vmatprep.subr.mxu0 0.0
      %v2416 = vand.u32 %v2223, 4294901760
      %v2417 = vsub.f32 %v2223, %v2416
      %v2418 = vand.u32 %v2417, 4294901760
      %v2419 = vsub.f32 %v2417, %v2418
      %v2420 = vand.u32 %v2419, 4294901760
      %2421 = vmatpush1.msra.mxu0 %v2420
      %2422 = vmatprep.subr.mxu0 0.0
      %v2423 = vand.u32 %v2224, 4294901760
      %v2424 = vsub.f32 %v2224, %v2423
      %v2425 = vand.u32 %v2424, 4294901760
      %v2426 = vsub.f32 %v2424, %v2425
      %v2427 = vand.u32 %v2426, 4294901760
      %2428 = vmatpush1.msra.mxu0 %v2427
      %2429 = vmatprep.subr.mxu0 0.0
      %v2430 = vand.u32 %v2225, 4294901760
      %v2431 = vsub.f32 %v2225, %v2430
      %v2432 = vand.u32 %v2431, 4294901760
      %v2433 = vsub.f32 %v2431, %v2432
      %v2434 = vand.u32 %v2433, 4294901760
      %2435 = vmatpush1.msra.mxu0 %v2434
      %2436 = vmatprep.subr.mxu0 0.0
      %v2437 = vand.u32 %v2226, 4294901760
      %v2438 = vsub.f32 %v2226, %v2437
      %v2439 = vand.u32 %v2438, 4294901760
      %v2440 = vsub.f32 %v2438, %v2439
      %v2441 = vand.u32 %v2440, 4294901760
      %2442 = vmatpush1.msra.mxu0 %v2441
      %2443 = vmatprep.subr.mxu0 0.0
      %v2444 = vand.u32 %v2227, 4294901760
      %v2445 = vsub.f32 %v2227, %v2444
      %v2446 = vand.u32 %v2445, 4294901760
      %v2447 = vsub.f32 %v2445, %v2446
      %v2448 = vand.u32 %v2447, 4294901760
      %2449 = vmatpush1.msra.mxu0 %v2448
      %2450 = vmatprep.subr.mxu0 0.0
      %v2451 = vand.u32 %v2228, 4294901760
      %v2452 = vsub.f32 %v2228, %v2451
      %v2453 = vand.u32 %v2452, 4294901760
      %v2454 = vsub.f32 %v2452, %v2453
      %v2455 = vand.u32 %v2454, 4294901760
      %2456 = vmatpush1.msra.mxu0 %v2455
      %2457 = vmatprep.subr.mxu0 0.0
      %v2458 = vand.u32 %v2229, 4294901760
      %v2459 = vsub.f32 %v2229, %v2458
      %v2460 = vand.u32 %v2459, 4294901760
      %v2461 = vsub.f32 %v2459, %v2460
      %v2462 = vand.u32 %v2461, 4294901760
      %2463 = vmatpush1.msra.mxu0 %v2462
      %2464 = vmatprep.subr.mxu0 0.0
      %v2465 = vand.u32 %v2230, 4294901760
      %v2466 = vsub.f32 %v2230, %v2465
      %v2467 = vand.u32 %v2466, 4294901760
      %v2468 = vsub.f32 %v2466, %v2467
      %v2469 = vand.u32 %v2468, 4294901760
      %2470 = vmatpush1.msra.mxu0 %v2469
      %2471 = vmatprep.subr.mxu0 0.0
      %v2472 = vand.u32 %v2231, 4294901760
      %v2473 = vsub.f32 %v2231, %v2472
      %v2474 = vand.u32 %v2473, 4294901760
      %v2475 = vsub.f32 %v2473, %v2474
      %v2476 = vand.u32 %v2475, 4294901760
      %2477 = vmatpush1.msra.mxu0 %v2476
      %2478 = vmatprep.subr.mxu0 0.0
      %v2479 = vand.u32 %v2232, 4294901760
      %v2480 = vsub.f32 %v2232, %v2479
      %v2481 = vand.u32 %v2480, 4294901760
      %v2482 = vsub.f32 %v2480, %v2481
      %v2483 = vand.u32 %v2482, 4294901760
      %2484 = vmatpush1.msra.mxu0 %v2483
      %2485 = vmatprep.subr.mxu0 0.0
      %2486 = vmatpush1.msra.mxu0 0.0
      %2487 = vmatprep.subr.mxu0 0.0
      %2488 = vmatpush1.msra.mxu0 0.0
      %2489 = vmatprep.subr.mxu0 0.0
      %2490 = vmatpush1.msra.mxu0 0.0
      %2491 = vmatprep.subr.mxu0 0.0
      %2492 = vmatpush1.msra.mxu0 0.0
      %2493 = vmatprep.subr.mxu0 0.0
      %2494 = vmatpush1.msra.mxu0 0.0
      %2495 = vmatprep.subr.mxu0 0.0
      %2496 = vmatpush1.msra.mxu0 0.0
      %2497 = vmatprep.subr.mxu0 0.0
      %2498 = vmatpush1.msra.mxu0 0.0
      %2499 = vmatprep.subr.mxu0 0.0
      %2500 = vmatpush1.msra.mxu0 0.0
      %2501 = vmatprep.subr.mxu0 0.0
      %2502 = vmatpush1.msra.mxu0 0.0
      %2503 = vmatprep.subr.mxu0 0.0
      %2504 = vmatpush1.msra.mxu0 0.0
      %2505 = vmatprep.subr.mxu0 0.0
      %2506 = vmatpush1.msra.mxu0 0.0
      %2507 = vmatprep.subr.mxu0 0.0
      %2508 = vmatpush1.msra.mxu0 0.0
      %2509 = vmatprep.subr.mxu0 0.0
      %2510 = vmatpush1.msra.mxu0 0.0
      %2511 = vmatprep.subr.mxu0 0.0
      %2512 = vmatpush1.msra.mxu0 0.0
      %2513 = vmatprep.subr.mxu0 0.0
      %2514 = vmatpush1.msra.mxu0 0.0
      %2515 = vmatprep.subr.mxu0 0.0
      %2516 = vmatpush1.msra.mxu0 0.0
      %2517 = vmatprep.mubr.f32.mxu0 0.0
      %v2518 = vand.u32 %v2120, 4294901760
      %2519 = vmatmul.mubr.f32.gmra.mrb[0].mxu0 %v2518
      %v2520 = vpop.f32.mrb[0].mxu0
      %v2521 = vadd.f32 %v2370, %v2520
      %v2522 = vpop.f32.mrb[0].mxu0
      %2523 = vdwg.mxu0
      %2524 = vmatprep.subr.mxu0 0.0
      %v2525 = vand.u32 %v2217, 4294901760
      %v2526 = vsub.f32 %v2217, %v2525
      %2527 = vmatpush1.msra.mxu0 %v2526
      %2528 = vmatprep.subr.mxu0 0.0
      %v2529 = vand.u32 %v2218, 4294901760
      %v2530 = vsub.f32 %v2218, %v2529
      %2531 = vmatpush1.msra.mxu0 %v2530
      %2532 = vmatprep.subr.mxu0 0.0
      %v2533 = vand.u32 %v2219, 4294901760
      %v2534 = vsub.f32 %v2219, %v2533
      %2535 = vmatpush1.msra.mxu0 %v2534
      %2536 = vmatprep.subr.mxu0 0.0
      %v2537 = vand.u32 %v2220, 4294901760
      %v2538 = vsub.f32 %v2220, %v2537
      %2539 = vmatpush1.msra.mxu0 %v2538
      %2540 = vmatprep.subr.mxu0 0.0
      %v2541 = vand.u32 %v2221, 4294901760
      %v2542 = vsub.f32 %v2221, %v2541
      %2543 = vmatpush1.msra.mxu0 %v2542
      %2544 = vmatprep.subr.mxu0 0.0
      %v2545 = vand.u32 %v2222, 4294901760
      %v2546 = vsub.f32 %v2222, %v2545
      %2547 = vmatpush1.msra.mxu0 %v2546
      %2548 = vmatprep.subr.mxu0 0.0
      %v2549 = vand.u32 %v2223, 4294901760
      %v2550 = vsub.f32 %v2223, %v2549
      %2551 = vmatpush1.msra.mxu0 %v2550
      %2552 = vmatprep.subr.mxu0 0.0
      %v2553 = vand.u32 %v2224, 4294901760
      %v2554 = vsub.f32 %v2224, %v2553
      %2555 = vmatpush1.msra.mxu0 %v2554
      %2556 = vmatprep.subr.mxu0 0.0
      %v2557 = vand.u32 %v2225, 4294901760
      %v2558 = vsub.f32 %v2225, %v2557
      %2559 = vmatpush1.msra.mxu0 %v2558
      %2560 = vmatprep.subr.mxu0 0.0
      %v2561 = vand.u32 %v2226, 4294901760
      %v2562 = vsub.f32 %v2226, %v2561
      %2563 = vmatpush1.msra.mxu0 %v2562
      %2564 = vmatprep.subr.mxu0 0.0
      %v2565 = vand.u32 %v2227, 4294901760
      %v2566 = vsub.f32 %v2227, %v2565
      %2567 = vmatpush1.msra.mxu0 %v2566
      %2568 = vmatprep.subr.mxu0 0.0
      %v2569 = vand.u32 %v2228, 4294901760
      %v2570 = vsub.f32 %v2228, %v2569
      %2571 = vmatpush1.msra.mxu0 %v2570
      %2572 = vmatprep.subr.mxu0 0.0
      %v2573 = vand.u32 %v2229, 4294901760
      %v2574 = vsub.f32 %v2229, %v2573
      %2575 = vmatpush1.msra.mxu0 %v2574
      %2576 = vmatprep.subr.mxu0 0.0
      %v2577 = vand.u32 %v2230, 4294901760
      %v2578 = vsub.f32 %v2230, %v2577
      %2579 = vmatpush1.msra.mxu0 %v2578
      %2580 = vmatprep.subr.mxu0 0.0
      %v2581 = vand.u32 %v2231, 4294901760
      %v2582 = vsub.f32 %v2231, %v2581
      %2583 = vmatpush1.msra.mxu0 %v2582
      %2584 = vmatprep.subr.mxu0 0.0
      %v2585 = vand.u32 %v2232, 4294901760
      %v2586 = vsub.f32 %v2232, %v2585
      %2587 = vmatpush1.msra.mxu0 %v2586
      %2588 = vmatprep.subr.mxu0 0.0
      %2589 = vmatpush1.msra.mxu0 0.0
      %2590 = vmatprep.subr.mxu0 0.0
      %2591 = vmatpush1.msra.mxu0 0.0
      %2592 = vmatprep.subr.mxu0 0.0
      %2593 = vmatpush1.msra.mxu0 0.0
      %2594 = vmatprep.subr.mxu0 0.0
      %2595 = vmatpush1.msra.mxu0 0.0
      %2596 = vmatprep.subr.mxu0 0.0
      %2597 = vmatpush1.msra.mxu0 0.0
      %2598 = vmatprep.subr.mxu0 0.0
      %2599 = vmatpush1.msra.mxu0 0.0
      %2600 = vmatprep.subr.mxu0 0.0
      %2601 = vmatpush1.msra.mxu0 0.0
      %2602 = vmatprep.subr.mxu0 0.0
      %2603 = vmatpush1.msra.mxu0 0.0
      %2604 = vmatprep.subr.mxu0 0.0
      %2605 = vmatpush1.msra.mxu0 0.0
      %2606 = vmatprep.subr.mxu0 0.0
      %2607 = vmatpush1.msra.mxu0 0.0
      %2608 = vmatprep.subr.mxu0 0.0
      %2609 = vmatpush1.msra.mxu0 0.0
      %2610 = vmatprep.subr.mxu0 0.0
      %2611 = vmatpush1.msra.mxu0 0.0
      %2612 = vmatprep.subr.mxu0 0.0
      %2613 = vmatpush1.msra.mxu0 0.0
      %2614 = vmatprep.subr.mxu0 0.0
      %2615 = vmatpush1.msra.mxu0 0.0
      %2616 = vmatprep.subr.mxu0 0.0
      %2617 = vmatpush1.msra.mxu0 0.0
      %2618 = vmatprep.subr.mxu0 0.0
      %2619 = vmatpush1.msra.mxu0 0.0
      %2620 = vmatprep.mubr.f32.mxu0 0.0
      %v2621 = vand.u32 %v2120, 4294901760
      %v2622 = vsub.f32 %v2120, %v2621
      %2623 = vmatmul.mubr.f32.gmra.mrb[0].mxu0 %v2622
      %v2624 = vpop.f32.mrb[0].mxu0
      %v2625 = vadd.f32 %v2521, %v2624
      %v2626 = vpop.f32.mrb[0].mxu0
      %2627 = vdwg.mxu0
      %2628 = vmatprep.subr.mxu0 0.0
      %v2629 = vand.u32 %v2217, 4294901760
      %2630 = vmatpush1.msra.mxu0 %v2629
      %2631 = vmatprep.subr.mxu0 0.0
      %v2632 = vand.u32 %v2218, 4294901760
      %2633 = vmatpush1.msra.mxu0 %v2632
      %2634 = vmatprep.subr.mxu0 0.0
      %v2635 = vand.u32 %v2219, 4294901760
      %2636 = vmatpush1.msra.mxu0 %v2635
      %2637 = vmatprep.subr.mxu0 0.0
      %v2638 = vand.u32 %v2220, 4294901760
      %2639 = vmatpush1.msra.mxu0 %v2638
      %2640 = vmatprep.subr.mxu0 0.0
      %v2641 = vand.u32 %v2221, 4294901760
      %2642 = vmatpush1.msra.mxu0 %v2641
      %2643 = vmatprep.subr.mxu0 0.0
      %v2644 = vand.u32 %v2222, 4294901760
      %2645 = vmatpush1.msra.mxu0 %v2644
      %2646 = vmatprep.subr.mxu0 0.0
      %v2647 = vand.u32 %v2223, 4294901760
      %2648 = vmatpush1.msra.mxu0 %v2647
      %2649 = vmatprep.subr.mxu0 0.0
      %v2650 = vand.u32 %v2224, 4294901760
      %2651 = vmatpush1.msra.mxu0 %v2650
      %2652 = vmatprep.subr.mxu0 0.0
      %v2653 = vand.u32 %v2225, 4294901760
      %2654 = vmatpush1.msra.mxu0 %v2653
      %2655 = vmatprep.subr.mxu0 0.0
      %v2656 = vand.u32 %v2226, 4294901760
      %2657 = vmatpush1.msra.mxu0 %v2656
      %2658 = vmatprep.subr.mxu0 0.0
      %v2659 = vand.u32 %v2227, 4294901760
      %2660 = vmatpush1.msra.mxu0 %v2659
      %2661 = vmatprep.subr.mxu0 0.0
      %v2662 = vand.u32 %v2228, 4294901760
      %2663 = vmatpush1.msra.mxu0 %v2662
      %2664 = vmatprep.subr.mxu0 0.0
      %v2665 = vand.u32 %v2229, 4294901760
      %2666 = vmatpush1.msra.mxu0 %v2665
      %2667 = vmatprep.subr.mxu0 0.0
      %v2668 = vand.u32 %v2230, 4294901760
      %2669 = vmatpush1.msra.mxu0 %v2668
      %2670 = vmatprep.subr.mxu0 0.0
      %v2671 = vand.u32 %v2231, 4294901760
      %2672 = vmatpush1.msra.mxu0 %v2671
      %2673 = vmatprep.subr.mxu0 0.0
      %v2674 = vand.u32 %v2232, 4294901760
      %2675 = vmatpush1.msra.mxu0 %v2674
      %2676 = vmatprep.subr.mxu0 0.0
      %2677 = vmatpush1.msra.mxu0 0.0
      %2678 = vmatprep.subr.mxu0 0.0
      %2679 = vmatpush1.msra.mxu0 0.0
      %2680 = vmatprep.subr.mxu0 0.0
      %2681 = vmatpush1.msra.mxu0 0.0
      %2682 = vmatprep.subr.mxu0 0.0
      %2683 = vmatpush1.msra.mxu0 0.0
      %2684 = vmatprep.subr.mxu0 0.0
      %2685 = vmatpush1.msra.mxu0 0.0
      %2686 = vmatprep.subr.mxu0 0.0
      %2687 = vmatpush1.msra.mxu0 0.0
      %2688 = vmatprep.subr.mxu0 0.0
      %2689 = vmatpush1.msra.mxu0 0.0
      %2690 = vmatprep.subr.mxu0 0.0
      %2691 = vmatpush1.msra.mxu0 0.0
      %2692 = vmatprep.subr.mxu0 0.0
      %2693 = vmatpush1.msra.mxu0 0.0
      %2694 = vmatprep.subr.mxu0 0.0
      %2695 = vmatpush1.msra.mxu0 0.0
      %2696 = vmatprep.subr.mxu0 0.0
      %2697 = vmatpush1.msra.mxu0 0.0
      %2698 = vmatprep.subr.mxu0 0.0
      %2699 = vmatpush1.msra.mxu0 0.0
      %2700 = vmatprep.subr.mxu0 0.0
      %2701 = vmatpush1.msra.mxu0 0.0
      %2702 = vmatprep.subr.mxu0 0.0
      %2703 = vmatpush1.msra.mxu0 0.0
      %2704 = vmatprep.subr.mxu0 0.0
      %2705 = vmatpush1.msra.mxu0 0.0
      %2706 = vmatprep.subr.mxu0 0.0
      %2707 = vmatpush1.msra.mxu0 0.0
      %2708 = vmatprep.mubr.f32.mxu0 0.0
      %v2709 = vand.u32 %v2120, 4294901760
      %v2710 = vsub.f32 %v2120, %v2709
      %v2711 = vand.u32 %v2710, 4294901760
      %2712 = vmatmul.mubr.f32.gmra.mrb[0].mxu0 %v2711
      %v2713 = vpop.f32.mrb[0].mxu0
      %v2714 = vadd.f32 %v2625, %v2713
      %v2715 = vpop.f32.mrb[0].mxu0
      %2716 = vdwg.mxu0
      %2717 = vmatprep.subr.mxu0 0.0
      %v2718 = vand.u32 %v2217, 4294901760
      %v2719 = vsub.f32 %v2217, %v2718
      %v2720 = vand.u32 %v2719, 4294901760
      %2721 = vmatpush1.msra.mxu0 %v2720
      %2722 = vmatprep.subr.mxu0 0.0
      %v2723 = vand.u32 %v2218, 4294901760
      %v2724 = vsub.f32 %v2218, %v2723
      %v2725 = vand.u32 %v2724, 4294901760
      %2726 = vmatpush1.msra.mxu0 %v2725
      %2727 = vmatprep.subr.mxu0 0.0
      %v2728 = vand.u32 %v2219, 4294901760
      %v2729 = vsub.f32 %v2219, %v2728
      %v2730 = vand.u32 %v2729, 4294901760
      %2731 = vmatpush1.msra.mxu0 %v2730
      %2732 = vmatprep.subr.mxu0 0.0
      %v2733 = vand.u32 %v2220, 4294901760
      %v2734 = vsub.f32 %v2220, %v2733
      %v2735 = vand.u32 %v2734, 4294901760
      %2736 = vmatpush1.msra.mxu0 %v2735
      %2737 = vmatprep.subr.mxu0 0.0
      %v2738 = vand.u32 %v2221, 4294901760
      %v2739 = vsub.f32 %v2221, %v2738
      %v2740 = vand.u32 %v2739, 4294901760
      %2741 = vmatpush1.msra.mxu0 %v2740
      %2742 = vmatprep.subr.mxu0 0.0
      %v2743 = vand.u32 %v2222, 4294901760
      %v2744 = vsub.f32 %v2222, %v2743
      %v2745 = vand.u32 %v2744, 4294901760
      %2746 = vmatpush1.msra.mxu0 %v2745
      %2747 = vmatprep.subr.mxu0 0.0
      %v2748 = vand.u32 %v2223, 4294901760
      %v2749 = vsub.f32 %v2223, %v2748
      %v2750 = vand.u32 %v2749, 4294901760
      %2751 = vmatpush1.msra.mxu0 %v2750
      %2752 = vmatprep.subr.mxu0 0.0
      %v2753 = vand.u32 %v2224, 4294901760
      %v2754 = vsub.f32 %v2224, %v2753
      %v2755 = vand.u32 %v2754, 4294901760
      %2756 = vmatpush1.msra.mxu0 %v2755
      %2757 = vmatprep.subr.mxu0 0.0
      %v2758 = vand.u32 %v2225, 4294901760
      %v2759 = vsub.f32 %v2225, %v2758
      %v2760 = vand.u32 %v2759, 4294901760
      %2761 = vmatpush1.msra.mxu0 %v2760
      %2762 = vmatprep.subr.mxu0 0.0
      %v2763 = vand.u32 %v2226, 4294901760
      %v2764 = vsub.f32 %v2226, %v2763
      %v2765 = vand.u32 %v2764, 4294901760
      %2766 = vmatpush1.msra.mxu0 %v2765
      %2767 = vmatprep.subr.mxu0 0.0
      %v2768 = vand.u32 %v2227, 4294901760
      %v2769 = vsub.f32 %v2227, %v2768
      %v2770 = vand.u32 %v2769, 4294901760
      %2771 = vmatpush1.msra.mxu0 %v2770
      %2772 = vmatprep.subr.mxu0 0.0
      %v2773 = vand.u32 %v2228, 4294901760
      %v2774 = vsub.f32 %v2228, %v2773
      %v2775 = vand.u32 %v2774, 4294901760
      %2776 = vmatpush1.msra.mxu0 %v2775
      %2777 = vmatprep.subr.mxu0 0.0
      %v2778 = vand.u32 %v2229, 4294901760
      %v2779 = vsub.f32 %v2229, %v2778
      %v2780 = vand.u32 %v2779, 4294901760
      %2781 = vmatpush1.msra.mxu0 %v2780
      %2782 = vmatprep.subr.mxu0 0.0
      %v2783 = vand.u32 %v2230, 4294901760
      %v2784 = vsub.f32 %v2230, %v2783
      %v2785 = vand.u32 %v2784, 4294901760
      %2786 = vmatpush1.msra.mxu0 %v2785
      %2787 = vmatprep.subr.mxu0 0.0
      %v2788 = vand.u32 %v2231, 4294901760
      %v2789 = vsub.f32 %v2231, %v2788
      %v2790 = vand.u32 %v2789, 4294901760
      %2791 = vmatpush1.msra.mxu0 %v2790
      %2792 = vmatprep.subr.mxu0 0.0
      %v2793 = vand.u32 %v2232, 4294901760
      %v2794 = vsub.f32 %v2232, %v2793
      %v2795 = vand.u32 %v2794, 4294901760
      %2796 = vmatpush1.msra.mxu0 %v2795
      %2797 = vmatprep.subr.mxu0 0.0
      %2798 = vmatpush1.msra.mxu0 0.0
      %2799 = vmatprep.subr.mxu0 0.0
      %2800 = vmatpush1.msra.mxu0 0.0
      %2801 = vmatprep.subr.mxu0 0.0
      %2802 = vmatpush1.msra.mxu0 0.0
      %2803 = vmatprep.subr.mxu0 0.0
      %2804 = vmatpush1.msra.mxu0 0.0
      %2805 = vmatprep.subr.mxu0 0.0
      %2806 = vmatpush1.msra.mxu0 0.0
      %2807 = vmatprep.subr.mxu0 0.0
      %2808 = vmatpush1.msra.mxu0 0.0
      %2809 = vmatprep.subr.mxu0 0.0
      %2810 = vmatpush1.msra.mxu0 0.0
      %2811 = vmatprep.subr.mxu0 0.0
      %2812 = vmatpush1.msra.mxu0 0.0
      %2813 = vmatprep.subr.mxu0 0.0
      %2814 = vmatpush1.msra.mxu0 0.0
      %2815 = vmatprep.subr.mxu0 0.0
      %2816 = vmatpush1.msra.mxu0 0.0
      %2817 = vmatprep.subr.mxu0 0.0
      %2818 = vmatpush1.msra.mxu0 0.0
      %2819 = vmatprep.subr.mxu0 0.0
      %2820 = vmatpush1.msra.mxu0 0.0
      %2821 = vmatprep.subr.mxu0 0.0
      %2822 = vmatpush1.msra.mxu0 0.0
      %2823 = vmatprep.subr.mxu0 0.0
      %2824 = vmatpush1.msra.mxu0 0.0
      %2825 = vmatprep.subr.mxu0 0.0
      %2826 = vmatpush1.msra.mxu0 0.0
      %2827 = vmatprep.subr.mxu0 0.0
      %2828 = vmatpush1.msra.mxu0 0.0
      %2829 = vmatprep.mubr.f32.mxu0 0.0
      %v2830 = vand.u32 %v2120, 4294901760
      %2831 = vmatmul.mubr.f32.gmra.mrb[0].mxu0 %v2830
      %v2832 = vpop.f32.mrb[0].mxu0
      %v2833 = vadd.f32 %v2714, %v2832
      %v2834 = vpop.f32.mrb[0].mxu0
      %2835 = vdwg.mxu0
      %2836 = vmatprep.subr.mxu0 0.0
      %v2837 = vand.u32 %v2217, 4294901760
      %2838 = vmatpush1.msra.mxu0 %v2837
      %2839 = vmatprep.subr.mxu0 0.0
      %v2840 = vand.u32 %v2218, 4294901760
      %2841 = vmatpush1.msra.mxu0 %v2840
      %2842 = vmatprep.subr.mxu0 0.0
      %v2843 = vand.u32 %v2219, 4294901760
      %2844 = vmatpush1.msra.mxu0 %v2843
      %2845 = vmatprep.subr.mxu0 0.0
      %v2846 = vand.u32 %v2220, 4294901760
      %2847 = vmatpush1.msra.mxu0 %v2846
      %2848 = vmatprep.subr.mxu0 0.0
      %v2849 = vand.u32 %v2221, 4294901760
      %2850 = vmatpush1.msra.mxu0 %v2849
      %2851 = vmatprep.subr.mxu0 0.0
      %v2852 = vand.u32 %v2222, 4294901760
      %2853 = vmatpush1.msra.mxu0 %v2852
      %2854 = vmatprep.subr.mxu0 0.0
      %v2855 = vand.u32 %v2223, 4294901760
      %2856 = vmatpush1.msra.mxu0 %v2855
      %2857 = vmatprep.subr.mxu0 0.0
      %v2858 = vand.u32 %v2224, 4294901760
      %2859 = vmatpush1.msra.mxu0 %v2858
      %2860 = vmatprep.subr.mxu0 0.0
      %v2861 = vand.u32 %v2225, 4294901760
      %2862 = vmatpush1.msra.mxu0 %v2861
      %2863 = vmatprep.subr.mxu0 0.0
      %v2864 = vand.u32 %v2226, 4294901760
      %2865 = vmatpush1.msra.mxu0 %v2864
      %2866 = vmatprep.subr.mxu0 0.0
      %v2867 = vand.u32 %v2227, 4294901760
      %2868 = vmatpush1.msra.mxu0 %v2867
      %2869 = vmatprep.subr.mxu0 0.0
      %v2870 = vand.u32 %v2228, 4294901760
      %2871 = vmatpush1.msra.mxu0 %v2870
      %2872 = vmatprep.subr.mxu0 0.0
      %v2873 = vand.u32 %v2229, 4294901760
      %2874 = vmatpush1.msra.mxu0 %v2873
      %2875 = vmatprep.subr.mxu0 0.0
      %v2876 = vand.u32 %v2230, 4294901760
      %2877 = vmatpush1.msra.mxu0 %v2876
      %2878 = vmatprep.subr.mxu0 0.0
      %v2879 = vand.u32 %v2231, 4294901760
      %2880 = vmatpush1.msra.mxu0 %v2879
      %2881 = vmatprep.subr.mxu0 0.0
      %v2882 = vand.u32 %v2232, 4294901760
      %2883 = vmatpush1.msra.mxu0 %v2882
      %2884 = vmatprep.subr.mxu0 0.0
      %2885 = vmatpush1.msra.mxu0 0.0
      %2886 = vmatprep.subr.mxu0 0.0
      %2887 = vmatpush1.msra.mxu0 0.0
      %2888 = vmatprep.subr.mxu0 0.0
      %2889 = vmatpush1.msra.mxu0 0.0
      %2890 = vmatprep.subr.mxu0 0.0
      %2891 = vmatpush1.msra.mxu0 0.0
      %2892 = vmatprep.subr.mxu0 0.0
      %2893 = vmatpush1.msra.mxu0 0.0
      %2894 = vmatprep.subr.mxu0 0.0
      %2895 = vmatpush1.msra.mxu0 0.0
      %2896 = vmatprep.subr.mxu0 0.0
      %2897 = vmatpush1.msra.mxu0 0.0
      %2898 = vmatprep.subr.mxu0 0.0
      %2899 = vmatpush1.msra.mxu0 0.0
      %2900 = vmatprep.subr.mxu0 0.0
      %2901 = vmatpush1.msra.mxu0 0.0
      %2902 = vmatprep.subr.mxu0 0.0
      %2903 = vmatpush1.msra.mxu0 0.0
      %2904 = vmatprep.subr.mxu0 0.0
      %2905 = vmatpush1.msra.mxu0 0.0
      %2906 = vmatprep.subr.mxu0 0.0
      %2907 = vmatpush1.msra.mxu0 0.0
      %2908 = vmatprep.subr.mxu0 0.0
      %2909 = vmatpush1.msra.mxu0 0.0
      %2910 = vmatprep.subr.mxu0 0.0
      %2911 = vmatpush1.msra.mxu0 0.0
      %2912 = vmatprep.subr.mxu0 0.0
      %2913 = vmatpush1.msra.mxu0 0.0
      %2914 = vmatprep.subr.mxu0 0.0
      %2915 = vmatpush1.msra.mxu0 0.0
      %2916 = vmatprep.mubr.f32.mxu0 0.0
      %v2917 = vand.u32 %v2120, 4294901760
      %2918 = vmatmul.mubr.f32.gmra.mrb[0].mxu0 %v2917
      %v2919 = vpop.f32.mrb[0].mxu0
      %v2920 = vadd.f32 %v2833, %v2919
      %v2921 = vpop.f32.mrb[0].mxu0
      %2922 = vdwg.mxu0
      %2923 = vmatprep.subr.mxu0 0.0
      %v2924 = vand.u32 %v2121, 4294901760
      %2925 = vmatpush1.msra.mxu0 %v2924
      %2926 = vmatprep.subr.mxu0 0.0
      %v2927 = vand.u32 %v2122, 4294901760
      %2928 = vmatpush1.msra.mxu0 %v2927
      %2929 = vmatprep.subr.mxu0 0.0
      %v2930 = vand.u32 %v2123, 4294901760
      %2931 = vmatpush1.msra.mxu0 %v2930
      %2932 = vmatprep.subr.mxu0 0.0
      %v2933 = vand.u32 %v2124, 4294901760
      %2934 = vmatpush1.msra.mxu0 %v2933
      %2935 = vmatprep.subr.mxu0 0.0
      %v2936 = vand.u32 %v2125, 4294901760
      %2937 = vmatpush1.msra.mxu0 %v2936
      %2938 = vmatprep.subr.mxu0 0.0
      %v2939 = vand.u32 %v2126, 4294901760
      %2940 = vmatpush1.msra.mxu0 %v2939
      %2941 = vmatprep.subr.mxu0 0.0
      %v2942 = vand.u32 %v2127, 4294901760
      %2943 = vmatpush1.msra.mxu0 %v2942
      %2944 = vmatprep.subr.mxu0 0.0
      %v2945 = vand.u32 %v2128, 4294901760
      %2946 = vmatpush1.msra.mxu0 %v2945
      %2947 = vmatprep.subr.mxu0 0.0
      %v2948 = vand.u32 %v2129, 4294901760
      %2949 = vmatpush1.msra.mxu0 %v2948
      %2950 = vmatprep.subr.mxu0 0.0
      %v2951 = vand.u32 %v2130, 4294901760
      %2952 = vmatpush1.msra.mxu0 %v2951
      %2953 = vmatprep.subr.mxu0 0.0
      %v2954 = vand.u32 %v2131, 4294901760
      %2955 = vmatpush1.msra.mxu0 %v2954
      %2956 = vmatprep.subr.mxu0 0.0
      %v2957 = vand.u32 %v2132, 4294901760
      %2958 = vmatpush1.msra.mxu0 %v2957
      %2959 = vmatprep.subr.mxu0 0.0
      %v2960 = vand.u32 %v2133, 4294901760
      %2961 = vmatpush1.msra.mxu0 %v2960
      %2962 = vmatprep.subr.mxu0 0.0
      %v2963 = vand.u32 %v2134, 4294901760
      %2964 = vmatpush1.msra.mxu0 %v2963
      %2965 = vmatprep.subr.mxu0 0.0
      %v2966 = vand.u32 %v2135, 4294901760
      %2967 = vmatpush1.msra.mxu0 %v2966
      %2968 = vmatprep.subr.mxu0 0.0
      %v2969 = vand.u32 %v2136, 4294901760
      %2970 = vmatpush1.msra.mxu0 %v2969
      %2971 = vmatprep.subr.mxu0 0.0
      %2972 = vmatpush1.msra.mxu0 0.0
      %2973 = vmatprep.subr.mxu0 0.0
      %2974 = vmatpush1.msra.mxu0 0.0
      %2975 = vmatprep.subr.mxu0 0.0
      %2976 = vmatpush1.msra.mxu0 0.0
      %2977 = vmatprep.subr.mxu0 0.0
      %2978 = vmatpush1.msra.mxu0 0.0
      %2979 = vmatprep.subr.mxu0 0.0
      %2980 = vmatpush1.msra.mxu0 0.0
      %2981 = vmatprep.subr.mxu0 0.0
      %2982 = vmatpush1.msra.mxu0 0.0
      %2983 = vmatprep.subr.mxu0 0.0
      %2984 = vmatpush1.msra.mxu0 0.0
      %2985 = vmatprep.subr.mxu0 0.0
      %2986 = vmatpush1.msra.mxu0 0.0
      %2987 = vmatprep.subr.mxu0 0.0
      %2988 = vmatpush1.msra.mxu0 0.0
      %2989 = vmatprep.subr.mxu0 0.0
      %2990 = vmatpush1.msra.mxu0 0.0
      %2991 = vmatprep.subr.mxu0 0.0
      %2992 = vmatpush1.msra.mxu0 0.0
      %2993 = vmatprep.subr.mxu0 0.0
      %2994 = vmatpush1.msra.mxu0 0.0
      %2995 = vmatprep.subr.mxu0 0.0
      %2996 = vmatpush1.msra.mxu0 0.0
      %2997 = vmatprep.subr.mxu0 0.0
      %2998 = vmatpush1.msra.mxu0 0.0
      %2999 = vmatprep.subr.mxu0 0.0
      %3000 = vmatpush1.msra.mxu0 0.0
      %3001 = vmatprep.subr.mxu0 0.0
      %3002 = vmatpush1.msra.mxu0 0.0
      %3003 = vmatprep.mubr.f32.mxu0 0.0
      %v3004 = vand.u32 %v2120, 4294901760
      %v3005 = vsub.f32 %v2120, %v3004
      %v3006 = vand.u32 %v3005, 4294901760
      %v3007 = vsub.f32 %v3005, %v3006
      %v3008 = vand.u32 %v3007, 4294901760
      %3009 = vmatmul.mubr.f32.gmra.mrb[0].mxu0 %v3008
      %v3010 = vpop.f32.mrb[0].mxu0
      %v3011 = vadd.f32 0.0, %v3010
      %v3012 = vpop.f32.mrb[0].mxu0
      %3013 = vdwg.mxu0
      %3014 = vmatprep.subr.mxu0 0.0
      %v3015 = vand.u32 %v2121, 4294901760
      %v3016 = vsub.f32 %v2121, %v3015
      %v3017 = vand.u32 %v3016, 4294901760
      %v3018 = vsub.f32 %v3016, %v3017
      %v3019 = vand.u32 %v3018, 4294901760
      %3020 = vmatpush1.msra.mxu0 %v3019
      %3021 = vmatprep.subr.mxu0 0.0
      %v3022 = vand.u32 %v2122, 4294901760
      %v3023 = vsub.f32 %v2122, %v3022
      %v3024 = vand.u32 %v3023, 4294901760
      %v3025 = vsub.f32 %v3023, %v3024
      %v3026 = vand.u32 %v3025, 4294901760
      %3027 = vmatpush1.msra.mxu0 %v3026
      %3028 = vmatprep.subr.mxu0 0.0
      %v3029 = vand.u32 %v2123, 4294901760
      %v3030 = vsub.f32 %v2123, %v3029
      %v3031 = vand.u32 %v3030, 4294901760
      %v3032 = vsub.f32 %v3030, %v3031
      %v3033 = vand.u32 %v3032, 4294901760
      %3034 = vmatpush1.msra.mxu0 %v3033
      %3035 = vmatprep.subr.mxu0 0.0
      %v3036 = vand.u32 %v2124, 4294901760
      %v3037 = vsub.f32 %v2124, %v3036
      %v3038 = vand.u32 %v3037, 4294901760
      %v3039 = vsub.f32 %v3037, %v3038
      %v3040 = vand.u32 %v3039, 4294901760
      %3041 = vmatpush1.msra.mxu0 %v3040
      %3042 = vmatprep.subr.mxu0 0.0
      %v3043 = vand.u32 %v2125, 4294901760
      %v3044 = vsub.f32 %v2125, %v3043
      %v3045 = vand.u32 %v3044, 4294901760
      %v3046 = vsub.f32 %v3044, %v3045
      %v3047 = vand.u32 %v3046, 4294901760
      %3048 = vmatpush1.msra.mxu0 %v3047
      %3049 = vmatprep.subr.mxu0 0.0
      %v3050 = vand.u32 %v2126, 4294901760
      %v3051 = vsub.f32 %v2126, %v3050
      %v3052 = vand.u32 %v3051, 4294901760
      %v3053 = vsub.f32 %v3051, %v3052
      %v3054 = vand.u32 %v3053, 4294901760
      %3055 = vmatpush1.msra.mxu0 %v3054
      %3056 = vmatprep.subr.mxu0 0.0
      %v3057 = vand.u32 %v2127, 4294901760
      %v3058 = vsub.f32 %v2127, %v3057
      %v3059 = vand.u32 %v3058, 4294901760
      %v3060 = vsub.f32 %v3058, %v3059
      %v3061 = vand.u32 %v3060, 4294901760
      %3062 = vmatpush1.msra.mxu0 %v3061
      %3063 = vmatprep.subr.mxu0 0.0
      %v3064 = vand.u32 %v2128, 4294901760
      %v3065 = vsub.f32 %v2128, %v3064
      %v3066 = vand.u32 %v3065, 4294901760
      %v3067 = vsub.f32 %v3065, %v3066
      %v3068 = vand.u32 %v3067, 4294901760
      %3069 = vmatpush1.msra.mxu0 %v3068
      %3070 = vmatprep.subr.mxu0 0.0
      %v3071 = vand.u32 %v2129, 4294901760
      %v3072 = vsub.f32 %v2129, %v3071
      %v3073 = vand.u32 %v3072, 4294901760
      %v3074 = vsub.f32 %v3072, %v3073
      %v3075 = vand.u32 %v3074, 4294901760
      %3076 = vmatpush1.msra.mxu0 %v3075
      %3077 = vmatprep.subr.mxu0 0.0
      %v3078 = vand.u32 %v2130, 4294901760
      %v3079 = vsub.f32 %v2130, %v3078
      %v3080 = vand.u32 %v3079, 4294901760
      %v3081 = vsub.f32 %v3079, %v3080
      %v3082 = vand.u32 %v3081, 4294901760
      %3083 = vmatpush1.msra.mxu0 %v3082
      %3084 = vmatprep.subr.mxu0 0.0
      %v3085 = vand.u32 %v2131, 4294901760
      %v3086 = vsub.f32 %v2131, %v3085
      %v3087 = vand.u32 %v3086, 4294901760
      %v3088 = vsub.f32 %v3086, %v3087
      %v3089 = vand.u32 %v3088, 4294901760
      %3090 = vmatpush1.msra.mxu0 %v3089
      %3091 = vmatprep.subr.mxu0 0.0
      %v3092 = vand.u32 %v2132, 4294901760
      %v3093 = vsub.f32 %v2132, %v3092
      %v3094 = vand.u32 %v3093, 4294901760
      %v3095 = vsub.f32 %v3093, %v3094
      %v3096 = vand.u32 %v3095, 4294901760
      %3097 = vmatpush1.msra.mxu0 %v3096
      %3098 = vmatprep.subr.mxu0 0.0
      %v3099 = vand.u32 %v2133, 4294901760
      %v3100 = vsub.f32 %v2133, %v3099
      %v3101 = vand.u32 %v3100, 4294901760
      %v3102 = vsub.f32 %v3100, %v3101
      %v3103 = vand.u32 %v3102, 4294901760
      %3104 = vmatpush1.msra.mxu0 %v3103
      %3105 = vmatprep.subr.mxu0 0.0
      %v3106 = vand.u32 %v2134, 4294901760
      %v3107 = vsub.f32 %v2134, %v3106
      %v3108 = vand.u32 %v3107, 4294901760
      %v3109 = vsub.f32 %v3107, %v3108
      %v3110 = vand.u32 %v3109, 4294901760
      %3111 = vmatpush1.msra.mxu0 %v3110
      %3112 = vmatprep.subr.mxu0 0.0
      %v3113 = vand.u32 %v2135, 4294901760
      %v3114 = vsub.f32 %v2135, %v3113
      %v3115 = vand.u32 %v3114, 4294901760
      %v3116 = vsub.f32 %v3114, %v3115
      %v3117 = vand.u32 %v3116, 4294901760
      %3118 = vmatpush1.msra.mxu0 %v3117
      %3119 = vmatprep.subr.mxu0 0.0
      %v3120 = vand.u32 %v2136, 4294901760
      %v3121 = vsub.f32 %v2136, %v3120
      %v3122 = vand.u32 %v3121, 4294901760
      %v3123 = vsub.f32 %v3121, %v3122
      %v3124 = vand.u32 %v3123, 4294901760
      %3125 = vmatpush1.msra.mxu0 %v3124
      %3126 = vmatprep.subr.mxu0 0.0
      %3127 = vmatpush1.msra.mxu0 0.0
      %3128 = vmatprep.subr.mxu0 0.0
      %3129 = vmatpush1.msra.mxu0 0.0
      %3130 = vmatprep.subr.mxu0 0.0
      %3131 = vmatpush1.msra.mxu0 0.0
      %3132 = vmatprep.subr.mxu0 0.0
      %3133 = vmatpush1.msra.mxu0 0.0
      %3134 = vmatprep.subr.mxu0 0.0
      %3135 = vmatpush1.msra.mxu0 0.0
      %3136 = vmatprep.subr.mxu0 0.0
      %3137 = vmatpush1.msra.mxu0 0.0
      %3138 = vmatprep.subr.mxu0 0.0
      %3139 = vmatpush1.msra.mxu0 0.0
      %3140 = vmatprep.subr.mxu0 0.0
      %3141 = vmatpush1.msra.mxu0 0.0
      %3142 = vmatprep.subr.mxu0 0.0
      %3143 = vmatpush1.msra.mxu0 0.0
      %3144 = vmatprep.subr.mxu0 0.0
      %3145 = vmatpush1.msra.mxu0 0.0
      %3146 = vmatprep.subr.mxu0 0.0
      %3147 = vmatpush1.msra.mxu0 0.0
      %3148 = vmatprep.subr.mxu0 0.0
      %3149 = vmatpush1.msra.mxu0 0.0
      %3150 = vmatprep.subr.mxu0 0.0
      %3151 = vmatpush1.msra.mxu0 0.0
      %3152 = vmatprep.subr.mxu0 0.0
      %3153 = vmatpush1.msra.mxu0 0.0
      %3154 = vmatprep.subr.mxu0 0.0
      %3155 = vmatpush1.msra.mxu0 0.0
      %3156 = vmatprep.subr.mxu0 0.0
      %3157 = vmatpush1.msra.mxu0 0.0
      %3158 = vmatprep.mubr.f32.mxu0 0.0
      %v3159 = vand.u32 %v2120, 4294901760
      %3160 = vmatmul.mubr.f32.gmra.mrb[0].mxu0 %v3159
      %v3161 = vpop.f32.mrb[0].mxu0
      %v3162 = vadd.f32 %v3011, %v3161
      %v3163 = vpop.f32.mrb[0].mxu0
      %3164 = vdwg.mxu0
      %3165 = vmatprep.subr.mxu0 0.0
      %v3166 = vand.u32 %v2121, 4294901760
      %v3167 = vsub.f32 %v2121, %v3166
      %3168 = vmatpush1.msra.mxu0 %v3167
      %3169 = vmatprep.subr.mxu0 0.0
      %v3170 = vand.u32 %v2122, 4294901760
      %v3171 = vsub.f32 %v2122, %v3170
      %3172 = vmatpush1.msra.mxu0 %v3171
      %3173 = vmatprep.subr.mxu0 0.0
      %v3174 = vand.u32 %v2123, 4294901760
      %v3175 = vsub.f32 %v2123, %v3174
      %3176 = vmatpush1.msra.mxu0 %v3175
      %3177 = vmatprep.subr.mxu0 0.0
      %v3178 = vand.u32 %v2124, 4294901760
      %v3179 = vsub.f32 %v2124, %v3178
      %3180 = vmatpush1.msra.mxu0 %v3179
      %3181 = vmatprep.subr.mxu0 0.0
      %v3182 = vand.u32 %v2125, 4294901760
      %v3183 = vsub.f32 %v2125, %v3182
      %3184 = vmatpush1.msra.mxu0 %v3183
      %3185 = vmatprep.subr.mxu0 0.0
      %v3186 = vand.u32 %v2126, 4294901760
      %v3187 = vsub.f32 %v2126, %v3186
      %3188 = vmatpush1.msra.mxu0 %v3187
      %3189 = vmatprep.subr.mxu0 0.0
      %v3190 = vand.u32 %v2127, 4294901760
      %v3191 = vsub.f32 %v2127, %v3190
      %3192 = vmatpush1.msra.mxu0 %v3191
      %3193 = vmatprep.subr.mxu0 0.0
      %v3194 = vand.u32 %v2128, 4294901760
      %v3195 = vsub.f32 %v2128, %v3194
      %3196 = vmatpush1.msra.mxu0 %v3195
      %3197 = vmatprep.subr.mxu0 0.0
      %v3198 = vand.u32 %v2129, 4294901760
      %v3199 = vsub.f32 %v2129, %v3198
      %3200 = vmatpush1.msra.mxu0 %v3199
      %3201 = vmatprep.subr.mxu0 0.0
      %v3202 = vand.u32 %v2130, 4294901760
      %v3203 = vsub.f32 %v2130, %v3202
      %3204 = vmatpush1.msra.mxu0 %v3203
      %3205 = vmatprep.subr.mxu0 0.0
      %v3206 = vand.u32 %v2131, 4294901760
      %v3207 = vsub.f32 %v2131, %v3206
      %3208 = vmatpush1.msra.mxu0 %v3207
      %3209 = vmatprep.subr.mxu0 0.0
      %v3210 = vand.u32 %v2132, 4294901760
      %v3211 = vsub.f32 %v2132, %v3210
      %3212 = vmatpush1.msra.mxu0 %v3211
      %3213 = vmatprep.subr.mxu0 0.0
      %v3214 = vand.u32 %v2133, 4294901760
      %v3215 = vsub.f32 %v2133, %v3214
      %3216 = vmatpush1.msra.mxu0 %v3215
      %3217 = vmatprep.subr.mxu0 0.0
      %v3218 = vand.u32 %v2134, 4294901760
      %v3219 = vsub.f32 %v2134, %v3218
      %3220 = vmatpush1.msra.mxu0 %v3219
      %3221 = vmatprep.subr.mxu0 0.0
      %v3222 = vand.u32 %v2135, 4294901760
      %v3223 = vsub.f32 %v2135, %v3222
      %3224 = vmatpush1.msra.mxu0 %v3223
      %3225 = vmatprep.subr.mxu0 0.0
      %v3226 = vand.u32 %v2136, 4294901760
      %v3227 = vsub.f32 %v2136, %v3226
      %3228 = vmatpush1.msra.mxu0 %v3227
      %3229 = vmatprep.subr.mxu0 0.0
      %3230 = vmatpush1.msra.mxu0 0.0
      %3231 = vmatprep.subr.mxu0 0.0
      %3232 = vmatpush1.msra.mxu0 0.0
      %3233 = vmatprep.subr.mxu0 0.0
      %3234 = vmatpush1.msra.mxu0 0.0
      %3235 = vmatprep.subr.mxu0 0.0
      %3236 = vmatpush1.msra.mxu0 0.0
      %3237 = vmatprep.subr.mxu0 0.0
      %3238 = vmatpush1.msra.mxu0 0.0
      %3239 = vmatprep.subr.mxu0 0.0
      %3240 = vmatpush1.msra.mxu0 0.0
      %3241 = vmatprep.subr.mxu0 0.0
      %3242 = vmatpush1.msra.mxu0 0.0
      %3243 = vmatprep.subr.mxu0 0.0
      %3244 = vmatpush1.msra.mxu0 0.0
      %3245 = vmatprep.subr.mxu0 0.0
      %3246 = vmatpush1.msra.mxu0 0.0
      %3247 = vmatprep.subr.mxu0 0.0
      %3248 = vmatpush1.msra.mxu0 0.0
      %3249 = vmatprep.subr.mxu0 0.0
      %3250 = vmatpush1.msra.mxu0 0.0
      %3251 = vmatprep.subr.mxu0 0.0
      %3252 = vmatpush1.msra.mxu0 0.0
      %3253 = vmatprep.subr.mxu0 0.0
      %3254 = vmatpush1.msra.mxu0 0.0
      %3255 = vmatprep.subr.mxu0 0.0
      %3256 = vmatpush1.msra.mxu0 0.0
      %3257 = vmatprep.subr.mxu0 0.0
      %3258 = vmatpush1.msra.mxu0 0.0
      %3259 = vmatprep.subr.mxu0 0.0
      %3260 = vmatpush1.msra.mxu0 0.0
      %3261 = vmatprep.mubr.f32.mxu0 0.0
      %v3262 = vand.u32 %v2120, 4294901760
      %v3263 = vsub.f32 %v2120, %v3262
      %3264 = vmatmul.mubr.f32.gmra.mrb[0].mxu0 %v3263
      %v3265 = vpop.f32.mrb[0].mxu0
      %v3266 = vadd.f32 %v3162, %v3265
      %v3267 = vpop.f32.mrb[0].mxu0
      %3268 = vdwg.mxu0
      %3269 = vmatprep.subr.mxu0 0.0
      %v3270 = vand.u32 %v2121, 4294901760
      %3271 = vmatpush1.msra.mxu0 %v3270
      %3272 = vmatprep.subr.mxu0 0.0
      %v3273 = vand.u32 %v2122, 4294901760
      %3274 = vmatpush1.msra.mxu0 %v3273
      %3275 = vmatprep.subr.mxu0 0.0
      %v3276 = vand.u32 %v2123, 4294901760
      %3277 = vmatpush1.msra.mxu0 %v3276
      %3278 = vmatprep.subr.mxu0 0.0
      %v3279 = vand.u32 %v2124, 4294901760
      %3280 = vmatpush1.msra.mxu0 %v3279
      %3281 = vmatprep.subr.mxu0 0.0
      %v3282 = vand.u32 %v2125, 4294901760
      %3283 = vmatpush1.msra.mxu0 %v3282
      %3284 = vmatprep.subr.mxu0 0.0
      %v3285 = vand.u32 %v2126, 4294901760
      %3286 = vmatpush1.msra.mxu0 %v3285
      %3287 = vmatprep.subr.mxu0 0.0
      %v3288 = vand.u32 %v2127, 4294901760
      %3289 = vmatpush1.msra.mxu0 %v3288
      %3290 = vmatprep.subr.mxu0 0.0
      %v3291 = vand.u32 %v2128, 4294901760
      %3292 = vmatpush1.msra.mxu0 %v3291
      %3293 = vmatprep.subr.mxu0 0.0
      %v3294 = vand.u32 %v2129, 4294901760
      %3295 = vmatpush1.msra.mxu0 %v3294
      %3296 = vmatprep.subr.mxu0 0.0
      %v3297 = vand.u32 %v2130, 4294901760
      %3298 = vmatpush1.msra.mxu0 %v3297
      %3299 = vmatprep.subr.mxu0 0.0
      %v3300 = vand.u32 %v2131, 4294901760
      %3301 = vmatpush1.msra.mxu0 %v3300
      %3302 = vmatprep.subr.mxu0 0.0
      %v3303 = vand.u32 %v2132, 4294901760
      %3304 = vmatpush1.msra.mxu0 %v3303
      %3305 = vmatprep.subr.mxu0 0.0
      %v3306 = vand.u32 %v2133, 4294901760
      %3307 = vmatpush1.msra.mxu0 %v3306
      %3308 = vmatprep.subr.mxu0 0.0
      %v3309 = vand.u32 %v2134, 4294901760
      %3310 = vmatpush1.msra.mxu0 %v3309
      %3311 = vmatprep.subr.mxu0 0.0
      %v3312 = vand.u32 %v2135, 4294901760
      %3313 = vmatpush1.msra.mxu0 %v3312
      %3314 = vmatprep.subr.mxu0 0.0
      %v3315 = vand.u32 %v2136, 4294901760
      %3316 = vmatpush1.msra.mxu0 %v3315
      %3317 = vmatprep.subr.mxu0 0.0
      %3318 = vmatpush1.msra.mxu0 0.0
      %3319 = vmatprep.subr.mxu0 0.0
      %3320 = vmatpush1.msra.mxu0 0.0
      %3321 = vmatprep.subr.mxu0 0.0
      %3322 = vmatpush1.msra.mxu0 0.0
      %3323 = vmatprep.subr.mxu0 0.0
      %3324 = vmatpush1.msra.mxu0 0.0
      %3325 = vmatprep.subr.mxu0 0.0
      %3326 = vmatpush1.msra.mxu0 0.0
      %3327 = vmatprep.subr.mxu0 0.0
      %3328 = vmatpush1.msra.mxu0 0.0
      %3329 = vmatprep.subr.mxu0 0.0
      %3330 = vmatpush1.msra.mxu0 0.0
      %3331 = vmatprep.subr.mxu0 0.0
      %3332 = vmatpush1.msra.mxu0 0.0
      %3333 = vmatprep.subr.mxu0 0.0
      %3334 = vmatpush1.msra.mxu0 0.0
      %3335 = vmatprep.subr.mxu0 0.0
      %3336 = vmatpush1.msra.mxu0 0.0
      %3337 = vmatprep.subr.mxu0 0.0
      %3338 = vmatpush1.msra.mxu0 0.0
      %3339 = vmatprep.subr.mxu0 0.0
      %3340 = vmatpush1.msra.mxu0 0.0
      %3341 = vmatprep.subr.mxu0 0.0
      %3342 = vmatpush1.msra.mxu0 0.0
      %3343 = vmatprep.subr.mxu0 0.0
      %3344 = vmatpush1.msra.mxu0 0.0
      %3345 = vmatprep.subr.mxu0 0.0
      %3346 = vmatpush1.msra.mxu0 0.0
      %3347 = vmatprep.subr.mxu0 0.0
      %3348 = vmatpush1.msra.mxu0 0.0
      %3349 = vmatprep.mubr.f32.mxu0 0.0
      %v3350 = vand.u32 %v2120, 4294901760
      %v3351 = vsub.f32 %v2120, %v3350
      %v3352 = vand.u32 %v3351, 4294901760
      %3353 = vmatmul.mubr.f32.gmra.mrb[0].mxu0 %v3352
      %v3354 = vpop.f32.mrb[0].mxu0
      %v3355 = vadd.f32 %v3266, %v3354
      %v3356 = vpop.f32.mrb[0].mxu0
      %3357 = vdwg.mxu0
      %3358 = vmatprep.subr.mxu0 0.0
      %v3359 = vand.u32 %v2121, 4294901760
      %v3360 = vsub.f32 %v2121, %v3359
      %v3361 = vand.u32 %v3360, 4294901760
      %3362 = vmatpush1.msra.mxu0 %v3361
      %3363 = vmatprep.subr.mxu0 0.0
      %v3364 = vand.u32 %v2122, 4294901760
      %v3365 = vsub.f32 %v2122, %v3364
      %v3366 = vand.u32 %v3365, 4294901760
      %3367 = vmatpush1.msra.mxu0 %v3366
      %3368 = vmatprep.subr.mxu0 0.0
      %v3369 = vand.u32 %v2123, 4294901760
      %v3370 = vsub.f32 %v2123, %v3369
      %v3371 = vand.u32 %v3370, 4294901760
      %3372 = vmatpush1.msra.mxu0 %v3371
      %3373 = vmatprep.subr.mxu0 0.0
      %v3374 = vand.u32 %v2124, 4294901760
      %v3375 = vsub.f32 %v2124, %v3374
      %v3376 = vand.u32 %v3375, 4294901760
      %3377 = vmatpush1.msra.mxu0 %v3376
      %3378 = vmatprep.subr.mxu0 0.0
      %v3379 = vand.u32 %v2125, 4294901760
      %v3380 = vsub.f32 %v2125, %v3379
      %v3381 = vand.u32 %v3380, 4294901760
      %3382 = vmatpush1.msra.mxu0 %v3381
      %3383 = vmatprep.subr.mxu0 0.0
      %v3384 = vand.u32 %v2126, 4294901760
      %v3385 = vsub.f32 %v2126, %v3384
      %v3386 = vand.u32 %v3385, 4294901760
      %3387 = vmatpush1.msra.mxu0 %v3386
      %3388 = vmatprep.subr.mxu0 0.0
      %v3389 = vand.u32 %v2127, 4294901760
      %v3390 = vsub.f32 %v2127, %v3389
      %v3391 = vand.u32 %v3390, 4294901760
      %3392 = vmatpush1.msra.mxu0 %v3391
      %3393 = vmatprep.subr.mxu0 0.0
      %v3394 = vand.u32 %v2128, 4294901760
      %v3395 = vsub.f32 %v2128, %v3394
      %v3396 = vand.u32 %v3395, 4294901760
      %3397 = vmatpush1.msra.mxu0 %v3396
      %3398 = vmatprep.subr.mxu0 0.0
      %v3399 = vand.u32 %v2129, 4294901760
      %v3400 = vsub.f32 %v2129, %v3399
      %v3401 = vand.u32 %v3400, 4294901760
      %3402 = vmatpush1.msra.mxu0 %v3401
      %3403 = vmatprep.subr.mxu0 0.0
      %v3404 = vand.u32 %v2130, 4294901760
      %v3405 = vsub.f32 %v2130, %v3404
      %v3406 = vand.u32 %v3405, 4294901760
      %3407 = vmatpush1.msra.mxu0 %v3406
      %3408 = vmatprep.subr.mxu0 0.0
      %v3409 = vand.u32 %v2131, 4294901760
      %v3410 = vsub.f32 %v2131, %v3409
      %v3411 = vand.u32 %v3410, 4294901760
      %3412 = vmatpush1.msra.mxu0 %v3411
      %3413 = vmatprep.subr.mxu0 0.0
      %v3414 = vand.u32 %v2132, 4294901760
      %v3415 = vsub.f32 %v2132, %v3414
      %v3416 = vand.u32 %v3415, 4294901760
      %3417 = vmatpush1.msra.mxu0 %v3416
      %3418 = vmatprep.subr.mxu0 0.0
      %v3419 = vand.u32 %v2133, 4294901760
      %v3420 = vsub.f32 %v2133, %v3419
      %v3421 = vand.u32 %v3420, 4294901760
      %3422 = vmatpush1.msra.mxu0 %v3421
      %3423 = vmatprep.subr.mxu0 0.0
      %v3424 = vand.u32 %v2134, 4294901760
      %v3425 = vsub.f32 %v2134, %v3424
      %v3426 = vand.u32 %v3425, 4294901760
      %3427 = vmatpush1.msra.mxu0 %v3426
      %3428 = vmatprep.subr.mxu0 0.0
      %v3429 = vand.u32 %v2135, 4294901760
      %v3430 = vsub.f32 %v2135, %v3429
      %v3431 = vand.u32 %v3430, 4294901760
      %3432 = vmatpush1.msra.mxu0 %v3431
      %3433 = vmatprep.subr.mxu0 0.0
      %v3434 = vand.u32 %v2136, 4294901760
      %v3435 = vsub.f32 %v2136, %v3434
      %v3436 = vand.u32 %v3435, 4294901760
      %3437 = vmatpush1.msra.mxu0 %v3436
      %3438 = vmatprep.subr.mxu0 0.0
      %3439 = vmatpush1.msra.mxu0 0.0
      %3440 = vmatprep.subr.mxu0 0.0
      %3441 = vmatpush1.msra.mxu0 0.0
      %3442 = vmatprep.subr.mxu0 0.0
      %3443 = vmatpush1.msra.mxu0 0.0
      %3444 = vmatprep.subr.mxu0 0.0
      %3445 = vmatpush1.msra.mxu0 0.0
      %3446 = vmatprep.subr.mxu0 0.0
      %3447 = vmatpush1.msra.mxu0 0.0
      %3448 = vmatprep.subr.mxu0 0.0
      %3449 = vmatpush1.msra.mxu0 0.0
      %3450 = vmatprep.subr.mxu0 0.0
      %3451 = vmatpush1.msra.mxu0 0.0
      %3452 = vmatprep.subr.mxu0 0.0
      %3453 = vmatpush1.msra.mxu0 0.0
      %3454 = vmatprep.subr.mxu0 0.0
      %3455 = vmatpush1.msra.mxu0 0.0
      %3456 = vmatprep.subr.mxu0 0.0
      %3457 = vmatpush1.msra.mxu0 0.0
      %3458 = vmatprep.subr.mxu0 0.0
      %3459 = vmatpush1.msra.mxu0 0.0
      %3460 = vmatprep.subr.mxu0 0.0
      %3461 = vmatpush1.msra.mxu0 0.0
      %3462 = vmatprep.subr.mxu0 0.0
      %3463 = vmatpush1.msra.mxu0 0.0
      %3464 = vmatprep.subr.mxu0 0.0
      %3465 = vmatpush1.msra.mxu0 0.0
      %3466 = vmatprep.subr.mxu0 0.0
      %3467 = vmatpush1.msra.mxu0 0.0
      %3468 = vmatprep.subr.mxu0 0.0
      %3469 = vmatpush1.msra.mxu0 0.0
      %3470 = vmatprep.mubr.f32.mxu0 0.0
      %v3471 = vand.u32 %v2120, 4294901760
      %3472 = vmatmul.mubr.f32.gmra.mrb[0].mxu0 %v3471
      %v3473 = vpop.f32.mrb[0].mxu0
      %v3474 = vadd.f32 %v3355, %v3473
      %v3475 = vpop.f32.mrb[0].mxu0
      %3476 = vdwg.mxu0
      %3477 = vmatprep.subr.mxu0 0.0
      %v3478 = vand.u32 %v2121, 4294901760
      %3479 = vmatpush1.msra.mxu0 %v3478
      %3480 = vmatprep.subr.mxu0 0.0
      %v3481 = vand.u32 %v2122, 4294901760
      %3482 = vmatpush1.msra.mxu0 %v3481
      %3483 = vmatprep.subr.mxu0 0.0
      %v3484 = vand.u32 %v2123, 4294901760
      %3485 = vmatpush1.msra.mxu0 %v3484
      %3486 = vmatprep.subr.mxu0 0.0
      %v3487 = vand.u32 %v2124, 4294901760
      %3488 = vmatpush1.msra.mxu0 %v3487
      %3489 = vmatprep.subr.mxu0 0.0
      %v3490 = vand.u32 %v2125, 4294901760
      %3491 = vmatpush1.msra.mxu0 %v3490
      %3492 = vmatprep.subr.mxu0 0.0
      %v3493 = vand.u32 %v2126, 4294901760
      %3494 = vmatpush1.msra.mxu0 %v3493
      %3495 = vmatprep.subr.mxu0 0.0
      %v3496 = vand.u32 %v2127, 4294901760
      %3497 = vmatpush1.msra.mxu0 %v3496
      %3498 = vmatprep.subr.mxu0 0.0
      %v3499 = vand.u32 %v2128, 4294901760
      %3500 = vmatpush1.msra.mxu0 %v3499
      %3501 = vmatprep.subr.mxu0 0.0
      %v3502 = vand.u32 %v2129, 4294901760
      %3503 = vmatpush1.msra.mxu0 %v3502
      %3504 = vmatprep.subr.mxu0 0.0
      %v3505 = vand.u32 %v2130, 4294901760
      %3506 = vmatpush1.msra.mxu0 %v3505
      %3507 = vmatprep.subr.mxu0 0.0
      %v3508 = vand.u32 %v2131, 4294901760
      %3509 = vmatpush1.msra.mxu0 %v3508
      %3510 = vmatprep.subr.mxu0 0.0
      %v3511 = vand.u32 %v2132, 4294901760
      %3512 = vmatpush1.msra.mxu0 %v3511
      %3513 = vmatprep.subr.mxu0 0.0
      %v3514 = vand.u32 %v2133, 4294901760
      %3515 = vmatpush1.msra.mxu0 %v3514
      %3516 = vmatprep.subr.mxu0 0.0
      %v3517 = vand.u32 %v2134, 4294901760
      %3518 = vmatpush1.msra.mxu0 %v3517
      %3519 = vmatprep.subr.mxu0 0.0
      %v3520 = vand.u32 %v2135, 4294901760
      %3521 = vmatpush1.msra.mxu0 %v3520
      %3522 = vmatprep.subr.mxu0 0.0
      %v3523 = vand.u32 %v2136, 4294901760
      %3524 = vmatpush1.msra.mxu0 %v3523
      %3525 = vmatprep.subr.mxu0 0.0
      %3526 = vmatpush1.msra.mxu0 0.0
      %3527 = vmatprep.subr.mxu0 0.0
      %3528 = vmatpush1.msra.mxu0 0.0
      %3529 = vmatprep.subr.mxu0 0.0
      %3530 = vmatpush1.msra.mxu0 0.0
      %3531 = vmatprep.subr.mxu0 0.0
      %3532 = vmatpush1.msra.mxu0 0.0
      %3533 = vmatprep.subr.mxu0 0.0
      %3534 = vmatpush1.msra.mxu0 0.0
      %3535 = vmatprep.subr.mxu0 0.0
      %3536 = vmatpush1.msra.mxu0 0.0
      %3537 = vmatprep.subr.mxu0 0.0
      %3538 = vmatpush1.msra.mxu0 0.0
      %3539 = vmatprep.subr.mxu0 0.0
      %3540 = vmatpush1.msra.mxu0 0.0
      %3541 = vmatprep.subr.mxu0 0.0
      %3542 = vmatpush1.msra.mxu0 0.0
      %3543 = vmatprep.subr.mxu0 0.0
      %3544 = vmatpush1.msra.mxu0 0.0
      %3545 = vmatprep.subr.mxu0 0.0
      %3546 = vmatpush1.msra.mxu0 0.0
      %3547 = vmatprep.subr.mxu0 0.0
      %3548 = vmatpush1.msra.mxu0 0.0
      %3549 = vmatprep.subr.mxu0 0.0
      %3550 = vmatpush1.msra.mxu0 0.0
      %3551 = vmatprep.subr.mxu0 0.0
      %3552 = vmatpush1.msra.mxu0 0.0
      %3553 = vmatprep.subr.mxu0 0.0
      %3554 = vmatpush1.msra.mxu0 0.0
      %3555 = vmatprep.subr.mxu0 0.0
      %3556 = vmatpush1.msra.mxu0 0.0
      %3557 = vmatprep.mubr.f32.mxu0 0.0
      %v3558 = vand.u32 %v2120, 4294901760
      %3559 = vmatmul.mubr.f32.gmra.mrb[0].mxu0 %v3558
      %v3560 = vpop.f32.mrb[0].mxu0
      %v3561 = vadd.f32 %v3474, %v3560
      %v3562 = vpop.f32.mrb[0].mxu0
      %3563 = vdwg.mxu0
      %v3564 = vld [vmem:[#allocation3] sm:$0xff]
      %3565 = vst [vmem:[#allocation4] sm:$0xff] %v3564
      %vm3566 = vcmask 18432
      %3567 = vst.msk [vmem:[#allocation6] sm:$0x7] %vm3566, %v2920
      %3568 = vst.msk [vmem:[#allocation8] sm:$0x7] %vm3566, %v3561
    $region25: #{tpu_custom_call.1} parent=1 // pred_fallthru
      _
    // Predicated region
    $region26: #{tpu_custom_call.1} parent=1 // pred_check
      _
    $region27: #{tpu_custom_call.1} parent=1 // pred_check_branch
      %3570 = sbr.rel (0) target = $region29
    $region28: #{tpu_custom_call.1} parent=1 // pred_region
      _
    $region29: #{tpu_custom_call.1} parent=1 // pred_fallthru
      _
    // Predicated region
    $region30: #{tpu_custom_call.1} parent=1 // pred_check
      _
    $region31: #{tpu_custom_call.1} parent=1 // pred_check_branch
      %3572 = sbr.rel (0) target = $region33
    $region32: #{tpu_custom_call.1} parent=1 // pred_region
      %s3574 = ssub.s32 128, 128
      %3575 = vsyncadd [#allocation5], %s3574
      %s3577 = sshll.u32 [#allocation4], 4
      %s3578 = int_to_ptr.vmem [resolvable:$true] %s3577
      %3580 = dma.vmem_to_hbm [thread:$0]  %s3578, 128, %s5, [#allocation5]
    $region33: #{tpu_custom_call.1} parent=1 // pred_fallthru
      _
    // Predicated region
    $region34: #{tpu_custom_call.1} parent=1 // pred_check
      _
    $region35: #{tpu_custom_call.1} parent=1 // pred_check_branch
      %3582 = sbr.rel (0) target = $region37
    $region36: #{tpu_custom_call.1} parent=1 // pred_region
      %s3584 = ssub.s32 128, 128
      %3585 = vsyncadd [#allocation7], %s3584
      %s3587 = sshll.u32 [#allocation6], 4
      %s3588 = int_to_ptr.vmem [resolvable:$true] %s3587
      %3590 = dma.vmem_to_hbm [thread:$0]  %s3588, 128, %s6, [#allocation7]
    $region37: #{tpu_custom_call.1} parent=1 // pred_fallthru
      _
    // Predicated region
    $region38: #{tpu_custom_call.1} parent=1 // pred_check
      _
    $region39: #{tpu_custom_call.1} parent=1 // pred_check_branch
      %3592 = sbr.rel (0) target = $region41
    $region40: #{tpu_custom_call.1} parent=1 // pred_region
      %s3594 = ssub.s32 128, 128
      %3595 = vsyncadd [#allocation7], %s3594
      %s3597 = sshll.u32 [#allocation8], 4
      %s3598 = int_to_ptr.vmem [resolvable:$true] %s3597
      %3600 = dma.vmem_to_hbm [thread:$0]  %s3598, 128, %s7, [#allocation7]
    $region41: #{tpu_custom_call.1} parent=1 // pred_fallthru
      _
    // Predicated region
    $region42: #{tpu_custom_call.1} parent=1 // pred_check
      _
    $region43: #{tpu_custom_call.1} parent=1 // pred_check_branch
      %3602 = sbr.rel (0) target = $region45
    $region44: #{tpu_custom_call.1} parent=1 // pred_region
      _
    $region45: #{tpu_custom_call.1} parent=1 // pred_fallthru
      _
    // Predicated region
    $region46: #{tpu_custom_call.1} parent=1 // pred_check
      _
    $region47: #{tpu_custom_call.1} parent=1 // pred_check_branch
      %3604 = sbr.rel (0) target = $region49
    $region48: #{tpu_custom_call.1} parent=1 // pred_region
      %3605 = dma.done [#allocation5], 128
    $region49: #{tpu_custom_call.1} parent=1 // pred_fallthru
      _
    // Predicated region
    $region50: #{tpu_custom_call.1} parent=1 // pred_check
      _
    $region51: #{tpu_custom_call.1} parent=1 // pred_check_branch
      %3607 = sbr.rel (0) target = $region53
    $region52: #{tpu_custom_call.1} parent=1 // pred_region
      %3608 = dma.done [#allocation7], 128
    $region53: #{tpu_custom_call.1} parent=1 // pred_fallthru
      _
    // Predicated region
    $region54: #{tpu_custom_call.1} parent=1 // pred_check
      _
    $region55: #{tpu_custom_call.1} parent=1 // pred_check_branch
      %3610 = sbr.rel (0) target = $region57
    $region56: #{tpu_custom_call.1} parent=1 // pred_region
      %3611 = dma.done [#allocation7], 128
    $region57: #{tpu_custom_call.1} parent=1 // pred_fallthru
      _
    %3612 = vsyncpa [#allocation5], 1
    %3613 = vsyncpa [#allocation7], 1

</llo_original>
